<compile_context>
chip_gen: v6e
topology: v6e:2x2x1
jax: 0.10.0
libtpu: 0.0.40
codegen_flags: <defaults>
</compile_context>

<pallas_src>
import functools
import jax
import jax.numpy as jnp
from jax.experimental import pallas as pl
from jax.experimental.pallas import tpu as pltpu

DIM = 3                        # SplineConv(dim=3, ...)
KS = 25                        # kernel_size per spline dimension
K_TOTAL = KS ** DIM            # 25**3 kernel weight matrices per layer
S = 2 ** DIM                   # (degree + 1)**dim non-zero basis products (degree = 1)
CHANNELS = [1, 8, 16, 32, 32, 32, 32, 32, 32, 32, 16, 8, 1]
NUM_LAYERS = len(CHANNELS) - 1
C_PAD = 32                     # all layer widths padded to 32 so one kernel serves all layers
EDGE_TILE = 256                # edges per pipelined grid step
BN_EPS = 1e-5


def _round_up(x, m):
    return (x + m - 1) // m * m


def _pick_vmem_limit():
    """Generation-aware VMEM limit (v7x: 64 MiB/TC, v5e/v6e: 128 MiB)."""
    cap = 64 * 1024 * 1024
    try:
        cap = int(getattr(pltpu.get_tpu_info(), "vmem_capacity_bytes", cap))
    except Exception:
        pass
    return max(32 * 1024 * 1024, min(cap, 128 * 1024 * 1024) - 16 * 1024 * 1024)


# ----------------------------------------------------------------------------
# Pallas kernel: fused 12-layer SplineConv + ELU + folded eval-mode BatchNorm.
# Grid = (layer, edge_tile); both axes are "arbitrary" (sequential state).
# ----------------------------------------------------------------------------
def _fused_net_kernel(x0_ref, srcoh_ref, dstoh_ref, invdeg_ref,
                      wmix_ref, wroot_ref, bss_ref, rexp_ref, rred_ref,
                      out_ref, x_cur, agg):
    l = pl.program_id(0)
    e = pl.program_id(1)
    n_etiles = pl.num_programs(1)

    @pl.when(jnp.logical_and(l == 0, e == 0))
    def _init_x():
        x_cur[...] = x0_ref[...]

    @pl.when(e == 0)
    def _init_agg():
        agg[...] = jnp.zeros_like(agg)

    x = x_cur[...]                                    # (N, C) current layer input (f32)

    # ---- gather x[src] for this edge tile: bf16 one-hot matmul, f32 acc ----
    x_src = jnp.dot(srcoh_ref[...], x.astype(jnp.bfloat16),
                    preferred_element_type=jnp.float32)          # (TE, C) f32

    # ---- per-edge transform with HOST-precombined spline weights ----------
    # wmix[e, c*C + d] = sum_s basis[e, s] * W[wi[e, s], c, d]   (done on host)
    # expand (pure lane replication via constant 0-1 matmul, bf16 MXU),
    # elementwise multiply (bf16 VPU), contract (bf16 MXU, f32 acc).
    # TODO(synk): the expand matmul could be replaced by a lane-tile of x_src
    #   (d-major flatten) once that layout reliably lowers; it is not the
    #   bottleneck after the 8x weight-stream reduction.
    x_exp = jnp.dot(x_src.astype(jnp.bfloat16), rexp_ref[...],
                    preferred_element_type=jnp.float32).astype(jnp.bfloat16)  # (TE, C*C)
    msg = jnp.dot(x_exp * wmix_ref[0], rred_ref[...],
                  preferred_element_type=jnp.float32)            # (TE, C) f32

    # ---- scatter-add over destination nodes (bf16 one-hot matmul) ---------
    agg[...] += jnp.dot(dstoh_ref[...], msg.astype(jnp.bfloat16),
                        preferred_element_type=jnp.float32)      # (N, C)

    # ---- finalize the layer after the last edge tile ----------------------
    @pl.when(e == n_etiles - 1)
    def _finish_layer():
        bss = bss_ref[0]                                         # (3, C)
        bias, scale, shift = bss[0:1, :], bss[1:2, :], bss[2:3, :]
        y = (agg[...] * invdeg_ref[...]                          # scatter-mean (precomputed 1/deg)
             + jnp.dot(x, wroot_ref[0], preferred_element_type=jnp.float32)
             + bias)
        # ELU (alpha = 1)
        y = jnp.where(y > 0.0, y, jnp.exp(jnp.minimum(y, 0.0)) - 1.0)
        # BatchNorm1d (eval mode) folded into per-channel scale/shift
        y = y * scale + shift
        x_cur[...] = y
        out_ref[...] = y                                         # last layer's y is the result


# ----------------------------------------------------------------------------
# Graph-constant precompute (done once per graph, shared by all 12 layers).
# ----------------------------------------------------------------------------
def spline_basis_deg1(pseudo, kernel_size, dim):
    """Degree-1 open B-spline basis.  Boundary indices are CLAMPED (not wrapped)
    so pseudo == 1.0 never addresses an out-of-range kernel row."""
    p = jnp.clip(pseudo.astype(jnp.float32), 0.0, 1.0)
    v = p * float(kernel_size - 1)
    v_floor = jnp.minimum(jnp.floor(v), float(kernel_size - 2))
    frac = v - v_floor
    v_floor = v_floor.astype(jnp.int32)
    basis_cols, wi_cols = [], []
    for s in range(2 ** dim):
        b = jnp.ones(p.shape[:1], jnp.float32)
        wi = jnp.zeros(p.shape[:1], jnp.int32)
        for d in range(dim):
            k = (s >> d) & 1
            b = b * (frac[:, d] if k == 1 else (1.0 - frac[:, d]))
            wi = wi + (v_floor[:, d] + k) * (kernel_size ** d)
        basis_cols.append(b)
        wi_cols.append(wi)
    return jnp.stack(basis_cols, axis=1), jnp.stack(wi_cols, axis=1)   # (E,S), (E,S)


def prepare_graph(edge_index, pseudo, num_nodes, edge_tile=EDGE_TILE):
    E = edge_index.shape[1]
    n_pad = max(_round_up(num_nodes, 128), 128)       # lane-dense node axis
    e_pad = _round_up(E, edge_tile)

    basis, wi = spline_basis_deg1(pseudo, KS, DIM)
    basis = jnp.pad(basis, ((0, e_pad - E), (0, 0)))  # padded edges carry zero basis weight
    wi = jnp.pad(wi, ((0, e_pad - E), (0, 0)))

    src = jnp.pad(edge_index[0].astype(jnp.int32), (0, e_pad - E), constant_values=-1)
    dst = jnp.pad(edge_index[1].astype(jnp.int32), (0, e_pad - E), constant_values=-1)
    node_ids = jnp.arange(n_pad, dtype=jnp.int32)

    src_oh = (src[:, None] == node_ids[None, :]).astype(jnp.bfloat16)   # (E_pad, N_pad)
    dst_hit = (node_ids[:, None] == dst[None, :])                       # (N_pad, E_pad)
    dst_oh = dst_hit.astype(jnp.bfloat16)
    deg = jnp.sum(dst_hit.astype(jnp.float32), axis=1)
    inv_deg = (1.0 / jnp.maximum(deg, 1.0)).reshape(n_pad, 1)           # precomputed reciprocal

    return dict(n_pad=n_pad, e_pad=e_pad, basis=basis, wi=wi,
                src_oh=src_oh, dst_oh=dst_oh, inv_deg=inv_deg)


def prepare_weights(params, wi, basis, c_pad=C_PAD):
    """Gather per-edge spline weights AND fold the basis-weighted combine over
    the S=8 matrices into the host precompute.  Result is lane-dense bf16:
      wmix[l, e, c*C + d] = sum_s basis[e, s] * W_l[wi[e, s], c, d]
    shipped as (L, E_pad, C*C); plus padded root weight and bias / folded BN."""
    e_pad = wi.shape[0]
    wmix_l, wroot_l, bss_l = [], [], []
    for (W, w_root, bias, scale, shift) in params:
        _, cin, cout = W.shape
        g = jnp.take(W, wi.reshape(-1), axis=0).reshape(e_pad, S, cin, cout)
        w_comb = jnp.einsum('es,escd->ecd', basis, g)                    # (E, cin, cout) f32
        w_comb = jnp.pad(w_comb, ((0, 0), (0, c_pad - cin), (0, c_pad - cout)))
        wmix_l.append(w_comb.reshape(e_pad, c_pad * c_pad).astype(jnp.bfloat16))
        wroot_l.append(jnp.pad(w_root, ((0, c_pad - cin), (0, c_pad - cout))))
        bss_l.append(jnp.stack([jnp.pad(bias, (0, c_pad - cout)),
                                jnp.pad(scale, (0, c_pad - cout)),
                                jnp.pad(shift, (0, c_pad - cout))], axis=0))
    return (jnp.stack(wmix_l),
            jnp.stack(wroot_l).astype(jnp.float32),
            jnp.stack(bss_l).astype(jnp.float32))


def make_expand_reduce(c=C_PAD):
    """Constant 0-1 matrices in bf16: expand (C -> C*C, repeat each channel C
    times, c-major flatten) and reduce (C*C -> C, sum over the Cin groups)."""
    j = jnp.arange(c * c)
    r_expand = (j[None, :] // c == jnp.arange(c)[:, None]).astype(jnp.bfloat16)  # (C, C*C)
    r_reduce = (j[:, None] % c == jnp.arange(c)[None, :]).astype(jnp.bfloat16)   # (C*C, C)
    return r_expand, r_reduce


# ----------------------------------------------------------------------------
# Fused forward (single pallas_call for all 12 layers).
# ----------------------------------------------------------------------------
@functools.partial(jax.jit, static_argnames=("edge_tile",))
def spline_net_forward(x0, src_oh, dst_oh, inv_deg,
                       wmix_all, wroot_all, bss_all, r_exp, r_red, *, edge_tile):
    n_pad, c = x0.shape
    n_layers = wmix_all.shape[0]
    e_pad = wmix_all.shape[1]
    n_et = e_pad // edge_tile
    te = edge_tile

    grid_spec = pltpu.PrefetchScalarGridSpec(
        num_scalar_prefetch=0,
        grid=(n_layers, n_et),
        in_specs=[
            pl.BlockSpec((n_pad, c), lambda l, e: (0, 0)),               # x0
            pl.BlockSpec((te, n_pad), lambda l, e: (e, 0)),              # src one-hot (bf16)
            pl.BlockSpec((n_pad, te), lambda l, e: (0, e)),              # dst one-hot (bf16)
            pl.BlockSpec((n_pad, 1), lambda l, e: (0, 0)),               # 1/deg
            pl.BlockSpec((1, te, c * c), lambda l, e: (l, e, 0)),        # precombined weights (bf16)
            pl.BlockSpec((1, c, c), lambda l, e: (l, 0, 0)),             # root weight
            pl.BlockSpec((1, 3, c), lambda l, e: (l, 0, 0)),             # bias / bn scale / bn shift
            pl.BlockSpec((c, c * c), lambda l, e: (0, 0)),               # expand matrix (bf16)
            pl.BlockSpec((c * c, c), lambda l, e: (0, 0)),               # reduce matrix (bf16)
        ],
        out_specs=pl.BlockSpec((n_pad, c), lambda l, e: (0, 0)),
        scratch_shapes=[
            pltpu.VMEM((n_pad, c), jnp.float32),      # x_cur (layer input, persists across grid)
            pltpu.VMEM((n_pad, c), jnp.float32),      # agg   (scatter accumulator)
        ])

    return pl.pallas_call(
        _fused_net_kernel,
        out_shape=jax.ShapeDtypeStruct((n_pad, c), jnp.float32),
        grid_spec=grid_spec,
        compiler_params=pltpu.CompilerParams(
            dimension_semantics=("arbitrary", "arbitrary"),
            vmem_limit_bytes=_pick_vmem_limit()),
    )(x0, src_oh, dst_oh, inv_deg, wmix_all, wroot_all, bss_all, r_exp, r_red)


def net_forward(x, edge_index, pseudo, params, edge_tile=EDGE_TILE):
    """Eval-mode forward of `Net` (the NYU generalization script runs model.eval())."""
    # TODO(synk): dropout(p=0.1) and batch-statistics BN are training-mode only;
    # eval-mode forward is implemented (dropout = identity, BN = running stats).
    num_nodes = x.shape[0]
    graph = prepare_graph(edge_index, pseudo, num_nodes, edge_tile)
    wmix_all, wroot_all, bss_all = prepare_weights(params, graph["wi"], graph["basis"])
    r_exp, r_red = make_expand_reduce(C_PAD)
    x0 = jnp.pad(x.astype(jnp.float32),
                 ((0, graph["n_pad"] - num_nodes), (0, C_PAD - x.shape[1])))
    out = spline_net_forward(x0, graph["src_oh"], graph["dst_oh"], graph["inv_deg"],
                             wmix_all, wroot_all, bss_all, r_exp, r_red,
                             edge_tile=edge_tile)
    return out[:num_nodes, :1].reshape(-1)       # .view(-1)


# ----------------------------------------------------------------------------
# Deterministic synthetic parameters with the exact module shapes.
# ----------------------------------------------------------------------------
def init_params(key):
    params = []
    for li in range(NUM_LAYERS):
        cin, cout = CHANNELS[li], CHANNELS[li + 1]
        key, k1, k2, k3, k4, k5, k6, k7 = jax.random.split(key, 8)
        W = jax.random.normal(k1, (K_TOTAL, cin, cout), jnp.float32) * (0.3 / (cin ** 0.5))
        w_root = jax.random.normal(k2, (cin, cout), jnp.float32) * (0.3 / (cin ** 0.5))
        bias = 0.05 * jax.random.normal(k3, (cout,), jnp.float32)
        if li < NUM_LAYERS - 1:   # conv1..conv11 have a BatchNorm1d; conv12 does not
            gamma = 1.0 + 0.1 * jax.random.normal(k4, (cout,), jnp.float32)
            beta = 0.1 * jax.random.normal(k5, (cout,), jnp.float32)
            run_mean = 0.1 * jax.random.normal(k6, (cout,), jnp.float32)
            run_var = 0.5 + jax.random.uniform(k7, (cout,), jnp.float32)
            scale = gamma / jnp.sqrt(run_var + BN_EPS)
            shift = beta - run_mean * scale
        else:
            scale = jnp.ones((cout,), jnp.float32)
            shift = jnp.zeros((cout,), jnp.float32)
        params.append((W, w_root, bias, scale, shift))
    return params


if __name__ == "__main__":
    key = jax.random.PRNGKey(0)
    k_x, k_ei, k_attr, k_params = jax.random.split(key, 4)

    N, E = 80, 600                                          # small synthetic mesh
    x = jax.random.normal(k_x, (N, 1), jnp.float32)         # curvature-only features
    edge_index = jax.random.randint(k_ei, (2, E), 0, N, dtype=jnp.int32)
    pseudo = jax.random.uniform(k_attr, (E, DIM), dtype=jnp.float32)  # edge_attr in [0,1]^3

    params = init_params(k_params)
    out = net_forward(x, edge_index, pseudo, params)
    out = jax.block_until_ready(out)

    assert out.shape == (N,)
    assert bool(jnp.all(jnp.isfinite(out)))
    print("KERNEL_OK")
</pallas_src>

<mosaic_0001>
module attributes {stable_mosaic.version = 11 : i64} {
  func.func @_fused_net_kernel(%arg0: i32, %arg1: i32, %arg2: memref<128x32xf32, #tpu.memory_space<vmem>>, %arg3: memref<256x128xbf16, #tpu.memory_space<vmem>>, %arg4: memref<128x256xbf16, #tpu.memory_space<vmem>>, %arg5: memref<128x1xf32, #tpu.memory_space<vmem>>, %arg6: memref<1x256x1024xbf16, #tpu.memory_space<vmem>>, %arg7: memref<1x32x32xf32, #tpu.memory_space<vmem>>, %arg8: memref<1x3x32xf32, #tpu.memory_space<vmem>>, %arg9: memref<32x1024xbf16, #tpu.memory_space<vmem>>, %arg10: memref<1024x32xbf16, #tpu.memory_space<vmem>>, %arg11: memref<128x32xf32, #tpu.memory_space<vmem>>, %arg12: memref<128x32xf32, #tpu.memory_space<vmem>>, %arg13: memref<128x32xf32, #tpu.memory_space<vmem>>) attributes {dimension_semantics = [#tpu.dimension_semantics<arbitrary>, #tpu.dimension_semantics<arbitrary>], iteration_bounds = array<i64: 12, 3>, scalar_prefetch = 0 : i64, scratch_operands = 2 : i64, tpu.core_type = #tpu.core_type<tc>, window_params = [{pipeline_mode = #tpu.pipeline_mode<synchronous>, transform_indices = @transform_0, window_bounds = array<i64: 128, 32>}, {transform_indices = @transform_1, window_bounds = array<i64: 256, 128>}, {transform_indices = @transform_2, window_bounds = array<i64: 128, 256>}, {pipeline_mode = #tpu.pipeline_mode<synchronous>, transform_indices = @transform_3, window_bounds = array<i64: 128, 1>}, {transform_indices = @transform_4, window_bounds = array<i64: 1, 256, 1024>}, {transform_indices = @transform_5, window_bounds = array<i64: 1, 32, 32>}, {transform_indices = @transform_6, window_bounds = array<i64: 1, 3, 32>}, {pipeline_mode = #tpu.pipeline_mode<synchronous>, transform_indices = @transform_7, window_bounds = array<i64: 32, 1024>}, {pipeline_mode = #tpu.pipeline_mode<synchronous>, transform_indices = @transform_8, window_bounds = array<i64: 1024, 32>}, {pipeline_mode = #tpu.pipeline_mode<synchronous>, transform_indices = @transform_9, window_bounds = array<i64: 128, 32>}]} {
    %c0_i32 = arith.constant 0 : i32
    %0 = arith.cmpi eq, %arg0, %c0_i32 : i32
    %c0_i32_0 = arith.constant 0 : i32
    %1 = arith.cmpi eq, %arg1, %c0_i32_0 : i32
    %2 = arith.andi %0, %1 : i1
    %3 = arith.extui %2 : i1 to i32
    %c0_i32_1 = arith.constant 0 : i32
    %4 = arith.cmpi ne, %3, %c0_i32_1 : i32
    scf.if %4 {
      %c0_24 = arith.constant 0 : index
      %c0_25 = arith.constant 0 : index
      %30 = vector.load %arg2[%c0_24, %c0_25] : memref<128x32xf32, #tpu.memory_space<vmem>>, vector<128x32xf32>
      %c0_26 = arith.constant 0 : index
      %c0_27 = arith.constant 0 : index
      %31 = vector.load %arg12[%c0_26, %c0_27] : memref<128x32xf32, #tpu.memory_space<vmem>>, vector<128x32xf32>
      tpu.vector_store %arg12[%c0_26, %c0_27], %30 {strides = array<i32>} : memref<128x32xf32, #tpu.memory_space<vmem>>, vector<128x32xf32>,
    } else {
    }
    %c0_i32_2 = arith.constant 0 : i32
    %5 = arith.cmpi eq, %arg1, %c0_i32_2 : i32
    %6 = arith.extui %5 : i1 to i32
    %c0_i32_3 = arith.constant 0 : i32
    %7 = arith.cmpi ne, %6, %c0_i32_3 : i32
    scf.if %7 {
      %cst_24 = arith.constant 0.000000e+00 : f32
      %30 = vector.broadcast %cst_24 : f32 to vector<128x32xf32>
      %c0_25 = arith.constant 0 : index
      %c0_26 = arith.constant 0 : index
      %31 = vector.load %arg13[%c0_25, %c0_26] : memref<128x32xf32, #tpu.memory_space<vmem>>, vector<128x32xf32>
      tpu.vector_store %arg13[%c0_25, %c0_26], %30 {strides = array<i32>} : memref<128x32xf32, #tpu.memory_space<vmem>>, vector<128x32xf32>,
    } else {
    }
    %c0 = arith.constant 0 : index
    %c0_4 = arith.constant 0 : index
    %8 = vector.load %arg12[%c0, %c0_4] : memref<128x32xf32, #tpu.memory_space<vmem>>, vector<128x32xf32>
    %c0_5 = arith.constant 0 : index
    %c0_6 = arith.constant 0 : index
    %9 = vector.load %arg3[%c0_5, %c0_6] : memref<256x128xbf16, #tpu.memory_space<vmem>>, vector<256x128xbf16>
    %10 = arith.truncf %8 : vector<128x32xf32> to vector<128x32xbf16>
    %cst = arith.constant dense<0.000000e+00> : vector<256x32xf32>
    %11 = tpu.matmul %9, %10, %cst {dimension_numbers = #tpu.dot_dimension_numbers<[1], [0], [0], [1], [0, 0, 1, 1], [], []>} : vector<256x128xbf16>, vector<128x32xbf16>, vector<256x32xf32> -> vector<256x32xf32>
    %12 = arith.truncf %11 : vector<256x32xf32> to vector<256x32xbf16>
    %c0_7 = arith.constant 0 : index
    %c0_8 = arith.constant 0 : index
    %13 = vector.load %arg9[%c0_7, %c0_8] : memref<32x1024xbf16, #tpu.memory_space<vmem>>, vector<32x1024xbf16>
    %cst_9 = arith.constant dense<0.000000e+00> : vector<256x1024xf32>
    %14 = tpu.matmul %12, %13, %cst_9 {dimension_numbers = #tpu.dot_dimension_numbers<[1], [0], [0], [1], [0, 0, 1, 1], [], []>} : vector<256x32xbf16>, vector<32x1024xbf16>, vector<256x1024xf32> -> vector<256x1024xf32>
    %15 = arith.truncf %14 : vector<256x1024xf32> to vector<256x1024xbf16>
    %c0_10 = arith.constant 0 : index
    %c0_11 = arith.constant 0 : index
    %c0_12 = arith.constant 0 : index
    %16 = vector.load %arg6[%c0_10, %c0_11, %c0_12] : memref<1x256x1024xbf16, #tpu.memory_space<vmem>>, vector<1x256x1024xbf16>
    %17 = vector.shape_cast %16 : vector<1x256x1024xbf16> to vector<256x1024xbf16>
    %18 = arith.mulf %15, %17 : vector<256x1024xbf16>
    %c0_13 = arith.constant 0 : index
    %c0_14 = arith.constant 0 : index
    %19 = vector.load %arg10[%c0_13, %c0_14] : memref<1024x32xbf16, #tpu.memory_space<vmem>>, vector<1024x32xbf16>
    %cst_15 = arith.constant dense<0.000000e+00> : vector<256x32xf32>
    %20 = tpu.matmul %18, %19, %cst_15 {dimension_numbers = #tpu.dot_dimension_numbers<[1], [0], [0], [1], [0, 0, 1, 1], [], []>} : vector<256x1024xbf16>, vector<1024x32xbf16>, vector<256x32xf32> -> vector<256x32xf32>
    %c0_16 = arith.constant 0 : index
    %c0_17 = arith.constant 0 : index
    %21 = vector.load %arg13[%c0_16, %c0_17] : memref<128x32xf32, #tpu.memory_space<vmem>>, vector<128x32xf32>
    %c0_18 = arith.constant 0 : index
    %c0_19 = arith.constant 0 : index
    %22 = vector.load %arg4[%c0_18, %c0_19] : memref<128x256xbf16, #tpu.memory_space<vmem>>, vector<128x256xbf16>
    %23 = arith.truncf %20 : vector<256x32xf32> to vector<256x32xbf16>
    %cst_20 = arith.constant dense<0.000000e+00> : vector<128x32xf32>
    %24 = tpu.matmul %22, %23, %cst_20 {dimension_numbers = #tpu.dot_dimension_numbers<[1], [0], [0], [1], [0, 0, 1, 1], [], []>} : vector<128x256xbf16>, vector<256x32xbf16>, vector<128x32xf32> -> vector<128x32xf32>
    %25 = arith.addf %21, %24 : vector<128x32xf32>
    %c0_21 = arith.constant 0 : index
    %c0_22 = arith.constant 0 : index
    %26 = vector.load %arg13[%c0_21, %c0_22] : memref<128x32xf32, #tpu.memory_space<vmem>>, vector<128x32xf32>
    tpu.vector_store %arg13[%c0_21, %c0_22], %25 {strides = array<i32>} : memref<128x32xf32, #tpu.memory_space<vmem>>, vector<128x32xf32>,
    %c2_i32 = arith.constant 2 : i32
    %27 = arith.cmpi eq, %arg1, %c2_i32 : i32
    %28 = arith.extui %27 : i1 to i32
    %c0_i32_23 = arith.constant 0 : i32
    %29 = arith.cmpi ne, %28, %c0_i32_23 : i32
    scf.if %29 {
      %c0_24 = arith.constant 0 : index
      %c0_25 = arith.constant 0 : index
      %c0_26 = arith.constant 0 : index
      %30 = vector.load %arg8[%c0_24, %c0_25, %c0_26] : memref<1x3x32xf32, #tpu.memory_space<vmem>>, vector<1x3x32xf32>
      %31 = vector.shape_cast %30 : vector<1x3x32xf32> to vector<3x32xf32>
      %32 = vector.extract_strided_slice %31 {offsets = [0, 0], sizes = [1, 32], strides = [1, 1]} : vector<3x32xf32> to vector<1x32xf32>
      %33 = vector.extract_strided_slice %31 {offsets = [1, 0], sizes = [1, 32], strides = [1, 1]} : vector<3x32xf32> to vector<1x32xf32>
      %34 = vector.extract_strided_slice %31 {offsets = [2, 0], sizes = [1, 32], strides = [1, 1]} : vector<3x32xf32> to vector<1x32xf32>
      %c0_27 = arith.constant 0 : index
      %c0_28 = arith.constant 0 : index
      %35 = vector.load %arg13[%c0_27, %c0_28] : memref<128x32xf32, #tpu.memory_space<vmem>>, vector<128x32xf32>
      %c0_29 = arith.constant 0 : index
      %c0_30 = arith.constant 0 : index
      %36 = vector.load %arg5[%c0_29, %c0_30] : memref<128x1xf32, #tpu.memory_space<vmem>>, vector<128x1xf32>
      %37 = vector.broadcast %36 : vector<128x1xf32> to vector<128x32xf32>
      %38 = arith.mulf %35, %37 : vector<128x32xf32>
      %c0_31 = arith.constant 0 : index
      %c0_32 = arith.constant 0 : index
      %c0_33 = arith.constant 0 : index
      %39 = vector.load %arg7[%c0_31, %c0_32, %c0_33] : memref<1x32x32xf32, #tpu.memory_space<vmem>>, vector<1x32x32xf32>
      %40 = vector.shape_cast %39 : vector<1x32x32xf32> to vector<32x32xf32>
      %cst_34 = arith.constant dense<0.000000e+00> : vector<128x32xf32>
      %41 = tpu.matmul %8, %40, %cst_34 {dimension_numbers = #tpu.dot_dimension_numbers<[1], [0], [0], [1], [0, 0, 1, 1], [], []>} : vector<128x32xf32>, vector<32x32xf32>, vector<128x32xf32> -> vector<128x32xf32>
      %42 = arith.addf %38, %41 : vector<128x32xf32>
      %43 = vector.broadcast %32 : vector<1x32xf32> to vector<128x32xf32>
      %44 = arith.addf %42, %43 : vector<128x32xf32>
      %cst_35 = arith.constant 0.000000e+00 : f32
      %45 = vector.broadcast %cst_35 : f32 to vector<128x32xf32>
      %46 = arith.cmpf ogt, %44, %45 : vector<128x32xf32>
      %cst_36 = arith.constant 0.000000e+00 : f32
      %47 = vector.broadcast %cst_36 : f32 to vector<128x32xf32>
      %48 = arith.minimumf %44, %47 : vector<128x32xf32>
      %49 = math.exp %48 : vector<128x32xf32>
      %cst_37 = arith.constant 1.000000e+00 : f32
      %50 = vector.broadcast %cst_37 : f32 to vector<128x32xf32>
      %51 = arith.subf %49, %50 : vector<128x32xf32>
      %52 = arith.select %46, %44, %51 : vector<128x32xi1>, vector<128x32xf32>
      %53 = vector.broadcast %33 : vector<1x32xf32> to vector<128x32xf32>
      %54 = arith.mulf %52, %53 : vector<128x32xf32>
      %55 = vector.broadcast %34 : vector<1x32xf32> to vector<128x32xf32>
      %56 = arith.addf %54, %55 : vector<128x32xf32>
      %c0_38 = arith.constant 0 : index
      %c0_39 = arith.constant 0 : index
      %57 = vector.load %arg12[%c0_38, %c0_39] : memref<128x32xf32, #tpu.memory_space<vmem>>, vector<128x32xf32>
      tpu.vector_store %arg12[%c0_38, %c0_39], %56 {strides = array<i32>} : memref<128x32xf32, #tpu.memory_space<vmem>>, vector<128x32xf32>,
      %c0_40 = arith.constant 0 : index
      %c0_41 = arith.constant 0 : index
      %58 = vector.load %arg11[%c0_40, %c0_41] : memref<128x32xf32, #tpu.memory_space<vmem>>, vector<128x32xf32>
      tpu.vector_store %arg11[%c0_40, %c0_41], %56 {strides = array<i32>} : memref<128x32xf32, #tpu.memory_space<vmem>>, vector<128x32xf32>,
    } else {
    }
    return
  }
  func.func @transform_0(%arg0: i32, %arg1: i32) -> (i32, i32) {
    %c0_i32 = arith.constant 0 : i32
    %c0_i32_0 = arith.constant 0 : i32
    %c0_i32_1 = arith.constant 0 : i32
    return %c0_i32, %c0_i32_0 : i32, i32
  }
  func.func @transform_1(%arg0: i32, %arg1: i32) -> (i32, i32) {
    %c0_i32 = arith.constant 0 : i32
    %c0_i32_0 = arith.constant 0 : i32
    return %arg1, %c0_i32 : i32, i32
  }
  func.func @transform_2(%arg0: i32, %arg1: i32) -> (i32, i32) {
    %c0_i32 = arith.constant 0 : i32
    %c0_i32_0 = arith.constant 0 : i32
    return %c0_i32, %arg1 : i32, i32
  }
  func.func @transform_3(%arg0: i32, %arg1: i32) -> (i32, i32) {
    %c0_i32 = arith.constant 0 : i32
    %c0_i32_0 = arith.constant 0 : i32
    %c0_i32_1 = arith.constant 0 : i32
    return %c0_i32, %c0_i32_0 : i32, i32
  }
  func.func @transform_4(%arg0: i32, %arg1: i32) -> (i32, i32, i32) {
    %c0_i32 = arith.constant 0 : i32
    %c0_i32_0 = arith.constant 0 : i32
    return %arg0, %arg1, %c0_i32 : i32, i32, i32
  }
  func.func @transform_5(%arg0: i32, %arg1: i32) -> (i32, i32, i32) {
    %c0_i32 = arith.constant 0 : i32
    %c0_i32_0 = arith.constant 0 : i32
    %c0_i32_1 = arith.constant 0 : i32
    return %arg0, %c0_i32, %c0_i32_0 : i32, i32, i32
  }
  func.func @transform_6(%arg0: i32, %arg1: i32) -> (i32, i32, i32) {
    %c0_i32 = arith.constant 0 : i32
    %c0_i32_0 = arith.constant 0 : i32
    %c0_i32_1 = arith.constant 0 : i32
    return %arg0, %c0_i32, %c0_i32_0 : i32, i32, i32
  }
  func.func @transform_7(%arg0: i32, %arg1: i32) -> (i32, i32) {
    %c0_i32 = arith.constant 0 : i32
    %c0_i32_0 = arith.constant 0 : i32
    %c0_i32_1 = arith.constant 0 : i32
    return %c0_i32, %c0_i32_0 : i32, i32
  }
  func.func @transform_8(%arg0: i32, %arg1: i32) -> (i32, i32) {
    %c0_i32 = arith.constant 0 : i32
    %c0_i32_0 = arith.constant 0 : i32
    %c0_i32_1 = arith.constant 0 : i32
    return %c0_i32, %c0_i32_0 : i32, i32
  }
  func.func @transform_9(%arg0: i32, %arg1: i32) -> (i32, i32) {
    %c0_i32 = arith.constant 0 : i32
    %c0_i32_0 = arith.constant 0 : i32
    %c0_i32_1 = arith.constant 0 : i32
    return %c0_i32, %c0_i32_0 : i32, i32
  }
}

</mosaic_0001>

<llo_original>
// kernel: spline_net_forward.1
$region0: #{spline_net_forward.1}
  #allocation0 [shape = 'u32[]', space=smem, size = 0x4, offset = 0x4, fixed_abs, tag = 'smem constant byte address 0x4 - core index']
  #allocation1 [shape = 'u32[144,128]{1,0:T(1,128)}', space=vmem, size = 0x12000, scoped, tag = 'internal scratch']
  #allocation2 [shape = 'f32[128,32]{1,0:T(8,128)}', space=vmem, size = 0x10000, scoped, tag = 'scratch operand']
  #allocation3 [shape = 'f32[128,32]{1,0:T(8,128)}', space=vmem, size = 0x10000, scoped, tag = 'scratch operand']
  %s0 = inlined_call_operand.vmem [shape: f32[128,32], index: 0, kind: input, shape index: {}]
  %s1 = inlined_call_operand.hbm [shape: bf16[768,128], index: 1, kind: input, shape index: {}]
  %s2 = inlined_call_operand.hbm [shape: bf16[128,768], index: 2, kind: input, shape index: {}]
  %s3 = inlined_call_operand.vmem [shape: f32[128,1], index: 3, kind: input, shape index: {}]
  %s4 = inlined_call_operand.hbm [shape: bf16[12,768,1024], index: 4, kind: input, shape index: {}]
  %s5 = inlined_call_operand.hbm [shape: f32[12,32,32], index: 5, kind: input, shape index: {}]
  %s6 = inlined_call_operand.hbm [shape: f32[12,3,32], index: 6, kind: input, shape index: {}]
  %s7 = inlined_call_operand.hbm [shape: bf16[32,1024], index: 7, kind: input, shape index: {}]
  %s8 = inlined_call_operand.vmem [shape: bf16[1024,32], index: 8, kind: input, shape index: {}]
  %s9 = inlined_call_operand.vmem [shape: f32[128,32], index: 9, kind: output, shape index: {}]
  %s10 = sld [smem:[#allocation0]]
  $region105: #{spline_net_forward.1} parent=0
    _
  %s12 = ssub.s32 1, %s10
  %s13 = scalar_select 0, %s12, %s10
  $region1: #{spline_net_forward.1} parent=0
    #allocation4 [shape = 'u8[131072]{0}', space=vmem, size = 0x20000, scoped, tag = 'input window, operand 1']
    #allocation5 [shape = 's32[2]{0}', space=sflag, size = 0x8, scoped, tag = 'scoped memory for spline_net_forward.1']
    #allocation6 [shape = 'u8[131072]{0}', space=vmem, size = 0x20000, scoped, tag = 'input window, operand 2']
    #allocation7 [shape = 's32[2]{0}', space=sflag, size = 0x8, scoped, tag = 'scoped memory for spline_net_forward.1']
    #allocation8 [shape = 'u8[1048576]{0}', space=vmem, size = 0x100000, scoped, tag = 'input window, operand 4']
    #allocation9 [shape = 'u8[32768]{0}', space=vmem, size = 0x8000, scoped, tag = 'input window, operand 5']
    #allocation10 [shape = 's32[2]{0}', space=sflag, size = 0x8, scoped, tag = 'scoped memory for spline_net_forward.1']
    #allocation11 [shape = 'u8[4096]{0}', space=vmem, size = 0x1000, scoped, tag = 'input window, operand 6']
    #allocation12 [shape = 'u8[65536]{0}', space=vmem, size = 0x10000, scoped, tag = 'input window, operand 7, single buffered']
    #allocation13 [shape = 's32[1]{0}', space=sflag, size = 0x4, scoped, tag = 'scoped memory for spline_net_forward.1']
    %14 = vsyncpa [#allocation5], 0
    %s15 = scalar_lea.sflag [#allocation5], 1
    %16 = vsyncpa %s15, 0
    %17 = vsyncpa [#allocation7], 0
    %s18 = scalar_lea.sflag [#allocation7], 1
    %19 = vsyncpa %s18, 0
    %20 = vsyncpa [#allocation10], 0
    %s21 = scalar_lea.sflag [#allocation10], 1
    %22 = vsyncpa %s21, 0
    %23 = vsyncpa [#allocation13], 0
    loop: start=0, step=1, limit=38
    $region2: #{spline_net_forward.1} parent=1 // loop_pre_header
      _
    $region3: #{spline_net_forward.1} parent=1 // loop_header
      %s25 = sphi 0, %s29
      %p26 = scmp.ge.s32.totalorder %s25, 38
      %s32 = sphi 0, %s44
      %s33 = sphi 0, %s40
      %s34 = sphi 0, %s32
      %s35 = sphi 0, %s33
      %s36 = sphi 0, %s34
      %s37 = sphi 0, %s35
      %s45 = sphi 0, %s45
      %s47 = sphi 0, %s45
      %s48 = sphi 0, %s47
      %s62 = sphi 0, %s48
      %s68 = sphi 0, %s70
      %s71 = sphi 0, %s68
      %s72 = sphi 0, %s71
      %s88 = sphi 0, %s72
      %s94 = sphi 0, %s96
      %s97 = sphi 0, %s94
      %s98 = sphi 0, %s97
      %s114 = sphi 0, %s98
      %s118 = sphi 0, %s118
      %s120 = sphi 0, %s118
      %s121 = sphi 0, %s120
      %s135 = sphi 0, %s121
      %s143 = sphi 0, %s145
      %s146 = sphi 0, %s143
      %s147 = sphi 0, %s146
      %s163 = sphi 0, %s147
      %s169 = sphi 0, %s171
      %s172 = sphi 0, %s169
      %s173 = sphi 0, %s172
      %s189 = sphi 0, %s173
      %s195 = sphi 0, %s197
      %s198 = sphi 0, %s195
      %s199 = sphi 0, %s198
      %s215 = sphi 0, %s199
      %s219 = sphi 0, %s219
      %s221 = sphi 0, %s219
      %s222 = sphi 0, %s221
      %s236 = sphi 0, %s222
      %s240 = sphi 0, %s240
      %s242 = sphi 0, %s240
      %s243 = sphi 0, %s242
      %s257 = sphi 0, %s243
      %s261 = sphi 0, %s261
      %s263 = sphi 0, %s261
      %s264 = sphi 0, %s263
      %s278 = sphi 0, %s264
    $region4: #{spline_net_forward.1} parent=1 // loop_header_branch
      %28 = sbr.rel (%p26) target = $region8
    $region5: #{spline_net_forward.1} parent=1 // loop_body
      %s30 = ssub.s32 %s25, 1
      %s31 = ssub.s32 %s25, 2
      %s38 = sadd.s32 1, %s33
      %p39 = scmp.ge.s32.totalorder %s38, 3
      %s40 = scalar_select %p39, 0, %s38
      %s41 = sadd.s32 1, %s32
      %s42 = scalar_select %p39, %s41, %s32
      %p43 = scmp.ge.s32.totalorder %s42, 12
      %s44 = scalar_select %p43, 0, %s42
      %s46 = sadd.s32 %s45, 1
      %p49 = scmp.eq.s32.totalorder %s25, 35
      %p50 = scmp.ne.s32.totalorder %s45, %s47
      %p51 = scmp.eq.s32.totalorder %s25, 0
      %p52 = por %p50, %p51
      %p53 = scmp.ne.s32.totalorder %s45, %s47
      %p54 = scmp.eq.s32.totalorder %s30, 35
      %p55 = por %p53, %p54
      %p56 = scmp.ne.s32.totalorder %s47, %s48
      %p57 = scmp.eq.s32.totalorder %s30, 0
      %p58 = por %p56, %p57
      %p59 = scmp.ne.s32.totalorder %s47, %s48
      %p60 = scmp.eq.s32.totalorder %s31, 35
      %p61 = por %p59, %p60
      %p63 = scmp.ne.s32.totalorder %s48, %s62
      %p64 = scmp.eq.s32.totalorder %s31, 0
      %p65 = por %p63, %p64
      %s66 = ssub.s32 %s33, %s40
      %p67 = scmp.eq.s32.totalorder %s66, 0
      %s69 = sadd.s32 %s68, 1
      %s70 = scalar_select %p67, %s68, %s69
      %p73 = pneg %p67
      %p74 = scmp.eq.s32.totalorder %s25, 35
      %p75 = por %p73, %p74
      %p76 = scmp.ne.s32.totalorder %s68, %s71
      %p77 = scmp.eq.s32.totalorder %s25, 0
      %p78 = por %p76, %p77
      %p79 = scmp.ne.s32.totalorder %s68, %s71
      %p80 = scmp.eq.s32.totalorder %s30, 35
      %p81 = por %p79, %p80
      %p82 = scmp.ne.s32.totalorder %s71, %s72
      %p83 = scmp.eq.s32.totalorder %s30, 0
      %p84 = por %p82, %p83
      %p85 = scmp.ne.s32.totalorder %s71, %s72
      %p86 = scmp.eq.s32.totalorder %s31, 35
      %p87 = por %p85, %p86
      %p89 = scmp.ne.s32.totalorder %s72, %s88
      %p90 = scmp.eq.s32.totalorder %s31, 0
      %p91 = por %p89, %p90
      %s92 = ssub.s32 %s33, %s40
      %p93 = scmp.eq.s32.totalorder %s92, 0
      %s95 = sadd.s32 %s94, 1
      %s96 = scalar_select %p93, %s94, %s95
      %p99 = pneg %p93
      %p100 = scmp.eq.s32.totalorder %s25, 35
      %p101 = por %p99, %p100
      %p102 = scmp.ne.s32.totalorder %s94, %s97
      %p103 = scmp.eq.s32.totalorder %s25, 0
      %p104 = por %p102, %p103
      %p105 = scmp.ne.s32.totalorder %s94, %s97
      %p106 = scmp.eq.s32.totalorder %s30, 35
      %p107 = por %p105, %p106
      %p108 = scmp.ne.s32.totalorder %s97, %s98
      %p109 = scmp.eq.s32.totalorder %s30, 0
      %p110 = por %p108, %p109
      %p111 = scmp.ne.s32.totalorder %s97, %s98
      %p112 = scmp.eq.s32.totalorder %s31, 35
      %p113 = por %p111, %p112
      %p115 = scmp.ne.s32.totalorder %s98, %s114
      %p116 = scmp.eq.s32.totalorder %s31, 0
      %p117 = por %p115, %p116
      %s119 = sadd.s32 %s118, 1
      %p122 = scmp.eq.s32.totalorder %s25, 35
      %p123 = scmp.ne.s32.totalorder %s118, %s120
      %p124 = scmp.eq.s32.totalorder %s25, 0
      %p125 = por %p123, %p124
      %p126 = scmp.ne.s32.totalorder %s118, %s120
      %p127 = scmp.eq.s32.totalorder %s30, 35
      %p128 = por %p126, %p127
      %p129 = scmp.ne.s32.totalorder %s120, %s121
      %p130 = scmp.eq.s32.totalorder %s30, 0
      %p131 = por %p129, %p130
      %p132 = scmp.ne.s32.totalorder %s120, %s121
      %p133 = scmp.eq.s32.totalorder %s31, 35
      %p134 = por %p132, %p133
      %p136 = scmp.ne.s32.totalorder %s121, %s135
      %p137 = scmp.eq.s32.totalorder %s31, 0
      %p138 = por %p136, %p137
      %s139 = ssub.s32 %s32, %s44
      %s140 = ssub.s32 %s33, %s40
      %s141 = sor.u32 %s139, %s140
      %p142 = scmp.eq.s32.totalorder %s141, 0
      %s144 = sadd.s32 %s143, 1
      %s145 = scalar_select %p142, %s143, %s144
      %p148 = pneg %p142
      %p149 = scmp.eq.s32.totalorder %s25, 35
      %p150 = por %p148, %p149
      %p151 = scmp.ne.s32.totalorder %s143, %s146
      %p152 = scmp.eq.s32.totalorder %s25, 0
      %p153 = por %p151, %p152
      %p154 = scmp.ne.s32.totalorder %s143, %s146
      %p155 = scmp.eq.s32.totalorder %s30, 35
      %p156 = por %p154, %p155
      %p157 = scmp.ne.s32.totalorder %s146, %s147
      %p158 = scmp.eq.s32.totalorder %s30, 0
      %p159 = por %p157, %p158
      %p160 = scmp.ne.s32.totalorder %s146, %s147
      %p161 = scmp.eq.s32.totalorder %s31, 35
      %p162 = por %p160, %p161
      %p164 = scmp.ne.s32.totalorder %s147, %s163
      %p165 = scmp.eq.s32.totalorder %s31, 0
      %p166 = por %p164, %p165
      %s167 = ssub.s32 %s32, %s44
      %p168 = scmp.eq.s32.totalorder %s167, 0
      %s170 = sadd.s32 %s169, 1
      %s171 = scalar_select %p168, %s169, %s170
      %p174 = pneg %p168
      %p175 = scmp.eq.s32.totalorder %s25, 35
      %p176 = por %p174, %p175
      %p177 = scmp.ne.s32.totalorder %s169, %s172
      %p178 = scmp.eq.s32.totalorder %s25, 0
      %p179 = por %p177, %p178
      %p180 = scmp.ne.s32.totalorder %s169, %s172
      %p181 = scmp.eq.s32.totalorder %s30, 35
      %p182 = por %p180, %p181
      %p183 = scmp.ne.s32.totalorder %s172, %s173
      %p184 = scmp.eq.s32.totalorder %s30, 0
      %p185 = por %p183, %p184
      %p186 = scmp.ne.s32.totalorder %s172, %s173
      %p187 = scmp.eq.s32.totalorder %s31, 35
      %p188 = por %p186, %p187
      %p190 = scmp.ne.s32.totalorder %s173, %s189
      %p191 = scmp.eq.s32.totalorder %s31, 0
      %p192 = por %p190, %p191
      %s193 = ssub.s32 %s32, %s44
      %p194 = scmp.eq.s32.totalorder %s193, 0
      %s196 = sadd.s32 %s195, 1
      %s197 = scalar_select %p194, %s195, %s196
      %p200 = pneg %p194
      %p201 = scmp.eq.s32.totalorder %s25, 35
      %p202 = por %p200, %p201
      %p203 = scmp.ne.s32.totalorder %s195, %s198
      %p204 = scmp.eq.s32.totalorder %s25, 0
      %p205 = por %p203, %p204
      %p206 = scmp.ne.s32.totalorder %s195, %s198
      %p207 = scmp.eq.s32.totalorder %s30, 35
      %p208 = por %p206, %p207
      %p209 = scmp.ne.s32.totalorder %s198, %s199
      %p210 = scmp.eq.s32.totalorder %s30, 0
      %p211 = por %p209, %p210
      %p212 = scmp.ne.s32.totalorder %s198, %s199
      %p213 = scmp.eq.s32.totalorder %s31, 35
      %p214 = por %p212, %p213
      %p216 = scmp.ne.s32.totalorder %s199, %s215
      %p217 = scmp.eq.s32.totalorder %s31, 0
      %p218 = por %p216, %p217
      %s220 = sadd.s32 %s219, 1
      %p223 = scmp.eq.s32.totalorder %s25, 35
      %p224 = scmp.ne.s32.totalorder %s219, %s221
      %p225 = scmp.eq.s32.totalorder %s25, 0
      %p226 = por %p224, %p225
      %p227 = scmp.ne.s32.totalorder %s219, %s221
      %p228 = scmp.eq.s32.totalorder %s30, 35
      %p229 = por %p227, %p228
      %p230 = scmp.ne.s32.totalorder %s221, %s222
      %p231 = scmp.eq.s32.totalorder %s30, 0
      %p232 = por %p230, %p231
      %p233 = scmp.ne.s32.totalorder %s221, %s222
      %p234 = scmp.eq.s32.totalorder %s31, 35
      %p235 = por %p233, %p234
      %p237 = scmp.ne.s32.totalorder %s222, %s236
      %p238 = scmp.eq.s32.totalorder %s31, 0
      %p239 = por %p237, %p238
      %s241 = sadd.s32 %s240, 1
      %p244 = scmp.eq.s32.totalorder %s25, 35
      %p245 = scmp.ne.s32.totalorder %s240, %s242
      %p246 = scmp.eq.s32.totalorder %s25, 0
      %p247 = por %p245, %p246
      %p248 = scmp.ne.s32.totalorder %s240, %s242
      %p249 = scmp.eq.s32.totalorder %s30, 35
      %p250 = por %p248, %p249
      %p251 = scmp.ne.s32.totalorder %s242, %s243
      %p252 = scmp.eq.s32.totalorder %s30, 0
      %p253 = por %p251, %p252
      %p254 = scmp.ne.s32.totalorder %s242, %s243
      %p255 = scmp.eq.s32.totalorder %s31, 35
      %p256 = por %p254, %p255
      %p258 = scmp.ne.s32.totalorder %s243, %s257
      %p259 = scmp.eq.s32.totalorder %s31, 0
      %p260 = por %p258, %p259
      %s262 = sadd.s32 %s261, 1
      %p265 = scmp.eq.s32.totalorder %s25, 35
      %p266 = scmp.ne.s32.totalorder %s261, %s263
      %p267 = scmp.eq.s32.totalorder %s25, 0
      %p268 = por %p266, %p267
      %p269 = scmp.ne.s32.totalorder %s261, %s263
      %p270 = scmp.eq.s32.totalorder %s30, 35
      %p271 = por %p269, %p270
      %p272 = scmp.ne.s32.totalorder %s263, %s264
      %p273 = scmp.eq.s32.totalorder %s30, 0
      %p274 = por %p272, %p273
      %p275 = scmp.ne.s32.totalorder %s263, %s264
      %p276 = scmp.eq.s32.totalorder %s31, 35
      %p277 = por %p275, %p276
      %p279 = scmp.ne.s32.totalorder %s264, %s278
      %p280 = scmp.eq.s32.totalorder %s31, 0
      %p281 = por %p279, %p280
      %p282 = scmp.le.s32.totalorder 1, %s25
      %p283 = scmp.lt.s32.totalorder %s25, 37
      %p284 = pnand %p282, %p283
      %p285 = pneg %p284
      // Predicated region
      $region9: #{spline_net_forward.1} parent=5 // pred_check
        _
      $region10: #{spline_net_forward.1} parent=5 // pred_check_branch
        %287 = sbr.rel (%p284) target = $region12
      $region11: #{spline_net_forward.1} parent=5 // pred_region
        %s288 = ssub.s32 %s25, 1
        // Predicated region
        $region13: #{spline_net_forward.1} parent=11 // pred_check
          %p289 = pneg %p58
        $region14: #{spline_net_forward.1} parent=11 // pred_check_branch
          %291 = sbr.rel (%p289) target = $region16
        $region15: #{spline_net_forward.1} parent=11 // pred_region
          _
        $region16: #{spline_net_forward.1} parent=11 // pred_fallthru
          _
        // Predicated region
        $region17: #{spline_net_forward.1} parent=11 // pred_check
          %p292 = pneg %p131
        $region18: #{spline_net_forward.1} parent=11 // pred_check_branch
          %294 = sbr.rel (%p292) target = $region20
        $region19: #{spline_net_forward.1} parent=11 // pred_region
          _
        $region20: #{spline_net_forward.1} parent=11 // pred_fallthru
          _
        // Predicated region
        $region21: #{spline_net_forward.1} parent=11 // pred_check
          %p295 = pneg %p232
        $region22: #{spline_net_forward.1} parent=11 // pred_check_branch
          %297 = sbr.rel (%p295) target = $region24
        $region23: #{spline_net_forward.1} parent=11 // pred_region
          %s299 = ssub.s32 2048, 2048
          %300 = vsyncadd [#allocation13], %s299
          %s301 = sshll.u32 [#allocation12], 4
          %s302 = int_to_ptr.vmem [resolvable:$true] %s301
          %307 = dma.hbm_to_vmem [thread:$0]  %s7, 2048, %s302, [#allocation13], 512, 512, 32
        $region24: #{spline_net_forward.1} parent=11 // pred_fallthru
          _
        // Predicated region
        $region25: #{spline_net_forward.1} parent=11 // pred_check
          %p308 = pneg %p253
        $region26: #{spline_net_forward.1} parent=11 // pred_check_branch
          %310 = sbr.rel (%p308) target = $region28
        $region27: #{spline_net_forward.1} parent=11 // pred_region
          _
        $region28: #{spline_net_forward.1} parent=11 // pred_fallthru
          _
      $region12: #{spline_net_forward.1} parent=5 // pred_fallthru
        _
      %p311 = scmp.lt.s32.totalorder %s25, 36
      // Predicated region
      $region29: #{spline_net_forward.1} parent=5 // pred_check
        %p312 = pneg %p311
      $region30: #{spline_net_forward.1} parent=5 // pred_check_branch
        %314 = sbr.rel (%p312) target = $region32
      $region31: #{spline_net_forward.1} parent=5 // pred_region
        // Predicated region
        $region33: #{spline_net_forward.1} parent=31 // pred_check
          %p315 = pneg %p78
        $region34: #{spline_net_forward.1} parent=31 // pred_check_branch
          %317 = sbr.rel (%p315) target = $region36
        $region35: #{spline_net_forward.1} parent=31 // pred_region
          %s318 = sand.u32 %s68, 1
          %s319 = scalar_lea.sflag [#allocation5], %s318
          %s320 = sand.u32 %s68, 1
          %s321 = smul.addr %s320, 128
          %s322 = scalar_lea.vmem [#allocation4], %s321
          %s323 = smul.u32 32, %s33
          %s325 = ssub.s32 2048, 2048
          %326 = vsyncadd %s319, %s325
          %s327 = smul.addr %s323, 64
          %s328 = scalar_lea.hbm %s1, %s327
          %s329 = sshll.u32 %s322, 4
          %s330 = int_to_ptr.vmem [resolvable:$true] %s329
          %335 = dma.hbm_to_vmem [thread:$0]  %s328, 2048, %s330, %s319, 64, 64, 4
        $region36: #{spline_net_forward.1} parent=31 // pred_fallthru
          _
        // Predicated region
        $region37: #{spline_net_forward.1} parent=31 // pred_check
          %p336 = pneg %p104
        $region38: #{spline_net_forward.1} parent=31 // pred_check_branch
          %338 = sbr.rel (%p336) target = $region40
        $region39: #{spline_net_forward.1} parent=31 // pred_region
          %s339 = sand.u32 %s25, 1
          %s340 = scalar_lea.sflag [#allocation7], %s339
          %s341 = sand.u32 %s94, 1
          %s342 = smul.addr %s341, 128
          %s343 = scalar_lea.vmem [#allocation6], %s342
          %s344 = smul.u32 2, %s33
          %s346 = ssub.s32 2048, 2048
          %347 = vsyncadd %s340, %s346
          %s348 = smul.addr %s344, 64
          %s349 = scalar_lea.hbm %s2, %s348
          %s350 = sshll.u32 %s343, 4
          %s351 = int_to_ptr.vmem [resolvable:$true] %s350
          %356 = dma.hbm_to_vmem [thread:$0]  %s349, 2048, %s351, %s340, 384, 128, 8
        $region40: #{spline_net_forward.1} parent=31 // pred_fallthru
          _
        // Predicated region
        $region41: #{spline_net_forward.1} parent=31 // pred_check
          %p357 = pneg %p153
        $region42: #{spline_net_forward.1} parent=31 // pred_check_branch
          %359 = sbr.rel (%p357) target = $region44
        $region43: #{spline_net_forward.1} parent=31 // pred_region
          %s360 = sand.u32 %s25, 1
          %s361 = scalar_lea.sflag [#allocation7], %s360
          %s362 = sand.u32 %s143, 1
          %s363 = smul.addr %s362, 1024
          %s364 = scalar_lea.vmem [#allocation8], %s363
          %s365 = smul.u32 32, %s33
          %s367 = ssub.s32 16384, 16384
          %368 = vsyncadd %s361, %s367
          %s369 = smul.addr %s365, 8
          %s370 = smul.addr %s32, 768
          %s371 = sadd.s32 %s369, %s370
          %s372 = smul.addr %s371, 64
          %s373 = scalar_lea.hbm %s4, %s372
          %s374 = sshll.u32 %s364, 4
          %s375 = int_to_ptr.vmem [resolvable:$true] %s374
          %380 = dma.hbm_to_vmem [thread:$0]  %s373, 16384, %s375, %s361, 512, 512, 32
        $region44: #{spline_net_forward.1} parent=31 // pred_fallthru
          _
        // Predicated region
        $region45: #{spline_net_forward.1} parent=31 // pred_check
          %p381 = pneg %p179
        $region46: #{spline_net_forward.1} parent=31 // pred_check_branch
          %383 = sbr.rel (%p381) target = $region48
        $region47: #{spline_net_forward.1} parent=31 // pred_region
          %s384 = sand.u32 %s25, 1
          %s385 = scalar_lea.sflag [#allocation10], %s384
          %s386 = sand.u32 %s169, 1
          %s387 = smul.addr %s386, 32
          %s388 = scalar_lea.vmem [#allocation9], %s387
          %s390 = ssub.s32 512, 512
          %391 = vsyncadd %s385, %s390
          %s392 = smul.addr %s32, 4
          %s393 = smul.addr %s392, 128
          %s394 = scalar_lea.hbm %s5, %s393
          %s395 = sshll.u32 %s388, 4
          %s396 = int_to_ptr.vmem [resolvable:$true] %s395
          %401 = dma.hbm_to_vmem [thread:$0]  %s394, 512, %s396, %s385, 128, 128, 8
        $region48: #{spline_net_forward.1} parent=31 // pred_fallthru
          _
        // Predicated region
        $region49: #{spline_net_forward.1} parent=31 // pred_check
          %p402 = pneg %p205
        $region50: #{spline_net_forward.1} parent=31 // pred_check_branch
          %404 = sbr.rel (%p402) target = $region52
        $region51: #{spline_net_forward.1} parent=31 // pred_region
          %s405 = sand.u32 %s25, 1
          %s406 = scalar_lea.sflag [#allocation10], %s405
          %s407 = sand.u32 %s195, 1
          %s408 = smul.addr %s407, 4
          %s409 = scalar_lea.vmem [#allocation11], %s408
          %s411 = ssub.s32 64, 64
          %412 = vsyncadd %s406, %s411
          %s413 = smul.addr %s32, 64
          %s414 = scalar_lea.hbm %s6, %s413
          %s416 = sshll.u32 %s409, 4
          %s417 = int_to_ptr.vmem [resolvable:$true] %s416
          %419 = dma.hbm_to_vmem [thread:$0]  %s414, 64, %s417, %s406
        $region52: #{spline_net_forward.1} parent=31 // pred_fallthru
          _
      $region32: #{spline_net_forward.1} parent=5 // pred_fallthru
        _
      %p420 = scmp.le.s32.totalorder 1, %s25
      %p421 = scmp.lt.s32.totalorder %s25, 37
      %p422 = pnand %p420, %p421
      %p423 = pneg %p422
      // Predicated region
      $region53: #{spline_net_forward.1} parent=5 // pred_check
        _
      $region54: #{spline_net_forward.1} parent=5 // pred_check_branch
        %425 = sbr.rel (%p422) target = $region56
      $region55: #{spline_net_forward.1} parent=5 // pred_region
        %s426 = ssub.s32 %s25, 1
        %s427 = sand.u32 %s71, 1
        %s428 = scalar_lea.sflag [#allocation5], %s427
        %s429 = sand.u32 %s71, 1
        %s430 = smul.addr %s429, 128
        %s431 = scalar_lea.vmem [#allocation4], %s430
        // Predicated region
        $region57: #{spline_net_forward.1} parent=55 // pred_check
          %p432 = pneg %p84
        $region58: #{spline_net_forward.1} parent=55 // pred_check_branch
          %434 = sbr.rel (%p432) target = $region60
        $region59: #{spline_net_forward.1} parent=55 // pred_region
          %435 = dma.done %s428, 2048
        $region60: #{spline_net_forward.1} parent=55 // pred_fallthru
          _
        %s436 = sand.u32 %s30, 1
        %s437 = scalar_lea.sflag [#allocation7], %s436
        %s438 = sand.u32 %s97, 1
        %s439 = smul.addr %s438, 128
        %s440 = scalar_lea.vmem [#allocation6], %s439
        // Predicated region
        $region61: #{spline_net_forward.1} parent=55 // pred_check
          %p441 = pneg %p110
        $region62: #{spline_net_forward.1} parent=55 // pred_check_branch
          %443 = sbr.rel (%p441) target = $region64
        $region63: #{spline_net_forward.1} parent=55 // pred_region
          %444 = dma.done %s437, 2048
        $region64: #{spline_net_forward.1} parent=55 // pred_fallthru
          _
        %s445 = sand.u32 %s30, 1
        %s446 = scalar_lea.sflag [#allocation7], %s445
        %s447 = sand.u32 %s146, 1
        %s448 = smul.addr %s447, 1024
        %s449 = scalar_lea.vmem [#allocation8], %s448
        // Predicated region
        $region65: #{spline_net_forward.1} parent=55 // pred_check
          %p450 = pneg %p159
        $region66: #{spline_net_forward.1} parent=55 // pred_check_branch
          %452 = sbr.rel (%p450) target = $region68
        $region67: #{spline_net_forward.1} parent=55 // pred_region
          %453 = dma.done %s446, 16384
        $region68: #{spline_net_forward.1} parent=55 // pred_fallthru
          _
        %s454 = sand.u32 %s30, 1
        %s455 = scalar_lea.sflag [#allocation10], %s454
        %s456 = sand.u32 %s172, 1
        %s457 = smul.addr %s456, 32
        %s458 = scalar_lea.vmem [#allocation9], %s457
        // Predicated region
        $region69: #{spline_net_forward.1} parent=55 // pred_check
          %p459 = pneg %p185
        $region70: #{spline_net_forward.1} parent=55 // pred_check_branch
          %461 = sbr.rel (%p459) target = $region72
        $region71: #{spline_net_forward.1} parent=55 // pred_region
          %462 = dma.done %s455, 512
        $region72: #{spline_net_forward.1} parent=55 // pred_fallthru
          _
        %s463 = sand.u32 %s30, 1
        %s464 = scalar_lea.sflag [#allocation10], %s463
        %s465 = sand.u32 %s198, 1
        %s466 = smul.addr %s465, 4
        %s467 = scalar_lea.vmem [#allocation11], %s466
        // Predicated region
        $region73: #{spline_net_forward.1} parent=55 // pred_check
          %p468 = pneg %p211
        $region74: #{spline_net_forward.1} parent=55 // pred_check_branch
          %470 = sbr.rel (%p468) target = $region76
        $region75: #{spline_net_forward.1} parent=55 // pred_region
          %471 = dma.done %s464, 64
        $region76: #{spline_net_forward.1} parent=55 // pred_fallthru
          _
        // Predicated region
        $region77: #{spline_net_forward.1} parent=55 // pred_check
          %p472 = pneg %p232
        $region78: #{spline_net_forward.1} parent=55 // pred_check_branch
          %474 = sbr.rel (%p472) target = $region80
        $region79: #{spline_net_forward.1} parent=55 // pred_region
          %475 = dma.done [#allocation13], 2048
        $region80: #{spline_net_forward.1} parent=55 // pred_fallthru
          _
        %p476 = pneg %p58
        %p477 = pneg %p55
        %s478 = sand.u32 %s71, 1
        %s479 = scalar_lea.sflag [#allocation5], %s478
        %s480 = sand.u32 %s71, 1
        %s481 = smul.addr %s480, 128
        %s482 = scalar_lea.vmem [#allocation4], %s481
        %p483 = pneg %p84
        %p484 = pneg %p81
        %s485 = sand.u32 %s30, 1
        %s486 = scalar_lea.sflag [#allocation7], %s485
        %s487 = sand.u32 %s97, 1
        %s488 = smul.addr %s487, 128
        %s489 = scalar_lea.vmem [#allocation6], %s488
        %p490 = pneg %p110
        %p491 = pneg %p107
        %p492 = pneg %p131
        %p493 = pneg %p128
        %s494 = sand.u32 %s30, 1
        %s495 = scalar_lea.sflag [#allocation7], %s494
        %s496 = sand.u32 %s146, 1
        %s497 = smul.addr %s496, 1024
        %s498 = scalar_lea.vmem [#allocation8], %s497
        %p499 = pneg %p159
        %p500 = pneg %p156
        %s501 = sand.u32 %s30, 1
        %s502 = scalar_lea.sflag [#allocation10], %s501
        %s503 = sand.u32 %s172, 1
        %s504 = smul.addr %s503, 32
        %s505 = scalar_lea.vmem [#allocation9], %s504
        %p506 = pneg %p185
        %p507 = pneg %p182
        %s508 = sand.u32 %s30, 1
        %s509 = scalar_lea.sflag [#allocation10], %s508
        %s510 = sand.u32 %s198, 1
        %s511 = smul.addr %s510, 4
        %s512 = scalar_lea.vmem [#allocation11], %s511
        %p513 = pneg %p211
        %p514 = pneg %p208
        %p515 = pneg %p232
        %p516 = pneg %p229
        %p517 = pneg %p253
        %p518 = pneg %p250
        %p519 = pneg %p274
        %p520 = pneg %p271
        %s521 = smul.u32 32, %s35
        %s522 = smul.u32 2, %s35
        %s523 = smul.u32 32, %s35
        %p525 = scmp.eq.s32.totalorder %s34, 0
        %p526 = scmp.eq.s32.totalorder %s35, 0
        %p527 = pnand %p525, %p526
        %p528 = pneg %p527
        // Predicated region
        $region81: #{spline_net_forward.1} parent=55 // pred_check
          _
        $region82: #{spline_net_forward.1} parent=55 // pred_check_branch
          %530 = sbr.rel (%p527) target = $region84
        $region83: #{spline_net_forward.1} parent=55 // pred_region
          %v531 = vld [vmem:[%s0] sm:$0xff]
          %v532 = vld [vmem:[%s0 + $0x8] sm:$0xff]
          %v533 = vld [vmem:[%s0 + $0x10] sm:$0xff]
          %v534 = vld [vmem:[%s0 + $0x18] sm:$0xff]
          %v535 = vld [vmem:[%s0 + $0x20] sm:$0xff]
          %v536 = vld [vmem:[%s0 + $0x28] sm:$0xff]
          %v537 = vld [vmem:[%s0 + $0x30] sm:$0xff]
          %v538 = vld [vmem:[%s0 + $0x38] sm:$0xff]
          %v539 = vld [vmem:[%s0 + $0x40] sm:$0xff]
          %v540 = vld [vmem:[%s0 + $0x48] sm:$0xff]
          %v541 = vld [vmem:[%s0 + $0x50] sm:$0xff]
          %v542 = vld [vmem:[%s0 + $0x58] sm:$0xff]
          %v543 = vld [vmem:[%s0 + $0x60] sm:$0xff]
          %v544 = vld [vmem:[%s0 + $0x68] sm:$0xff]
          %v545 = vld [vmem:[%s0 + $0x70] sm:$0xff]
          %v546 = vld [vmem:[%s0 + $0x78] sm:$0xff]
          %vm547 = vcmask 261120
          %548 = vst.msk [vmem:[#allocation2] sm:$0xff] %vm547, %v531
          %549 = vst.msk [vmem:[#allocation2 + $0x8] sm:$0xff] %vm547, %v532
          %550 = vst.msk [vmem:[#allocation2 + $0x10] sm:$0xff] %vm547, %v533
          %551 = vst.msk [vmem:[#allocation2 + $0x18] sm:$0xff] %vm547, %v534
          %552 = vst.msk [vmem:[#allocation2 + $0x20] sm:$0xff] %vm547, %v535
          %553 = vst.msk [vmem:[#allocation2 + $0x28] sm:$0xff] %vm547, %v536
          %554 = vst.msk [vmem:[#allocation2 + $0x30] sm:$0xff] %vm547, %v537
          %555 = vst.msk [vmem:[#allocation2 + $0x38] sm:$0xff] %vm547, %v538
          %556 = vst.msk [vmem:[#allocation2 + $0x40] sm:$0xff] %vm547, %v539
          %557 = vst.msk [vmem:[#allocation2 + $0x48] sm:$0xff] %vm547, %v540
          %558 = vst.msk [vmem:[#allocation2 + $0x50] sm:$0xff] %vm547, %v541
          %559 = vst.msk [vmem:[#allocation2 + $0x58] sm:$0xff] %vm547, %v542
          %560 = vst.msk [vmem:[#allocation2 + $0x60] sm:$0xff] %vm547, %v543
          %561 = vst.msk [vmem:[#allocation2 + $0x68] sm:$0xff] %vm547, %v544
          %562 = vst.msk [vmem:[#allocation2 + $0x70] sm:$0xff] %vm547, %v545
          %563 = vst.msk [vmem:[#allocation2 + $0x78] sm:$0xff] %vm547, %v546
        $region84: #{spline_net_forward.1} parent=55 // pred_fallthru
          _
        // Predicated region
        $region85: #{spline_net_forward.1} parent=55 // pred_check
          %p564 = pneg %p526
        $region86: #{spline_net_forward.1} parent=55 // pred_check_branch
          %566 = sbr.rel (%p564) target = $region88
        $region87: #{spline_net_forward.1} parent=55 // pred_region
          %vm567 = vcmask 261120
          %568 = vst.msk [vmem:[#allocation3] sm:$0xff] %vm567, 0.0
          %569 = vst.msk [vmem:[#allocation3 + $0x8] sm:$0xff] %vm567, 0.0
          %570 = vst.msk [vmem:[#allocation3 + $0x10] sm:$0xff] %vm567, 0.0
          %571 = vst.msk [vmem:[#allocation3 + $0x18] sm:$0xff] %vm567, 0.0
          %572 = vst.msk [vmem:[#allocation3 + $0x20] sm:$0xff] %vm567, 0.0
          %573 = vst.msk [vmem:[#allocation3 + $0x28] sm:$0xff] %vm567, 0.0
          %574 = vst.msk [vmem:[#allocation3 + $0x30] sm:$0xff] %vm567, 0.0
          %575 = vst.msk [vmem:[#allocation3 + $0x38] sm:$0xff] %vm567, 0.0
          %576 = vst.msk [vmem:[#allocation3 + $0x40] sm:$0xff] %vm567, 0.0
          %577 = vst.msk [vmem:[#allocation3 + $0x48] sm:$0xff] %vm567, 0.0
          %578 = vst.msk [vmem:[#allocation3 + $0x50] sm:$0xff] %vm567, 0.0
          %579 = vst.msk [vmem:[#allocation3 + $0x58] sm:$0xff] %vm567, 0.0
          %580 = vst.msk [vmem:[#allocation3 + $0x60] sm:$0xff] %vm567, 0.0
          %581 = vst.msk [vmem:[#allocation3 + $0x68] sm:$0xff] %vm567, 0.0
          %582 = vst.msk [vmem:[#allocation3 + $0x70] sm:$0xff] %vm567, 0.0
          %583 = vst.msk [vmem:[#allocation3 + $0x78] sm:$0xff] %vm567, 0.0
        $region88: #{spline_net_forward.1} parent=55 // pred_fallthru
          _
        %v584 = vld [vmem:[#allocation2] sm:$0xff]
        %v585 = vld [vmem:[#allocation2 + $0x8] sm:$0xff]
        %v586 = vld [vmem:[#allocation2 + $0x10] sm:$0xff]
        %v587 = vld [vmem:[#allocation2 + $0x18] sm:$0xff]
        %v588 = vld [vmem:[#allocation2 + $0x20] sm:$0xff]
        %v589 = vld [vmem:[#allocation2 + $0x28] sm:$0xff]
        %v590 = vld [vmem:[#allocation2 + $0x30] sm:$0xff]
        %v591 = vld [vmem:[#allocation2 + $0x38] sm:$0xff]
        %v592 = vld [vmem:[#allocation2 + $0x40] sm:$0xff]
        %v593 = vld [vmem:[#allocation2 + $0x48] sm:$0xff]
        %v594 = vld [vmem:[#allocation2 + $0x50] sm:$0xff]
        %v595 = vld [vmem:[#allocation2 + $0x58] sm:$0xff]
        %v596 = vld [vmem:[#allocation2 + $0x60] sm:$0xff]
        %v597 = vld [vmem:[#allocation2 + $0x68] sm:$0xff]
        %v598 = vld [vmem:[#allocation2 + $0x70] sm:$0xff]
        %v599 = vld [vmem:[#allocation2 + $0x78] sm:$0xff]
        %v600 = vld [vmem:[%s431] sm:$0xf]
        %v601 = vld [vmem:[%s431 + $0x4] sm:$0xf]
        %v602 = vld [vmem:[%s431 + $0x8] sm:$0xf]
        %v603 = vld [vmem:[%s431 + $0xc] sm:$0xf]
        %v604 = vld [vmem:[%s431 + $0x10] sm:$0xf]
        %v605 = vld [vmem:[%s431 + $0x14] sm:$0xf]
        %v606 = vld [vmem:[%s431 + $0x18] sm:$0xf]
        %v607 = vld [vmem:[%s431 + $0x1c] sm:$0xf]
        %v608 = vld [vmem:[%s431 + $0x20] sm:$0xf]
        %v609 = vld [vmem:[%s431 + $0x24] sm:$0xf]
        %v610 = vld [vmem:[%s431 + $0x28] sm:$0xf]
        %v611 = vld [vmem:[%s431 + $0x2c] sm:$0xf]
        %v612 = vld [vmem:[%s431 + $0x30] sm:$0xf]
        %v613 = vld [vmem:[%s431 + $0x34] sm:$0xf]
        %v614 = vld [vmem:[%s431 + $0x38] sm:$0xf]
        %v615 = vld [vmem:[%s431 + $0x3c] sm:$0xf]
        %v616 = vld [vmem:[%s431 + $0x40] sm:$0xf]
        %v617 = vld [vmem:[%s431 + $0x44] sm:$0xf]
        %v618 = vld [vmem:[%s431 + $0x48] sm:$0xf]
        %v619 = vld [vmem:[%s431 + $0x4c] sm:$0xf]
        %v620 = vld [vmem:[%s431 + $0x50] sm:$0xf]
        %v621 = vld [vmem:[%s431 + $0x54] sm:$0xf]
        %v622 = vld [vmem:[%s431 + $0x58] sm:$0xf]
        %v623 = vld [vmem:[%s431 + $0x5c] sm:$0xf]
        %v624 = vld [vmem:[%s431 + $0x60] sm:$0xf]
        %v625 = vld [vmem:[%s431 + $0x64] sm:$0xf]
        %v626 = vld [vmem:[%s431 + $0x68] sm:$0xf]
        %v627 = vld [vmem:[%s431 + $0x6c] sm:$0xf]
        %v628 = vld [vmem:[%s431 + $0x70] sm:$0xf]
        %v629 = vld [vmem:[%s431 + $0x74] sm:$0xf]
        %v630 = vld [vmem:[%s431 + $0x78] sm:$0xf]
        %v631 = vld [vmem:[%s431 + $0x7c] sm:$0xf]
        %v632 = vpack.c.bf16 %v585, %v584
        %v633 = vpack.c.bf16 %v587, %v586
        %v634 = vpack.c.bf16 %v589, %v588
        %v635 = vpack.c.bf16 %v591, %v590
        %v636 = vpack.c.bf16 %v593, %v592
        %v637 = vpack.c.bf16 %v595, %v594
        %v638 = vpack.c.bf16 %v597, %v596
        %v639 = vpack.c.bf16 %v599, %v598
        %v672 = vunpack.c.l.b16 %v600
        %v673 = vunpack.c.l.b16 %v601
        %v674 = vunpack.c.l.b16 %v602
        %v675 = vunpack.c.l.b16 %v603
        %v676 = vunpack.c.l.b16 %v604
        %v677 = vunpack.c.l.b16 %v605
        %v678 = vunpack.c.l.b16 %v606
        %v679 = vunpack.c.l.b16 %v607
        %v680 = vunpack.c.l.b16 %v608
        %v681 = vunpack.c.l.b16 %v609
        %v682 = vunpack.c.l.b16 %v610
        %v683 = vunpack.c.l.b16 %v611
        %v684 = vunpack.c.l.b16 %v612
        %v685 = vunpack.c.l.b16 %v613
        %v686 = vunpack.c.l.b16 %v614
        %v687 = vunpack.c.l.b16 %v615
        %v688 = vunpack.c.l.b16 %v616
        %v689 = vunpack.c.l.b16 %v617
        %v690 = vunpack.c.l.b16 %v618
        %v691 = vunpack.c.l.b16 %v619
        %v692 = vunpack.c.l.b16 %v620
        %v693 = vunpack.c.l.b16 %v621
        %v694 = vunpack.c.l.b16 %v622
        %v695 = vunpack.c.l.b16 %v623
        %v696 = vunpack.c.l.b16 %v624
        %v697 = vunpack.c.l.b16 %v625
        %v698 = vunpack.c.l.b16 %v626
        %v699 = vunpack.c.l.b16 %v627
        %v700 = vunpack.c.l.b16 %v628
        %v701 = vunpack.c.l.b16 %v629
        %v702 = vunpack.c.l.b16 %v630
        %v703 = vunpack.c.l.b16 %v631
        %v704 = vpack.c.b16 %v673, %v672
        %v705 = vpack.c.b16 %v675, %v674
        %v706 = vpack.c.b16 %v677, %v676
        %v707 = vpack.c.b16 %v679, %v678
        %v708 = vpack.c.b16 %v681, %v680
        %v709 = vpack.c.b16 %v683, %v682
        %v710 = vpack.c.b16 %v685, %v684
        %v711 = vpack.c.b16 %v687, %v686
        %v712 = vpack.c.b16 %v689, %v688
        %v713 = vpack.c.b16 %v691, %v690
        %v714 = vpack.c.b16 %v693, %v692
        %v715 = vpack.c.b16 %v695, %v694
        %v716 = vpack.c.b16 %v697, %v696
        %v717 = vpack.c.b16 %v699, %v698
        %v718 = vpack.c.b16 %v701, %v700
        %v719 = vpack.c.b16 %v703, %v702
        %736 = vmatprep.subr.bf16.mxu0 0
        %737 = vmatpush1.bf16.msra.mxu0 %v639
        %738 = vmatprep.subr.bf16.mxu0 0
        %739 = vmatpush1.bf16.msra.mxu0 %v638
        %740 = vmatprep.subr.bf16.mxu0 0
        %741 = vmatpush1.bf16.msra.mxu0 %v637
        %742 = vmatprep.subr.bf16.mxu0 0
        %743 = vmatpush1.bf16.msra.mxu0 %v636
        %744 = vmatprep.subr.bf16.mxu0 0
        %745 = vmatpush1.bf16.msra.mxu0 %v635
        %746 = vmatprep.subr.bf16.mxu0 0
        %747 = vmatpush1.bf16.msra.mxu0 %v634
        %748 = vmatprep.subr.bf16.mxu0 0
        %749 = vmatpush1.bf16.msra.mxu0 %v633
        %750 = vmatprep.subr.bf16.mxu0 0
        %751 = vmatpush1.bf16.msra.mxu0 %v632
        %752 = vmatprep.subr.bf16.mxu0 0
        %753 = vmatpush2.bf16.msra.mxu0 0
        %754 = vmatprep.subr.bf16.mxu0 0
        %755 = vmatpush2.bf16.msra.mxu0 0
        %756 = vmatprep.subr.bf16.mxu0 0
        %757 = vmatpush2.bf16.msra.mxu0 0
        %758 = vmatprep.subr.bf16.mxu0 0
        %759 = vmatpush2.bf16.msra.mxu0 0
        %760 = vmatprep.subr.bf16.mxu0 0
        %761 = vmatpush2.bf16.msra.mxu0 0
        %762 = vmatprep.subr.bf16.mxu0 0
        %763 = vmatpush2.bf16.msra.mxu0 0
        %764 = vmatprep.subr.bf16.mxu0 0
        %765 = vmatpush2.bf16.msra.mxu0 0
        %766 = vmatprep.subr.bf16.mxu0 0
        %767 = vmatpush2.bf16.msra.mxu0 0
        %768 = vmatprep.mubr.bf16.mxu0 0
        %769 = vmatmul.mubr.bf16.gmra.mxu0 %v704
        %v770 = vpop.f32.mrf.mxu0
        %v771 = vadd.f32 0.0, %v770
        %v772 = vpop.f32.mrf.mxu0
        %v773 = vpop.f32.mrf.mxu0
        %v774 = vadd.f32 0.0, %v773
        %v775 = vpop.f32.mrf.mxu0
        %776 = vmatprep.mubr.bf16.mxu0 0
        %777 = vmatmul.mubr.bf16.gmra.mxu0 %v705
        %v778 = vpop.f32.mrf.mxu0
        %v779 = vadd.f32 0.0, %v778
        %v780 = vpop.f32.mrf.mxu0
        %v781 = vpop.f32.mrf.mxu0
        %v782 = vadd.f32 0.0, %v781
        %v783 = vpop.f32.mrf.mxu0
        %784 = vmatprep.mubr.bf16.mxu0 0
        %785 = vmatmul.mubr.bf16.gmra.mxu0 %v706
        %v786 = vpop.f32.mrf.mxu0
        %v787 = vadd.f32 0.0, %v786
        %v788 = vpop.f32.mrf.mxu0
        %v789 = vpop.f32.mrf.mxu0
        %v790 = vadd.f32 0.0, %v789
        %v791 = vpop.f32.mrf.mxu0
        %792 = vmatprep.mubr.bf16.mxu0 0
        %793 = vmatmul.mubr.bf16.gmra.mxu0 %v707
        %v794 = vpop.f32.mrf.mxu0
        %v795 = vadd.f32 0.0, %v794
        %v796 = vpop.f32.mrf.mxu0
        %v797 = vpop.f32.mrf.mxu0
        %v798 = vadd.f32 0.0, %v797
        %v799 = vpop.f32.mrf.mxu0
        %800 = vmatprep.mubr.bf16.mxu0 0
        %801 = vmatmul.mubr.bf16.gmra.mxu0 %v708
        %v802 = vpop.f32.mrf.mxu0
        %v803 = vadd.f32 0.0, %v802
        %v804 = vpop.f32.mrf.mxu0
        %v805 = vpop.f32.mrf.mxu0
        %v806 = vadd.f32 0.0, %v805
        %v807 = vpop.f32.mrf.mxu0
        %808 = vmatprep.mubr.bf16.mxu0 0
        %809 = vmatmul.mubr.bf16.gmra.mxu0 %v709
        %v810 = vpop.f32.mrf.mxu0
        %v811 = vadd.f32 0.0, %v810
        %v812 = vpop.f32.mrf.mxu0
        %v813 = vpop.f32.mrf.mxu0
        %v814 = vadd.f32 0.0, %v813
        %v815 = vpop.f32.mrf.mxu0
        %816 = vmatprep.mubr.bf16.mxu0 0
        %817 = vmatmul.mubr.bf16.gmra.mxu0 %v710
        %v818 = vpop.f32.mrf.mxu0
        %v819 = vadd.f32 0.0, %v818
        %v820 = vpop.f32.mrf.mxu0
        %v821 = vpop.f32.mrf.mxu0
        %v822 = vadd.f32 0.0, %v821
        %v823 = vpop.f32.mrf.mxu0
        %824 = vmatprep.mubr.bf16.mxu0 0
        %825 = vmatmul.mubr.bf16.gmra.mxu0 %v711
        %v826 = vpop.f32.mrf.mxu0
        %v827 = vadd.f32 0.0, %v826
        %v828 = vpop.f32.mrf.mxu0
        %v829 = vpop.f32.mrf.mxu0
        %v830 = vadd.f32 0.0, %v829
        %v831 = vpop.f32.mrf.mxu0
        %832 = vmatprep.mubr.bf16.mxu0 0
        %833 = vmatmul.mubr.bf16.gmra.mxu0 %v712
        %v834 = vpop.f32.mrf.mxu0
        %v835 = vadd.f32 0.0, %v834
        %v836 = vpop.f32.mrf.mxu0
        %v837 = vpop.f32.mrf.mxu0
        %v838 = vadd.f32 0.0, %v837
        %v839 = vpop.f32.mrf.mxu0
        %840 = vmatprep.mubr.bf16.mxu0 0
        %841 = vmatmul.mubr.bf16.gmra.mxu0 %v713
        %v842 = vpop.f32.mrf.mxu0
        %v843 = vadd.f32 0.0, %v842
        %v844 = vpop.f32.mrf.mxu0
        %v845 = vpop.f32.mrf.mxu0
        %v846 = vadd.f32 0.0, %v845
        %v847 = vpop.f32.mrf.mxu0
        %848 = vmatprep.mubr.bf16.mxu0 0
        %849 = vmatmul.mubr.bf16.gmra.mxu0 %v714
        %v850 = vpop.f32.mrf.mxu0
        %v851 = vadd.f32 0.0, %v850
        %v852 = vpop.f32.mrf.mxu0
        %v853 = vpop.f32.mrf.mxu0
        %v854 = vadd.f32 0.0, %v853
        %v855 = vpop.f32.mrf.mxu0
        %856 = vmatprep.mubr.bf16.mxu0 0
        %857 = vmatmul.mubr.bf16.gmra.mxu0 %v715
        %v858 = vpop.f32.mrf.mxu0
        %v859 = vadd.f32 0.0, %v858
        %v860 = vpop.f32.mrf.mxu0
        %v861 = vpop.f32.mrf.mxu0
        %v862 = vadd.f32 0.0, %v861
        %v863 = vpop.f32.mrf.mxu0
        %864 = vmatprep.mubr.bf16.mxu0 0
        %865 = vmatmul.mubr.bf16.gmra.mxu0 %v716
        %v866 = vpop.f32.mrf.mxu0
        %v867 = vadd.f32 0.0, %v866
        %v868 = vpop.f32.mrf.mxu0
        %v869 = vpop.f32.mrf.mxu0
        %v870 = vadd.f32 0.0, %v869
        %v871 = vpop.f32.mrf.mxu0
        %872 = vmatprep.mubr.bf16.mxu0 0
        %873 = vmatmul.mubr.bf16.gmra.mxu0 %v717
        %v874 = vpop.f32.mrf.mxu0
        %v875 = vadd.f32 0.0, %v874
        %v876 = vpop.f32.mrf.mxu0
        %v877 = vpop.f32.mrf.mxu0
        %v878 = vadd.f32 0.0, %v877
        %v879 = vpop.f32.mrf.mxu0
        %880 = vmatprep.mubr.bf16.mxu0 0
        %881 = vmatmul.mubr.bf16.gmra.mxu0 %v718
        %v882 = vpop.f32.mrf.mxu0
        %v883 = vadd.f32 0.0, %v882
        %v884 = vpop.f32.mrf.mxu0
        %v885 = vpop.f32.mrf.mxu0
        %v886 = vadd.f32 0.0, %v885
        %v887 = vpop.f32.mrf.mxu0
        %888 = vmatprep.mubr.bf16.mxu0 0
        %889 = vmatmul.mubr.bf16.gmra.mxu0 %v719
        %v890 = vpop.f32.mrf.mxu0
        %v891 = vadd.f32 0.0, %v890
        %v892 = vpop.f32.mrf.mxu0
        %v893 = vpop.f32.mrf.mxu0
        %v894 = vadd.f32 0.0, %v893
        %v895 = vpop.f32.mrf.mxu0
        %896 = vdwg.mxu0
        %v897 = vpack.c.bf16 %v774, %v771
        %v898 = vpack.c.bf16 %v782, %v779
        %v899 = vpack.c.bf16 %v790, %v787
        %v900 = vpack.c.bf16 %v798, %v795
        %v901 = vpack.c.bf16 %v806, %v803
        %v902 = vpack.c.bf16 %v814, %v811
        %v903 = vpack.c.bf16 %v822, %v819
        %v904 = vpack.c.bf16 %v830, %v827
        %v905 = vpack.c.bf16 %v838, %v835
        %v906 = vpack.c.bf16 %v846, %v843
        %v907 = vpack.c.bf16 %v854, %v851
        %v908 = vpack.c.bf16 %v862, %v859
        %v909 = vpack.c.bf16 %v870, %v867
        %v910 = vpack.c.bf16 %v878, %v875
        %v911 = vpack.c.bf16 %v886, %v883
        %v912 = vpack.c.bf16 %v894, %v891
        %v913 = vld [vmem:[#allocation12] sm:$0xff]
        %v914 = vld [vmem:[#allocation12 + $0x8] sm:$0xff]
        %v915 = vld [vmem:[#allocation12 + $0x10] sm:$0xff]
        %v916 = vld [vmem:[#allocation12 + $0x18] sm:$0xff]
        %v917 = vld [vmem:[#allocation12 + $0x20] sm:$0xff]
        %v918 = vld [vmem:[#allocation12 + $0x28] sm:$0xff]
        %v919 = vld [vmem:[#allocation12 + $0x30] sm:$0xff]
        %v920 = vld [vmem:[#allocation12 + $0x38] sm:$0xff]
        %v921 = vld [vmem:[#allocation12 + $0x40] sm:$0xff]
        %v922 = vld [vmem:[#allocation12 + $0x48] sm:$0xff]
        %v923 = vld [vmem:[#allocation12 + $0x50] sm:$0xff]
        %v924 = vld [vmem:[#allocation12 + $0x58] sm:$0xff]
        %v925 = vld [vmem:[#allocation12 + $0x60] sm:$0xff]
        %v926 = vld [vmem:[#allocation12 + $0x68] sm:$0xff]
        %v927 = vld [vmem:[#allocation12 + $0x70] sm:$0xff]
        %v928 = vld [vmem:[#allocation12 + $0x78] sm:$0xff]
        %v945 = vunpack.c.l.b16 %v913
        %v946 = vunpack.c.h.b16 %v913
        %v947 = vunpack.c.l.b16 %v914
        %v948 = vunpack.c.h.b16 %v914
        %v949 = vunpack.c.l.b16 %v915
        %v950 = vunpack.c.h.b16 %v915
        %v951 = vunpack.c.l.b16 %v916
        %v952 = vunpack.c.h.b16 %v916
        %v953 = vunpack.c.l.b16 %v917
        %v954 = vunpack.c.h.b16 %v917
        %v955 = vunpack.c.l.b16 %v918
        %v956 = vunpack.c.h.b16 %v918
        %v957 = vunpack.c.l.b16 %v919
        %v958 = vunpack.c.h.b16 %v919
        %v959 = vunpack.c.l.b16 %v920
        %v960 = vunpack.c.h.b16 %v920
        %v961 = vunpack.c.l.b16 %v921
        %v962 = vunpack.c.h.b16 %v921
        %v963 = vunpack.c.l.b16 %v922
        %v964 = vunpack.c.h.b16 %v922
        %v965 = vunpack.c.l.b16 %v923
        %v966 = vunpack.c.h.b16 %v923
        %v967 = vunpack.c.l.b16 %v924
        %v968 = vunpack.c.h.b16 %v924
        %v969 = vunpack.c.l.b16 %v925
        %v970 = vunpack.c.h.b16 %v925
        %v971 = vunpack.c.l.b16 %v926
        %v972 = vunpack.c.h.b16 %v926
        %v973 = vunpack.c.l.b16 %v927
        %v974 = vunpack.c.h.b16 %v927
        %v975 = vunpack.c.l.b16 %v928
        %v976 = vunpack.c.h.b16 %v928
        %v977 = vpack.c.b16 %v953, %v945
        %v978 = vpack.c.b16 %v954, %v946
        %v979 = vpack.c.b16 %v955, %v947
        %v980 = vpack.c.b16 %v956, %v948
        %v981 = vpack.c.b16 %v957, %v949
        %v982 = vpack.c.b16 %v958, %v950
        %v983 = vpack.c.b16 %v959, %v951
        %v984 = vpack.c.b16 %v960, %v952
        %v985 = vpack.c.b16 %v969, %v961
        %v986 = vpack.c.b16 %v970, %v962
        %v987 = vpack.c.b16 %v971, %v963
        %v988 = vpack.c.b16 %v972, %v964
        %v989 = vpack.c.b16 %v973, %v965
        %v990 = vpack.c.b16 %v974, %v966
        %v991 = vpack.c.b16 %v975, %v967
        %v992 = vpack.c.b16 %v976, %v968
        %vm1009 = vcmask 261120
        %v1011 = vsel %vm1009, %v897, 0
        %v1014 = vsel %vm1009, %v898, 0
        %v1017 = vsel %vm1009, %v899, 0
        %v1020 = vsel %vm1009, %v900, 0
        %v1023 = vsel %vm1009, %v901, 0
        %v1026 = vsel %vm1009, %v902, 0
        %v1029 = vsel %vm1009, %v903, 0
        %v1032 = vsel %vm1009, %v904, 0
        %v1035 = vsel %vm1009, %v905, 0
        %v1038 = vsel %vm1009, %v906, 0
        %v1041 = vsel %vm1009, %v907, 0
        %v1044 = vsel %vm1009, %v908, 0
        %v1047 = vsel %vm1009, %v909, 0
        %v1050 = vsel %vm1009, %v910, 0
        %v1053 = vsel %vm1009, %v911, 0
        %v1056 = vsel %vm1009, %v912, 0
        %1058 = vmatprep.subr.bf16.mxu0 0
        %1059 = vmatpush1.bf16.msra.mxu0 0
        %1060 = vmatprep.subr.bf16.mxu0 0
        %1061 = vmatpush1.bf16.msra.mxu0 0
        %1062 = vmatprep.subr.bf16.mxu0 0
        %1063 = vmatpush1.bf16.msra.mxu0 0
        %1064 = vmatprep.subr.bf16.mxu0 0
        %1065 = vmatpush1.bf16.msra.mxu0 0
        %1066 = vmatprep.subr.bf16.mxu0 0
        %1067 = vmatpush1.bf16.msra.mxu0 0
        %1068 = vmatprep.subr.bf16.mxu0 0
        %1069 = vmatpush1.bf16.msra.mxu0 0
        %1070 = vmatprep.subr.bf16.mxu0 %v986
        %1071 = vmatpush1.bf16.msra.mxu0 %v985
        %1072 = vmatprep.subr.bf16.mxu0 %v978
        %1073 = vmatpush1.bf16.msra.mxu0 %v977
        %1074 = vmatprep.subr.bf16.mxu0 0
        %1075 = vmatpush2.bf16.msra.mxu0 0
        %1076 = vmatprep.subr.bf16.mxu0 0
        %1077 = vmatpush2.bf16.msra.mxu0 0
        %1078 = vmatprep.subr.bf16.mxu0 0
        %1079 = vmatpush2.bf16.msra.mxu0 0
        %1080 = vmatprep.subr.bf16.mxu0 0
        %1081 = vmatpush2.bf16.msra.mxu0 0
        %1082 = vmatprep.subr.bf16.mxu0 0
        %1083 = vmatpush2.bf16.msra.mxu0 0
        %1084 = vmatprep.subr.bf16.mxu0 0
        %1085 = vmatpush2.bf16.msra.mxu0 0
        %1086 = vmatprep.subr.bf16.mxu0 0
        %1087 = vmatpush2.bf16.msra.mxu0 0
        %1088 = vmatprep.subr.bf16.mxu0 0
        %1089 = vmatpush2.bf16.msra.mxu0 0
        %1090 = vmatprep.mubr.bf16.mxu0 0
        %1091 = vmatmul.mubr.bf16.gmra.mxu0 %v1011
        %v1092 = vpop.f32.mrf.mxu0
        %v1093 = vadd.f32 0.0, %v1092
        %v1094 = vpop.f32.mrf.mxu0
        %v1095 = vadd.f32 0.0, %v1094
        %v1096 = vpop.f32.mrf.mxu0
        %v1097 = vadd.f32 0.0, %v1096
        %v1098 = vpop.f32.mrf.mxu0
        %v1099 = vadd.f32 0.0, %v1098
        %1100 = vmatprep.mubr.bf16.mxu0 0
        %1101 = vmatmul.mubr.bf16.gmra.mxu0 %v1014
        %v1102 = vpop.f32.mrf.mxu0
        %v1103 = vadd.f32 0.0, %v1102
        %v1104 = vpop.f32.mrf.mxu0
        %v1105 = vadd.f32 0.0, %v1104
        %v1106 = vpop.f32.mrf.mxu0
        %v1107 = vadd.f32 0.0, %v1106
        %v1108 = vpop.f32.mrf.mxu0
        %v1109 = vadd.f32 0.0, %v1108
        %1110 = vmatprep.mubr.bf16.mxu0 0
        %1111 = vmatmul.mubr.bf16.gmra.mxu0 %v1017
        %v1112 = vpop.f32.mrf.mxu0
        %v1113 = vadd.f32 0.0, %v1112
        %v1114 = vpop.f32.mrf.mxu0
        %v1115 = vadd.f32 0.0, %v1114
        %v1116 = vpop.f32.mrf.mxu0
        %v1117 = vadd.f32 0.0, %v1116
        %v1118 = vpop.f32.mrf.mxu0
        %v1119 = vadd.f32 0.0, %v1118
        %1120 = vmatprep.mubr.bf16.mxu0 0
        %1121 = vmatmul.mubr.bf16.gmra.mxu0 %v1020
        %v1122 = vpop.f32.mrf.mxu0
        %v1123 = vadd.f32 0.0, %v1122
        %v1124 = vpop.f32.mrf.mxu0
        %v1125 = vadd.f32 0.0, %v1124
        %v1126 = vpop.f32.mrf.mxu0
        %v1127 = vadd.f32 0.0, %v1126
        %v1128 = vpop.f32.mrf.mxu0
        %v1129 = vadd.f32 0.0, %v1128
        %1130 = vmatprep.mubr.bf16.mxu0 0
        %1131 = vmatmul.mubr.bf16.gmra.mxu0 %v1023
        %v1132 = vpop.f32.mrf.mxu0
        %v1133 = vadd.f32 0.0, %v1132
        %v1134 = vpop.f32.mrf.mxu0
        %v1135 = vadd.f32 0.0, %v1134
        %v1136 = vpop.f32.mrf.mxu0
        %v1137 = vadd.f32 0.0, %v1136
        %v1138 = vpop.f32.mrf.mxu0
        %v1139 = vadd.f32 0.0, %v1138
        %1140 = vmatprep.mubr.bf16.mxu0 0
        %1141 = vmatmul.mubr.bf16.gmra.mxu0 %v1026
        %v1142 = vpop.f32.mrf.mxu0
        %v1143 = vadd.f32 0.0, %v1142
        %v1144 = vpop.f32.mrf.mxu0
        %v1145 = vadd.f32 0.0, %v1144
        %v1146 = vpop.f32.mrf.mxu0
        %v1147 = vadd.f32 0.0, %v1146
        %v1148 = vpop.f32.mrf.mxu0
        %v1149 = vadd.f32 0.0, %v1148
        %1150 = vmatprep.mubr.bf16.mxu0 0
        %1151 = vmatmul.mubr.bf16.gmra.mxu0 %v1029
        %v1152 = vpop.f32.mrf.mxu0
        %v1153 = vadd.f32 0.0, %v1152
        %v1154 = vpop.f32.mrf.mxu0
        %v1155 = vadd.f32 0.0, %v1154
        %v1156 = vpop.f32.mrf.mxu0
        %v1157 = vadd.f32 0.0, %v1156
        %v1158 = vpop.f32.mrf.mxu0
        %v1159 = vadd.f32 0.0, %v1158
        %1160 = vmatprep.mubr.bf16.mxu0 0
        %1161 = vmatmul.mubr.bf16.gmra.mxu0 %v1032
        %v1162 = vpop.f32.mrf.mxu0
        %v1163 = vadd.f32 0.0, %v1162
        %v1164 = vpop.f32.mrf.mxu0
        %v1165 = vadd.f32 0.0, %v1164
        %v1166 = vpop.f32.mrf.mxu0
        %v1167 = vadd.f32 0.0, %v1166
        %v1168 = vpop.f32.mrf.mxu0
        %v1169 = vadd.f32 0.0, %v1168
        %1170 = vmatprep.mubr.bf16.mxu0 0
        %1171 = vmatmul.mubr.bf16.gmra.mxu0 %v1035
        %v1172 = vpop.f32.mrf.mxu0
        %v1173 = vadd.f32 0.0, %v1172
        %v1174 = vpop.f32.mrf.mxu0
        %v1175 = vadd.f32 0.0, %v1174
        %v1176 = vpop.f32.mrf.mxu0
        %v1177 = vadd.f32 0.0, %v1176
        %v1178 = vpop.f32.mrf.mxu0
        %v1179 = vadd.f32 0.0, %v1178
        %1180 = vmatprep.mubr.bf16.mxu0 0
        %1181 = vmatmul.mubr.bf16.gmra.mxu0 %v1038
        %v1182 = vpop.f32.mrf.mxu0
        %v1183 = vadd.f32 0.0, %v1182
        %v1184 = vpop.f32.mrf.mxu0
        %v1185 = vadd.f32 0.0, %v1184
        %v1186 = vpop.f32.mrf.mxu0
        %v1187 = vadd.f32 0.0, %v1186
        %v1188 = vpop.f32.mrf.mxu0
        %v1189 = vadd.f32 0.0, %v1188
        %1190 = vmatprep.mubr.bf16.mxu0 0
        %1191 = vmatmul.mubr.bf16.gmra.mxu0 %v1041
        %v1192 = vpop.f32.mrf.mxu0
        %v1193 = vadd.f32 0.0, %v1192
        %v1194 = vpop.f32.mrf.mxu0
        %v1195 = vadd.f32 0.0, %v1194
        %v1196 = vpop.f32.mrf.mxu0
        %v1197 = vadd.f32 0.0, %v1196
        %v1198 = vpop.f32.mrf.mxu0
        %v1199 = vadd.f32 0.0, %v1198
        %1200 = vmatprep.mubr.bf16.mxu0 0
        %1201 = vmatmul.mubr.bf16.gmra.mxu0 %v1044
        %v1202 = vpop.f32.mrf.mxu0
        %v1203 = vadd.f32 0.0, %v1202
        %v1204 = vpop.f32.mrf.mxu0
        %v1205 = vadd.f32 0.0, %v1204
        %v1206 = vpop.f32.mrf.mxu0
        %v1207 = vadd.f32 0.0, %v1206
        %v1208 = vpop.f32.mrf.mxu0
        %v1209 = vadd.f32 0.0, %v1208
        %1210 = vmatprep.mubr.bf16.mxu0 0
        %1211 = vmatmul.mubr.bf16.gmra.mxu0 %v1047
        %v1212 = vpop.f32.mrf.mxu0
        %v1213 = vadd.f32 0.0, %v1212
        %v1214 = vpop.f32.mrf.mxu0
        %v1215 = vadd.f32 0.0, %v1214
        %v1216 = vpop.f32.mrf.mxu0
        %v1217 = vadd.f32 0.0, %v1216
        %v1218 = vpop.f32.mrf.mxu0
        %v1219 = vadd.f32 0.0, %v1218
        %1220 = vmatprep.mubr.bf16.mxu0 0
        %1221 = vmatmul.mubr.bf16.gmra.mxu0 %v1050
        %v1222 = vpop.f32.mrf.mxu0
        %v1223 = vadd.f32 0.0, %v1222
        %v1224 = vpop.f32.mrf.mxu0
        %v1225 = vadd.f32 0.0, %v1224
        %v1226 = vpop.f32.mrf.mxu0
        %v1227 = vadd.f32 0.0, %v1226
        %v1228 = vpop.f32.mrf.mxu0
        %v1229 = vadd.f32 0.0, %v1228
        %1230 = vmatprep.mubr.bf16.mxu0 0
        %1231 = vmatmul.mubr.bf16.gmra.mxu0 %v1053
        %v1232 = vpop.f32.mrf.mxu0
        %v1233 = vadd.f32 0.0, %v1232
        %v1234 = vpop.f32.mrf.mxu0
        %v1235 = vadd.f32 0.0, %v1234
        %v1236 = vpop.f32.mrf.mxu0
        %v1237 = vadd.f32 0.0, %v1236
        %v1238 = vpop.f32.mrf.mxu0
        %v1239 = vadd.f32 0.0, %v1238
        %1240 = vmatprep.mubr.bf16.mxu0 0
        %1241 = vmatmul.mubr.bf16.gmra.mxu0 %v1056
        %v1242 = vpop.f32.mrf.mxu0
        %v1243 = vadd.f32 0.0, %v1242
        %v1244 = vpop.f32.mrf.mxu0
        %v1245 = vadd.f32 0.0, %v1244
        %v1246 = vpop.f32.mrf.mxu0
        %v1247 = vadd.f32 0.0, %v1246
        %v1248 = vpop.f32.mrf.mxu0
        %v1249 = vadd.f32 0.0, %v1248
        %1250 = vdwg.mxu0
        %1251 = vmatprep.subr.bf16.mxu0 0
        %1252 = vmatpush1.bf16.msra.mxu0 0
        %1253 = vmatprep.subr.bf16.mxu0 0
        %1254 = vmatpush1.bf16.msra.mxu0 0
        %1255 = vmatprep.subr.bf16.mxu0 0
        %1256 = vmatpush1.bf16.msra.mxu0 0
        %1257 = vmatprep.subr.bf16.mxu0 0
        %1258 = vmatpush1.bf16.msra.mxu0 0
        %1259 = vmatprep.subr.bf16.mxu0 0
        %1260 = vmatpush1.bf16.msra.mxu0 0
        %1261 = vmatprep.subr.bf16.mxu0 0
        %1262 = vmatpush1.bf16.msra.mxu0 0
        %1263 = vmatprep.subr.bf16.mxu0 %v988
        %1264 = vmatpush1.bf16.msra.mxu0 %v987
        %1265 = vmatprep.subr.bf16.mxu0 %v980
        %1266 = vmatpush1.bf16.msra.mxu0 %v979
        %1267 = vmatprep.subr.bf16.mxu0 0
        %1268 = vmatpush2.bf16.msra.mxu0 0
        %1269 = vmatprep.subr.bf16.mxu0 0
        %1270 = vmatpush2.bf16.msra.mxu0 0
        %1271 = vmatprep.subr.bf16.mxu0 0
        %1272 = vmatpush2.bf16.msra.mxu0 0
        %1273 = vmatprep.subr.bf16.mxu0 0
        %1274 = vmatpush2.bf16.msra.mxu0 0
        %1275 = vmatprep.subr.bf16.mxu0 0
        %1276 = vmatpush2.bf16.msra.mxu0 0
        %1277 = vmatprep.subr.bf16.mxu0 0
        %1278 = vmatpush2.bf16.msra.mxu0 0
        %1279 = vmatprep.subr.bf16.mxu0 0
        %1280 = vmatpush2.bf16.msra.mxu0 0
        %1281 = vmatprep.subr.bf16.mxu0 0
        %1282 = vmatpush2.bf16.msra.mxu0 0
        %1283 = vmatprep.mubr.bf16.mxu0 0
        %1284 = vmatmul.mubr.bf16.gmra.mxu0 %v1011
        %v1285 = vpop.f32.mrf.mxu0
        %v1286 = vadd.f32 0.0, %v1285
        %v1287 = vpop.f32.mrf.mxu0
        %v1288 = vadd.f32 0.0, %v1287
        %v1289 = vpop.f32.mrf.mxu0
        %v1290 = vadd.f32 0.0, %v1289
        %v1291 = vpop.f32.mrf.mxu0
        %v1292 = vadd.f32 0.0, %v1291
        %1293 = vmatprep.mubr.bf16.mxu0 0
        %1294 = vmatmul.mubr.bf16.gmra.mxu0 %v1014
        %v1295 = vpop.f32.mrf.mxu0
        %v1296 = vadd.f32 0.0, %v1295
        %v1297 = vpop.f32.mrf.mxu0
        %v1298 = vadd.f32 0.0, %v1297
        %v1299 = vpop.f32.mrf.mxu0
        %v1300 = vadd.f32 0.0, %v1299
        %v1301 = vpop.f32.mrf.mxu0
        %v1302 = vadd.f32 0.0, %v1301
        %1303 = vmatprep.mubr.bf16.mxu0 0
        %1304 = vmatmul.mubr.bf16.gmra.mxu0 %v1017
        %v1305 = vpop.f32.mrf.mxu0
        %v1306 = vadd.f32 0.0, %v1305
        %v1307 = vpop.f32.mrf.mxu0
        %v1308 = vadd.f32 0.0, %v1307
        %v1309 = vpop.f32.mrf.mxu0
        %v1310 = vadd.f32 0.0, %v1309
        %v1311 = vpop.f32.mrf.mxu0
        %v1312 = vadd.f32 0.0, %v1311
        %1313 = vmatprep.mubr.bf16.mxu0 0
        %1314 = vmatmul.mubr.bf16.gmra.mxu0 %v1020
        %v1315 = vpop.f32.mrf.mxu0
        %v1316 = vadd.f32 0.0, %v1315
        %v1317 = vpop.f32.mrf.mxu0
        %v1318 = vadd.f32 0.0, %v1317
        %v1319 = vpop.f32.mrf.mxu0
        %v1320 = vadd.f32 0.0, %v1319
        %v1321 = vpop.f32.mrf.mxu0
        %v1322 = vadd.f32 0.0, %v1321
        %1323 = vmatprep.mubr.bf16.mxu0 0
        %1324 = vmatmul.mubr.bf16.gmra.mxu0 %v1023
        %v1325 = vpop.f32.mrf.mxu0
        %v1326 = vadd.f32 0.0, %v1325
        %v1327 = vpop.f32.mrf.mxu0
        %v1328 = vadd.f32 0.0, %v1327
        %v1329 = vpop.f32.mrf.mxu0
        %v1330 = vadd.f32 0.0, %v1329
        %v1331 = vpop.f32.mrf.mxu0
        %v1332 = vadd.f32 0.0, %v1331
        %1333 = vmatprep.mubr.bf16.mxu0 0
        %1334 = vmatmul.mubr.bf16.gmra.mxu0 %v1026
        %v1335 = vpop.f32.mrf.mxu0
        %v1336 = vadd.f32 0.0, %v1335
        %v1337 = vpop.f32.mrf.mxu0
        %v1338 = vadd.f32 0.0, %v1337
        %v1339 = vpop.f32.mrf.mxu0
        %v1340 = vadd.f32 0.0, %v1339
        %v1341 = vpop.f32.mrf.mxu0
        %v1342 = vadd.f32 0.0, %v1341
        %1343 = vmatprep.mubr.bf16.mxu0 0
        %1344 = vmatmul.mubr.bf16.gmra.mxu0 %v1029
        %v1345 = vpop.f32.mrf.mxu0
        %v1346 = vadd.f32 0.0, %v1345
        %v1347 = vpop.f32.mrf.mxu0
        %v1348 = vadd.f32 0.0, %v1347
        %v1349 = vpop.f32.mrf.mxu0
        %v1350 = vadd.f32 0.0, %v1349
        %v1351 = vpop.f32.mrf.mxu0
        %v1352 = vadd.f32 0.0, %v1351
        %1353 = vmatprep.mubr.bf16.mxu0 0
        %1354 = vmatmul.mubr.bf16.gmra.mxu0 %v1032
        %v1355 = vpop.f32.mrf.mxu0
        %v1356 = vadd.f32 0.0, %v1355
        %v1357 = vpop.f32.mrf.mxu0
        %v1358 = vadd.f32 0.0, %v1357
        %v1359 = vpop.f32.mrf.mxu0
        %v1360 = vadd.f32 0.0, %v1359
        %v1361 = vpop.f32.mrf.mxu0
        %v1362 = vadd.f32 0.0, %v1361
        %1363 = vmatprep.mubr.bf16.mxu0 0
        %1364 = vmatmul.mubr.bf16.gmra.mxu0 %v1035
        %v1365 = vpop.f32.mrf.mxu0
        %v1366 = vadd.f32 0.0, %v1365
        %v1367 = vpop.f32.mrf.mxu0
        %v1368 = vadd.f32 0.0, %v1367
        %v1369 = vpop.f32.mrf.mxu0
        %v1370 = vadd.f32 0.0, %v1369
        %v1371 = vpop.f32.mrf.mxu0
        %v1372 = vadd.f32 0.0, %v1371
        %1373 = vmatprep.mubr.bf16.mxu0 0
        %1374 = vmatmul.mubr.bf16.gmra.mxu0 %v1038
        %v1375 = vpop.f32.mrf.mxu0
        %v1376 = vadd.f32 0.0, %v1375
        %v1377 = vpop.f32.mrf.mxu0
        %v1378 = vadd.f32 0.0, %v1377
        %v1379 = vpop.f32.mrf.mxu0
        %v1380 = vadd.f32 0.0, %v1379
        %v1381 = vpop.f32.mrf.mxu0
        %v1382 = vadd.f32 0.0, %v1381
        %1383 = vmatprep.mubr.bf16.mxu0 0
        %1384 = vmatmul.mubr.bf16.gmra.mxu0 %v1041
        %v1385 = vpop.f32.mrf.mxu0
        %v1386 = vadd.f32 0.0, %v1385
        %v1387 = vpop.f32.mrf.mxu0
        %v1388 = vadd.f32 0.0, %v1387
        %v1389 = vpop.f32.mrf.mxu0
        %v1390 = vadd.f32 0.0, %v1389
        %v1391 = vpop.f32.mrf.mxu0
        %v1392 = vadd.f32 0.0, %v1391
        %1393 = vmatprep.mubr.bf16.mxu0 0
        %1394 = vmatmul.mubr.bf16.gmra.mxu0 %v1044
        %v1395 = vpop.f32.mrf.mxu0
        %v1396 = vadd.f32 0.0, %v1395
        %v1397 = vpop.f32.mrf.mxu0
        %v1398 = vadd.f32 0.0, %v1397
        %v1399 = vpop.f32.mrf.mxu0
        %v1400 = vadd.f32 0.0, %v1399
        %v1401 = vpop.f32.mrf.mxu0
        %v1402 = vadd.f32 0.0, %v1401
        %1403 = vmatprep.mubr.bf16.mxu0 0
        %1404 = vmatmul.mubr.bf16.gmra.mxu0 %v1047
        %v1405 = vpop.f32.mrf.mxu0
        %v1406 = vadd.f32 0.0, %v1405
        %v1407 = vpop.f32.mrf.mxu0
        %v1408 = vadd.f32 0.0, %v1407
        %v1409 = vpop.f32.mrf.mxu0
        %v1410 = vadd.f32 0.0, %v1409
        %v1411 = vpop.f32.mrf.mxu0
        %v1412 = vadd.f32 0.0, %v1411
        %1413 = vmatprep.mubr.bf16.mxu0 0
        %1414 = vmatmul.mubr.bf16.gmra.mxu0 %v1050
        %v1415 = vpop.f32.mrf.mxu0
        %v1416 = vadd.f32 0.0, %v1415
        %v1417 = vpop.f32.mrf.mxu0
        %v1418 = vadd.f32 0.0, %v1417
        %v1419 = vpop.f32.mrf.mxu0
        %v1420 = vadd.f32 0.0, %v1419
        %v1421 = vpop.f32.mrf.mxu0
        %v1422 = vadd.f32 0.0, %v1421
        %1423 = vmatprep.mubr.bf16.mxu0 0
        %1424 = vmatmul.mubr.bf16.gmra.mxu0 %v1053
        %v1425 = vpop.f32.mrf.mxu0
        %v1426 = vadd.f32 0.0, %v1425
        %v1427 = vpop.f32.mrf.mxu0
        %v1428 = vadd.f32 0.0, %v1427
        %v1429 = vpop.f32.mrf.mxu0
        %v1430 = vadd.f32 0.0, %v1429
        %v1431 = vpop.f32.mrf.mxu0
        %v1432 = vadd.f32 0.0, %v1431
        %1433 = vmatprep.mubr.bf16.mxu0 0
        %1434 = vmatmul.mubr.bf16.gmra.mxu0 %v1056
        %v1435 = vpop.f32.mrf.mxu0
        %v1436 = vadd.f32 0.0, %v1435
        %v1437 = vpop.f32.mrf.mxu0
        %v1438 = vadd.f32 0.0, %v1437
        %v1439 = vpop.f32.mrf.mxu0
        %v1440 = vadd.f32 0.0, %v1439
        %v1441 = vpop.f32.mrf.mxu0
        %v1442 = vadd.f32 0.0, %v1441
        %1443 = vdwg.mxu0
        %1444 = vmatprep.subr.bf16.mxu0 0
        %1445 = vmatpush1.bf16.msra.mxu0 0
        %1446 = vmatprep.subr.bf16.mxu0 0
        %1447 = vmatpush1.bf16.msra.mxu0 0
        %1448 = vmatprep.subr.bf16.mxu0 0
        %1449 = vmatpush1.bf16.msra.mxu0 0
        %1450 = vmatprep.subr.bf16.mxu0 0
        %1451 = vmatpush1.bf16.msra.mxu0 0
        %1452 = vmatprep.subr.bf16.mxu0 0
        %1453 = vmatpush1.bf16.msra.mxu0 0
        %1454 = vmatprep.subr.bf16.mxu0 0
        %1455 = vmatpush1.bf16.msra.mxu0 0
        %1456 = vmatprep.subr.bf16.mxu0 %v990
        %1457 = vmatpush1.bf16.msra.mxu0 %v989
        %1458 = vmatprep.subr.bf16.mxu0 %v982
        %1459 = vmatpush1.bf16.msra.mxu0 %v981
        %1460 = vmatprep.subr.bf16.mxu0 0
        %1461 = vmatpush2.bf16.msra.mxu0 0
        %1462 = vmatprep.subr.bf16.mxu0 0
        %1463 = vmatpush2.bf16.msra.mxu0 0
        %1464 = vmatprep.subr.bf16.mxu0 0
        %1465 = vmatpush2.bf16.msra.mxu0 0
        %1466 = vmatprep.subr.bf16.mxu0 0
        %1467 = vmatpush2.bf16.msra.mxu0 0
        %1468 = vmatprep.subr.bf16.mxu0 0
        %1469 = vmatpush2.bf16.msra.mxu0 0
        %1470 = vmatprep.subr.bf16.mxu0 0
        %1471 = vmatpush2.bf16.msra.mxu0 0
        %1472 = vmatprep.subr.bf16.mxu0 0
        %1473 = vmatpush2.bf16.msra.mxu0 0
        %1474 = vmatprep.subr.bf16.mxu0 0
        %1475 = vmatpush2.bf16.msra.mxu0 0
        %1476 = vmatprep.mubr.bf16.mxu0 0
        %1477 = vmatmul.mubr.bf16.gmra.mxu0 %v1011
        %v1478 = vpop.f32.mrf.mxu0
        %v1479 = vadd.f32 0.0, %v1478
        %v1480 = vpop.f32.mrf.mxu0
        %v1481 = vadd.f32 0.0, %v1480
        %v1482 = vpop.f32.mrf.mxu0
        %v1483 = vadd.f32 0.0, %v1482
        %v1484 = vpop.f32.mrf.mxu0
        %v1485 = vadd.f32 0.0, %v1484
        %1486 = vmatprep.mubr.bf16.mxu0 0
        %1487 = vmatmul.mubr.bf16.gmra.mxu0 %v1014
        %v1488 = vpop.f32.mrf.mxu0
        %v1489 = vadd.f32 0.0, %v1488
        %v1490 = vpop.f32.mrf.mxu0
        %v1491 = vadd.f32 0.0, %v1490
        %v1492 = vpop.f32.mrf.mxu0
        %v1493 = vadd.f32 0.0, %v1492
        %v1494 = vpop.f32.mrf.mxu0
        %v1495 = vadd.f32 0.0, %v1494
        %1496 = vmatprep.mubr.bf16.mxu0 0
        %1497 = vmatmul.mubr.bf16.gmra.mxu0 %v1017
        %v1498 = vpop.f32.mrf.mxu0
        %v1499 = vadd.f32 0.0, %v1498
        %v1500 = vpop.f32.mrf.mxu0
        %v1501 = vadd.f32 0.0, %v1500
        %v1502 = vpop.f32.mrf.mxu0
        %v1503 = vadd.f32 0.0, %v1502
        %v1504 = vpop.f32.mrf.mxu0
        %v1505 = vadd.f32 0.0, %v1504
        %1506 = vmatprep.mubr.bf16.mxu0 0
        %1507 = vmatmul.mubr.bf16.gmra.mxu0 %v1020
        %v1508 = vpop.f32.mrf.mxu0
        %v1509 = vadd.f32 0.0, %v1508
        %v1510 = vpop.f32.mrf.mxu0
        %v1511 = vadd.f32 0.0, %v1510
        %v1512 = vpop.f32.mrf.mxu0
        %v1513 = vadd.f32 0.0, %v1512
        %v1514 = vpop.f32.mrf.mxu0
        %v1515 = vadd.f32 0.0, %v1514
        %1516 = vmatprep.mubr.bf16.mxu0 0
        %1517 = vmatmul.mubr.bf16.gmra.mxu0 %v1023
        %v1518 = vpop.f32.mrf.mxu0
        %v1519 = vadd.f32 0.0, %v1518
        %v1520 = vpop.f32.mrf.mxu0
        %v1521 = vadd.f32 0.0, %v1520
        %v1522 = vpop.f32.mrf.mxu0
        %v1523 = vadd.f32 0.0, %v1522
        %v1524 = vpop.f32.mrf.mxu0
        %v1525 = vadd.f32 0.0, %v1524
        %1526 = vmatprep.mubr.bf16.mxu0 0
        %1527 = vmatmul.mubr.bf16.gmra.mxu0 %v1026
        %v1528 = vpop.f32.mrf.mxu0
        %v1529 = vadd.f32 0.0, %v1528
        %v1530 = vpop.f32.mrf.mxu0
        %v1531 = vadd.f32 0.0, %v1530
        %v1532 = vpop.f32.mrf.mxu0
        %v1533 = vadd.f32 0.0, %v1532
        %v1534 = vpop.f32.mrf.mxu0
        %v1535 = vadd.f32 0.0, %v1534
        %1536 = vmatprep.mubr.bf16.mxu0 0
        %1537 = vmatmul.mubr.bf16.gmra.mxu0 %v1029
        %v1538 = vpop.f32.mrf.mxu0
        %v1539 = vadd.f32 0.0, %v1538
        %v1540 = vpop.f32.mrf.mxu0
        %v1541 = vadd.f32 0.0, %v1540
        %v1542 = vpop.f32.mrf.mxu0
        %v1543 = vadd.f32 0.0, %v1542
        %v1544 = vpop.f32.mrf.mxu0
        %v1545 = vadd.f32 0.0, %v1544
        %1546 = vmatprep.mubr.bf16.mxu0 0
        %1547 = vmatmul.mubr.bf16.gmra.mxu0 %v1032
        %v1548 = vpop.f32.mrf.mxu0
        %v1549 = vadd.f32 0.0, %v1548
        %v1550 = vpop.f32.mrf.mxu0
        %v1551 = vadd.f32 0.0, %v1550
        %v1552 = vpop.f32.mrf.mxu0
        %v1553 = vadd.f32 0.0, %v1552
        %v1554 = vpop.f32.mrf.mxu0
        %v1555 = vadd.f32 0.0, %v1554
        %1556 = vmatprep.mubr.bf16.mxu0 0
        %1557 = vmatmul.mubr.bf16.gmra.mxu0 %v1035
        %v1558 = vpop.f32.mrf.mxu0
        %v1559 = vadd.f32 0.0, %v1558
        %v1560 = vpop.f32.mrf.mxu0
        %v1561 = vadd.f32 0.0, %v1560
        %v1562 = vpop.f32.mrf.mxu0
        %v1563 = vadd.f32 0.0, %v1562
        %v1564 = vpop.f32.mrf.mxu0
        %v1565 = vadd.f32 0.0, %v1564
        %1566 = vmatprep.mubr.bf16.mxu0 0
        %1567 = vmatmul.mubr.bf16.gmra.mxu0 %v1038
        %v1568 = vpop.f32.mrf.mxu0
        %v1569 = vadd.f32 0.0, %v1568
        %v1570 = vpop.f32.mrf.mxu0
        %v1571 = vadd.f32 0.0, %v1570
        %v1572 = vpop.f32.mrf.mxu0
        %v1573 = vadd.f32 0.0, %v1572
        %v1574 = vpop.f32.mrf.mxu0
        %v1575 = vadd.f32 0.0, %v1574
        %1576 = vmatprep.mubr.bf16.mxu0 0
        %1577 = vmatmul.mubr.bf16.gmra.mxu0 %v1041
        %v1578 = vpop.f32.mrf.mxu0
        %v1579 = vadd.f32 0.0, %v1578
        %v1580 = vpop.f32.mrf.mxu0
        %v1581 = vadd.f32 0.0, %v1580
        %v1582 = vpop.f32.mrf.mxu0
        %v1583 = vadd.f32 0.0, %v1582
        %v1584 = vpop.f32.mrf.mxu0
        %v1585 = vadd.f32 0.0, %v1584
        %1586 = vmatprep.mubr.bf16.mxu0 0
        %1587 = vmatmul.mubr.bf16.gmra.mxu0 %v1044
        %v1588 = vpop.f32.mrf.mxu0
        %v1589 = vadd.f32 0.0, %v1588
        %v1590 = vpop.f32.mrf.mxu0
        %v1591 = vadd.f32 0.0, %v1590
        %v1592 = vpop.f32.mrf.mxu0
        %v1593 = vadd.f32 0.0, %v1592
        %v1594 = vpop.f32.mrf.mxu0
        %v1595 = vadd.f32 0.0, %v1594
        %1596 = vmatprep.mubr.bf16.mxu0 0
        %1597 = vmatmul.mubr.bf16.gmra.mxu0 %v1047
        %v1598 = vpop.f32.mrf.mxu0
        %v1599 = vadd.f32 0.0, %v1598
        %v1600 = vpop.f32.mrf.mxu0
        %v1601 = vadd.f32 0.0, %v1600
        %v1602 = vpop.f32.mrf.mxu0
        %v1603 = vadd.f32 0.0, %v1602
        %v1604 = vpop.f32.mrf.mxu0
        %v1605 = vadd.f32 0.0, %v1604
        %1606 = vmatprep.mubr.bf16.mxu0 0
        %1607 = vmatmul.mubr.bf16.gmra.mxu0 %v1050
        %v1608 = vpop.f32.mrf.mxu0
        %v1609 = vadd.f32 0.0, %v1608
        %v1610 = vpop.f32.mrf.mxu0
        %v1611 = vadd.f32 0.0, %v1610
        %v1612 = vpop.f32.mrf.mxu0
        %v1613 = vadd.f32 0.0, %v1612
        %v1614 = vpop.f32.mrf.mxu0
        %v1615 = vadd.f32 0.0, %v1614
        %1616 = vmatprep.mubr.bf16.mxu0 0
        %1617 = vmatmul.mubr.bf16.gmra.mxu0 %v1053
        %v1618 = vpop.f32.mrf.mxu0
        %v1619 = vadd.f32 0.0, %v1618
        %v1620 = vpop.f32.mrf.mxu0
        %v1621 = vadd.f32 0.0, %v1620
        %v1622 = vpop.f32.mrf.mxu0
        %v1623 = vadd.f32 0.0, %v1622
        %v1624 = vpop.f32.mrf.mxu0
        %v1625 = vadd.f32 0.0, %v1624
        %1626 = vmatprep.mubr.bf16.mxu0 0
        %1627 = vmatmul.mubr.bf16.gmra.mxu0 %v1056
        %v1628 = vpop.f32.mrf.mxu0
        %v1629 = vadd.f32 0.0, %v1628
        %v1630 = vpop.f32.mrf.mxu0
        %v1631 = vadd.f32 0.0, %v1630
        %v1632 = vpop.f32.mrf.mxu0
        %v1633 = vadd.f32 0.0, %v1632
        %v1634 = vpop.f32.mrf.mxu0
        %v1635 = vadd.f32 0.0, %v1634
        %1636 = vdwg.mxu0
        %1637 = vmatprep.subr.bf16.mxu0 0
        %1638 = vmatpush1.bf16.msra.mxu0 0
        %1639 = vmatprep.subr.bf16.mxu0 0
        %1640 = vmatpush1.bf16.msra.mxu0 0
        %1641 = vmatprep.subr.bf16.mxu0 0
        %1642 = vmatpush1.bf16.msra.mxu0 0
        %1643 = vmatprep.subr.bf16.mxu0 0
        %1644 = vmatpush1.bf16.msra.mxu0 0
        %1645 = vmatprep.subr.bf16.mxu0 0
        %1646 = vmatpush1.bf16.msra.mxu0 0
        %1647 = vmatprep.subr.bf16.mxu0 0
        %1648 = vmatpush1.bf16.msra.mxu0 0
        %1649 = vmatprep.subr.bf16.mxu0 %v992
        %1650 = vmatpush1.bf16.msra.mxu0 %v991
        %1651 = vmatprep.subr.bf16.mxu0 %v984
        %1652 = vmatpush1.bf16.msra.mxu0 %v983
        %1653 = vmatprep.subr.bf16.mxu0 0
        %1654 = vmatpush2.bf16.msra.mxu0 0
        %1655 = vmatprep.subr.bf16.mxu0 0
        %1656 = vmatpush2.bf16.msra.mxu0 0
        %1657 = vmatprep.subr.bf16.mxu0 0
        %1658 = vmatpush2.bf16.msra.mxu0 0
        %1659 = vmatprep.subr.bf16.mxu0 0
        %1660 = vmatpush2.bf16.msra.mxu0 0
        %1661 = vmatprep.subr.bf16.mxu0 0
        %1662 = vmatpush2.bf16.msra.mxu0 0
        %1663 = vmatprep.subr.bf16.mxu0 0
        %1664 = vmatpush2.bf16.msra.mxu0 0
        %1665 = vmatprep.subr.bf16.mxu0 0
        %1666 = vmatpush2.bf16.msra.mxu0 0
        %1667 = vmatprep.subr.bf16.mxu0 0
        %1668 = vmatpush2.bf16.msra.mxu0 0
        %1669 = vmatprep.mubr.bf16.mxu0 0
        %1670 = vmatmul.mubr.bf16.gmra.mxu0 %v1011
        %v1671 = vpop.f32.mrf.mxu0
        %v1672 = vadd.f32 0.0, %v1671
        %v1673 = vpop.f32.mrf.mxu0
        %v1674 = vadd.f32 0.0, %v1673
        %v1675 = vpop.f32.mrf.mxu0
        %v1676 = vadd.f32 0.0, %v1675
        %v1677 = vpop.f32.mrf.mxu0
        %v1678 = vadd.f32 0.0, %v1677
        %1679 = vmatprep.mubr.bf16.mxu0 0
        %1680 = vmatmul.mubr.bf16.gmra.mxu0 %v1014
        %v1681 = vpop.f32.mrf.mxu0
        %v1682 = vadd.f32 0.0, %v1681
        %v1683 = vpop.f32.mrf.mxu0
        %v1684 = vadd.f32 0.0, %v1683
        %v1685 = vpop.f32.mrf.mxu0
        %v1686 = vadd.f32 0.0, %v1685
        %v1687 = vpop.f32.mrf.mxu0
        %v1688 = vadd.f32 0.0, %v1687
        %1689 = vmatprep.mubr.bf16.mxu0 0
        %1690 = vmatmul.mubr.bf16.gmra.mxu0 %v1017
        %v1691 = vpop.f32.mrf.mxu0
        %v1692 = vadd.f32 0.0, %v1691
        %v1693 = vpop.f32.mrf.mxu0
        %v1694 = vadd.f32 0.0, %v1693
        %v1695 = vpop.f32.mrf.mxu0
        %v1696 = vadd.f32 0.0, %v1695
        %v1697 = vpop.f32.mrf.mxu0
        %v1698 = vadd.f32 0.0, %v1697
        %1699 = vmatprep.mubr.bf16.mxu0 0
        %1700 = vmatmul.mubr.bf16.gmra.mxu0 %v1020
        %v1701 = vpop.f32.mrf.mxu0
        %v1702 = vadd.f32 0.0, %v1701
        %v1703 = vpop.f32.mrf.mxu0
        %v1704 = vadd.f32 0.0, %v1703
        %v1705 = vpop.f32.mrf.mxu0
        %v1706 = vadd.f32 0.0, %v1705
        %v1707 = vpop.f32.mrf.mxu0
        %v1708 = vadd.f32 0.0, %v1707
        %1709 = vmatprep.mubr.bf16.mxu0 0
        %1710 = vmatmul.mubr.bf16.gmra.mxu0 %v1023
        %v1711 = vpop.f32.mrf.mxu0
        %v1712 = vadd.f32 0.0, %v1711
        %v1713 = vpop.f32.mrf.mxu0
        %v1714 = vadd.f32 0.0, %v1713
        %v1715 = vpop.f32.mrf.mxu0
        %v1716 = vadd.f32 0.0, %v1715
        %v1717 = vpop.f32.mrf.mxu0
        %v1718 = vadd.f32 0.0, %v1717
        %1719 = vmatprep.mubr.bf16.mxu0 0
        %1720 = vmatmul.mubr.bf16.gmra.mxu0 %v1026
        %v1721 = vpop.f32.mrf.mxu0
        %v1722 = vadd.f32 0.0, %v1721
        %v1723 = vpop.f32.mrf.mxu0
        %v1724 = vadd.f32 0.0, %v1723
        %v1725 = vpop.f32.mrf.mxu0
        %v1726 = vadd.f32 0.0, %v1725
        %v1727 = vpop.f32.mrf.mxu0
        %v1728 = vadd.f32 0.0, %v1727
        %1729 = vmatprep.mubr.bf16.mxu0 0
        %1730 = vmatmul.mubr.bf16.gmra.mxu0 %v1029
        %v1731 = vpop.f32.mrf.mxu0
        %v1732 = vadd.f32 0.0, %v1731
        %v1733 = vpop.f32.mrf.mxu0
        %v1734 = vadd.f32 0.0, %v1733
        %v1735 = vpop.f32.mrf.mxu0
        %v1736 = vadd.f32 0.0, %v1735
        %v1737 = vpop.f32.mrf.mxu0
        %v1738 = vadd.f32 0.0, %v1737
        %1739 = vmatprep.mubr.bf16.mxu0 0
        %1740 = vmatmul.mubr.bf16.gmra.mxu0 %v1032
        %v1741 = vpop.f32.mrf.mxu0
        %v1742 = vadd.f32 0.0, %v1741
        %v1743 = vpop.f32.mrf.mxu0
        %v1744 = vadd.f32 0.0, %v1743
        %v1745 = vpop.f32.mrf.mxu0
        %v1746 = vadd.f32 0.0, %v1745
        %v1747 = vpop.f32.mrf.mxu0
        %v1748 = vadd.f32 0.0, %v1747
        %1749 = vmatprep.mubr.bf16.mxu0 0
        %1750 = vmatmul.mubr.bf16.gmra.mxu0 %v1035
        %v1751 = vpop.f32.mrf.mxu0
        %v1752 = vadd.f32 0.0, %v1751
        %v1753 = vpop.f32.mrf.mxu0
        %v1754 = vadd.f32 0.0, %v1753
        %v1755 = vpop.f32.mrf.mxu0
        %v1756 = vadd.f32 0.0, %v1755
        %v1757 = vpop.f32.mrf.mxu0
        %v1758 = vadd.f32 0.0, %v1757
        %1759 = vmatprep.mubr.bf16.mxu0 0
        %1760 = vmatmul.mubr.bf16.gmra.mxu0 %v1038
        %v1761 = vpop.f32.mrf.mxu0
        %v1762 = vadd.f32 0.0, %v1761
        %v1763 = vpop.f32.mrf.mxu0
        %v1764 = vadd.f32 0.0, %v1763
        %v1765 = vpop.f32.mrf.mxu0
        %v1766 = vadd.f32 0.0, %v1765
        %v1767 = vpop.f32.mrf.mxu0
        %v1768 = vadd.f32 0.0, %v1767
        %1769 = vmatprep.mubr.bf16.mxu0 0
        %1770 = vmatmul.mubr.bf16.gmra.mxu0 %v1041
        %v1771 = vpop.f32.mrf.mxu0
        %v1772 = vadd.f32 0.0, %v1771
        %v1773 = vpop.f32.mrf.mxu0
        %v1774 = vadd.f32 0.0, %v1773
        %v1775 = vpop.f32.mrf.mxu0
        %v1776 = vadd.f32 0.0, %v1775
        %v1777 = vpop.f32.mrf.mxu0
        %v1778 = vadd.f32 0.0, %v1777
        %1779 = vmatprep.mubr.bf16.mxu0 0
        %1780 = vmatmul.mubr.bf16.gmra.mxu0 %v1044
        %v1781 = vpop.f32.mrf.mxu0
        %v1782 = vadd.f32 0.0, %v1781
        %v1783 = vpop.f32.mrf.mxu0
        %v1784 = vadd.f32 0.0, %v1783
        %v1785 = vpop.f32.mrf.mxu0
        %v1786 = vadd.f32 0.0, %v1785
        %v1787 = vpop.f32.mrf.mxu0
        %v1788 = vadd.f32 0.0, %v1787
        %1789 = vmatprep.mubr.bf16.mxu0 0
        %1790 = vmatmul.mubr.bf16.gmra.mxu0 %v1047
        %v1791 = vpop.f32.mrf.mxu0
        %v1792 = vadd.f32 0.0, %v1791
        %v1793 = vpop.f32.mrf.mxu0
        %v1794 = vadd.f32 0.0, %v1793
        %v1795 = vpop.f32.mrf.mxu0
        %v1796 = vadd.f32 0.0, %v1795
        %v1797 = vpop.f32.mrf.mxu0
        %v1798 = vadd.f32 0.0, %v1797
        %1799 = vmatprep.mubr.bf16.mxu0 0
        %1800 = vmatmul.mubr.bf16.gmra.mxu0 %v1050
        %v1801 = vpop.f32.mrf.mxu0
        %v1802 = vadd.f32 0.0, %v1801
        %v1803 = vpop.f32.mrf.mxu0
        %v1804 = vadd.f32 0.0, %v1803
        %v1805 = vpop.f32.mrf.mxu0
        %v1806 = vadd.f32 0.0, %v1805
        %v1807 = vpop.f32.mrf.mxu0
        %v1808 = vadd.f32 0.0, %v1807
        %1809 = vmatprep.mubr.bf16.mxu0 0
        %1810 = vmatmul.mubr.bf16.gmra.mxu0 %v1053
        %v1811 = vpop.f32.mrf.mxu0
        %v1812 = vadd.f32 0.0, %v1811
        %v1813 = vpop.f32.mrf.mxu0
        %v1814 = vadd.f32 0.0, %v1813
        %v1815 = vpop.f32.mrf.mxu0
        %v1816 = vadd.f32 0.0, %v1815
        %v1817 = vpop.f32.mrf.mxu0
        %v1818 = vadd.f32 0.0, %v1817
        %1819 = vmatprep.mubr.bf16.mxu0 0
        %1820 = vmatmul.mubr.bf16.gmra.mxu0 %v1056
        %v1821 = vpop.f32.mrf.mxu0
        %v1822 = vadd.f32 0.0, %v1821
        %v1823 = vpop.f32.mrf.mxu0
        %v1824 = vadd.f32 0.0, %v1823
        %v1825 = vpop.f32.mrf.mxu0
        %v1826 = vadd.f32 0.0, %v1825
        %v1827 = vpop.f32.mrf.mxu0
        %v1828 = vadd.f32 0.0, %v1827
        %1829 = vdwg.mxu0
        %v1830 = vpack.c.bf16 %v1097, %v1093
        %v1831 = vpack.c.bf16 %v1099, %v1095
        %v1832 = vpack.c.bf16 %v1290, %v1286
        %v1833 = vpack.c.bf16 %v1292, %v1288
        %v1834 = vpack.c.bf16 %v1483, %v1479
        %v1835 = vpack.c.bf16 %v1485, %v1481
        %v1836 = vpack.c.bf16 %v1676, %v1672
        %v1837 = vpack.c.bf16 %v1678, %v1674
        %v1838 = vpack.c.bf16 %v1107, %v1103
        %v1839 = vpack.c.bf16 %v1109, %v1105
        %v1840 = vpack.c.bf16 %v1300, %v1296
        %v1841 = vpack.c.bf16 %v1302, %v1298
        %v1842 = vpack.c.bf16 %v1493, %v1489
        %v1843 = vpack.c.bf16 %v1495, %v1491
        %v1844 = vpack.c.bf16 %v1686, %v1682
        %v1845 = vpack.c.bf16 %v1688, %v1684
        %v1846 = vpack.c.bf16 %v1117, %v1113
        %v1847 = vpack.c.bf16 %v1119, %v1115
        %v1848 = vpack.c.bf16 %v1310, %v1306
        %v1849 = vpack.c.bf16 %v1312, %v1308
        %v1850 = vpack.c.bf16 %v1503, %v1499
        %v1851 = vpack.c.bf16 %v1505, %v1501
        %v1852 = vpack.c.bf16 %v1696, %v1692
        %v1853 = vpack.c.bf16 %v1698, %v1694
        %v1854 = vpack.c.bf16 %v1127, %v1123
        %v1855 = vpack.c.bf16 %v1129, %v1125
        %v1856 = vpack.c.bf16 %v1320, %v1316
        %v1857 = vpack.c.bf16 %v1322, %v1318
        %v1858 = vpack.c.bf16 %v1513, %v1509
        %v1859 = vpack.c.bf16 %v1515, %v1511
        %v1860 = vpack.c.bf16 %v1706, %v1702
        %v1861 = vpack.c.bf16 %v1708, %v1704
        %v1862 = vpack.c.bf16 %v1137, %v1133
        %v1863 = vpack.c.bf16 %v1139, %v1135
        %v1864 = vpack.c.bf16 %v1330, %v1326
        %v1865 = vpack.c.bf16 %v1332, %v1328
        %v1866 = vpack.c.bf16 %v1523, %v1519
        %v1867 = vpack.c.bf16 %v1525, %v1521
        %v1868 = vpack.c.bf16 %v1716, %v1712
        %v1869 = vpack.c.bf16 %v1718, %v1714
        %v1870 = vpack.c.bf16 %v1147, %v1143
        %v1871 = vpack.c.bf16 %v1149, %v1145
        %v1872 = vpack.c.bf16 %v1340, %v1336
        %v1873 = vpack.c.bf16 %v1342, %v1338
        %v1874 = vpack.c.bf16 %v1533, %v1529
        %v1875 = vpack.c.bf16 %v1535, %v1531
        %v1876 = vpack.c.bf16 %v1726, %v1722
        %v1877 = vpack.c.bf16 %v1728, %v1724
        %v1878 = vpack.c.bf16 %v1157, %v1153
        %v1879 = vpack.c.bf16 %v1159, %v1155
        %v1880 = vpack.c.bf16 %v1350, %v1346
        %v1881 = vpack.c.bf16 %v1352, %v1348
        %v1882 = vpack.c.bf16 %v1543, %v1539
        %v1883 = vpack.c.bf16 %v1545, %v1541
        %v1884 = vpack.c.bf16 %v1736, %v1732
        %v1885 = vpack.c.bf16 %v1738, %v1734
        %v1886 = vpack.c.bf16 %v1167, %v1163
        %v1887 = vpack.c.bf16 %v1169, %v1165
        %v1888 = vpack.c.bf16 %v1360, %v1356
        %v1889 = vpack.c.bf16 %v1362, %v1358
        %v1890 = vpack.c.bf16 %v1553, %v1549
        %v1891 = vpack.c.bf16 %v1555, %v1551
        %v1892 = vpack.c.bf16 %v1746, %v1742
        %v1893 = vpack.c.bf16 %v1748, %v1744
        %v1894 = vpack.c.bf16 %v1177, %v1173
        %v1895 = vpack.c.bf16 %v1179, %v1175
        %v1896 = vpack.c.bf16 %v1370, %v1366
        %v1897 = vpack.c.bf16 %v1372, %v1368
        %v1898 = vpack.c.bf16 %v1563, %v1559
        %v1899 = vpack.c.bf16 %v1565, %v1561
        %v1900 = vpack.c.bf16 %v1756, %v1752
        %v1901 = vpack.c.bf16 %v1758, %v1754
        %v1902 = vpack.c.bf16 %v1187, %v1183
        %v1903 = vpack.c.bf16 %v1189, %v1185
        %v1904 = vpack.c.bf16 %v1380, %v1376
        %v1905 = vpack.c.bf16 %v1382, %v1378
        %v1906 = vpack.c.bf16 %v1573, %v1569
        %v1907 = vpack.c.bf16 %v1575, %v1571
        %v1908 = vpack.c.bf16 %v1766, %v1762
        %v1909 = vpack.c.bf16 %v1768, %v1764
        %v1910 = vpack.c.bf16 %v1197, %v1193
        %v1911 = vpack.c.bf16 %v1199, %v1195
        %v1912 = vpack.c.bf16 %v1390, %v1386
        %v1913 = vpack.c.bf16 %v1392, %v1388
        %v1914 = vpack.c.bf16 %v1583, %v1579
        %v1915 = vpack.c.bf16 %v1585, %v1581
        %v1916 = vpack.c.bf16 %v1776, %v1772
        %v1917 = vpack.c.bf16 %v1778, %v1774
        %v1918 = vpack.c.bf16 %v1207, %v1203
        %v1919 = vpack.c.bf16 %v1209, %v1205
        %v1920 = vpack.c.bf16 %v1400, %v1396
        %v1921 = vpack.c.bf16 %v1402, %v1398
        %v1922 = vpack.c.bf16 %v1593, %v1589
        %v1923 = vpack.c.bf16 %v1595, %v1591
        %v1924 = vpack.c.bf16 %v1786, %v1782
        %v1925 = vpack.c.bf16 %v1788, %v1784
        %v1926 = vpack.c.bf16 %v1217, %v1213
        %v1927 = vpack.c.bf16 %v1219, %v1215
        %v1928 = vpack.c.bf16 %v1410, %v1406
        %v1929 = vpack.c.bf16 %v1412, %v1408
        %v1930 = vpack.c.bf16 %v1603, %v1599
        %v1931 = vpack.c.bf16 %v1605, %v1601
        %v1932 = vpack.c.bf16 %v1796, %v1792
        %v1933 = vpack.c.bf16 %v1798, %v1794
        %v1934 = vpack.c.bf16 %v1227, %v1223
        %v1935 = vpack.c.bf16 %v1229, %v1225
        %v1936 = vpack.c.bf16 %v1420, %v1416
        %v1937 = vpack.c.bf16 %v1422, %v1418
        %v1938 = vpack.c.bf16 %v1613, %v1609
        %v1939 = vpack.c.bf16 %v1615, %v1611
        %v1940 = vpack.c.bf16 %v1806, %v1802
        %v1941 = vpack.c.bf16 %v1808, %v1804
        %v1942 = vpack.c.bf16 %v1237, %v1233
        %v1943 = vpack.c.bf16 %v1239, %v1235
        %v1944 = vpack.c.bf16 %v1430, %v1426
        %v1945 = vpack.c.bf16 %v1432, %v1428
        %v1946 = vpack.c.bf16 %v1623, %v1619
        %v1947 = vpack.c.bf16 %v1625, %v1621
        %v1948 = vpack.c.bf16 %v1816, %v1812
        %v1949 = vpack.c.bf16 %v1818, %v1814
        %v1950 = vpack.c.bf16 %v1247, %v1243
        %v1951 = vpack.c.bf16 %v1249, %v1245
        %v1952 = vpack.c.bf16 %v1440, %v1436
        %v1953 = vpack.c.bf16 %v1442, %v1438
        %v1954 = vpack.c.bf16 %v1633, %v1629
        %v1955 = vpack.c.bf16 %v1635, %v1631
        %v1956 = vpack.c.bf16 %v1826, %v1822
        %v1957 = vpack.c.bf16 %v1828, %v1824
        %v1958 = vld [vmem:[%s449] sm:$0xff]
        %v1959 = vld [vmem:[%s449 + $0x8] sm:$0xff]
        %v1960 = vld [vmem:[%s449 + $0x10] sm:$0xff]
        %v1961 = vld [vmem:[%s449 + $0x18] sm:$0xff]
        %v1962 = vld [vmem:[%s449 + $0x20] sm:$0xff]
        %v1963 = vld [vmem:[%s449 + $0x28] sm:$0xff]
        %v1964 = vld [vmem:[%s449 + $0x30] sm:$0xff]
        %v1965 = vld [vmem:[%s449 + $0x38] sm:$0xff]
        %v1966 = vld [vmem:[%s449 + $0x40] sm:$0xff]
        %v1967 = vld [vmem:[%s449 + $0x48] sm:$0xff]
        %v1968 = vld [vmem:[%s449 + $0x50] sm:$0xff]
        %v1969 = vld [vmem:[%s449 + $0x58] sm:$0xff]
        %v1970 = vld [vmem:[%s449 + $0x60] sm:$0xff]
        %v1971 = vld [vmem:[%s449 + $0x68] sm:$0xff]
        %v1972 = vld [vmem:[%s449 + $0x70] sm:$0xff]
        %v1973 = vld [vmem:[%s449 + $0x78] sm:$0xff]
        %v1974 = vld [vmem:[%s449 + $0x80] sm:$0xff]
        %v1975 = vld [vmem:[%s449 + $0x88] sm:$0xff]
        %v1976 = vld [vmem:[%s449 + $0x90] sm:$0xff]
        %v1977 = vld [vmem:[%s449 + $0x98] sm:$0xff]
        %v1978 = vld [vmem:[%s449 + $0xa0] sm:$0xff]
        %v1979 = vld [vmem:[%s449 + $0xa8] sm:$0xff]
        %v1980 = vld [vmem:[%s449 + $0xb0] sm:$0xff]
        %v1981 = vld [vmem:[%s449 + $0xb8] sm:$0xff]
        %v1982 = vld [vmem:[%s449 + $0xc0] sm:$0xff]
        %v1983 = vld [vmem:[%s449 + $0xc8] sm:$0xff]
        %v1984 = vld [vmem:[%s449 + $0xd0] sm:$0xff]
        %v1985 = vld [vmem:[%s449 + $0xd8] sm:$0xff]
        %v1986 = vld [vmem:[%s449 + $0xe0] sm:$0xff]
        %v1987 = vld [vmem:[%s449 + $0xe8] sm:$0xff]
        %v1988 = vld [vmem:[%s449 + $0xf0] sm:$0xff]
        %v1989 = vld [vmem:[%s449 + $0xf8] sm:$0xff]
        %v1990 = vld [vmem:[%s449 + $0x100] sm:$0xff]
        %v1991 = vld [vmem:[%s449 + $0x108] sm:$0xff]
        %v1992 = vld [vmem:[%s449 + $0x110] sm:$0xff]
        %v1993 = vld [vmem:[%s449 + $0x118] sm:$0xff]
        %v1994 = vld [vmem:[%s449 + $0x120] sm:$0xff]
        %v1995 = vld [vmem:[%s449 + $0x128] sm:$0xff]
        %v1996 = vld [vmem:[%s449 + $0x130] sm:$0xff]
        %v1997 = vld [vmem:[%s449 + $0x138] sm:$0xff]
        %v1998 = vld [vmem:[%s449 + $0x140] sm:$0xff]
        %v1999 = vld [vmem:[%s449 + $0x148] sm:$0xff]
        %v2000 = vld [vmem:[%s449 + $0x150] sm:$0xff]
        %v2001 = vld [vmem:[%s449 + $0x158] sm:$0xff]
        %v2002 = vld [vmem:[%s449 + $0x160] sm:$0xff]
        %v2003 = vld [vmem:[%s449 + $0x168] sm:$0xff]
        %v2004 = vld [vmem:[%s449 + $0x170] sm:$0xff]
        %v2005 = vld [vmem:[%s449 + $0x178] sm:$0xff]
        %v2006 = vld [vmem:[%s449 + $0x180] sm:$0xff]
        %v2007 = vld [vmem:[%s449 + $0x188] sm:$0xff]
        %v2008 = vld [vmem:[%s449 + $0x190] sm:$0xff]
        %v2009 = vld [vmem:[%s449 + $0x198] sm:$0xff]
        %v2010 = vld [vmem:[%s449 + $0x1a0] sm:$0xff]
        %v2011 = vld [vmem:[%s449 + $0x1a8] sm:$0xff]
        %v2012 = vld [vmem:[%s449 + $0x1b0] sm:$0xff]
        %v2013 = vld [vmem:[%s449 + $0x1b8] sm:$0xff]
        %v2014 = vld [vmem:[%s449 + $0x1c0] sm:$0xff]
        %v2015 = vld [vmem:[%s449 + $0x1c8] sm:$0xff]
        %v2016 = vld [vmem:[%s449 + $0x1d0] sm:$0xff]
        %v2017 = vld [vmem:[%s449 + $0x1d8] sm:$0xff]
        %v2018 = vld [vmem:[%s449 + $0x1e0] sm:$0xff]
        %v2019 = vld [vmem:[%s449 + $0x1e8] sm:$0xff]
        %v2020 = vld [vmem:[%s449 + $0x1f0] sm:$0xff]
        %v2021 = vld [vmem:[%s449 + $0x1f8] sm:$0xff]
        %v2022 = vld [vmem:[%s449 + $0x200] sm:$0xff]
        %v2023 = vld [vmem:[%s449 + $0x208] sm:$0xff]
        %v2024 = vld [vmem:[%s449 + $0x210] sm:$0xff]
        %v2025 = vld [vmem:[%s449 + $0x218] sm:$0xff]
        %v2026 = vld [vmem:[%s449 + $0x220] sm:$0xff]
        %v2027 = vld [vmem:[%s449 + $0x228] sm:$0xff]
        %v2028 = vld [vmem:[%s449 + $0x230] sm:$0xff]
        %v2029 = vld [vmem:[%s449 + $0x238] sm:$0xff]
        %v2030 = vld [vmem:[%s449 + $0x240] sm:$0xff]
        %v2031 = vld [vmem:[%s449 + $0x248] sm:$0xff]
        %v2032 = vld [vmem:[%s449 + $0x250] sm:$0xff]
        %v2033 = vld [vmem:[%s449 + $0x258] sm:$0xff]
        %v2034 = vld [vmem:[%s449 + $0x260] sm:$0xff]
        %v2035 = vld [vmem:[%s449 + $0x268] sm:$0xff]
        %v2036 = vld [vmem:[%s449 + $0x270] sm:$0xff]
        %v2037 = vld [vmem:[%s449 + $0x278] sm:$0xff]
        %v2038 = vld [vmem:[%s449 + $0x280] sm:$0xff]
        %v2039 = vld [vmem:[%s449 + $0x288] sm:$0xff]
        %v2040 = vld [vmem:[%s449 + $0x290] sm:$0xff]
        %v2041 = vld [vmem:[%s449 + $0x298] sm:$0xff]
        %v2042 = vld [vmem:[%s449 + $0x2a0] sm:$0xff]
        %v2043 = vld [vmem:[%s449 + $0x2a8] sm:$0xff]
        %v2044 = vld [vmem:[%s449 + $0x2b0] sm:$0xff]
        %v2045 = vld [vmem:[%s449 + $0x2b8] sm:$0xff]
        %v2046 = vld [vmem:[%s449 + $0x2c0] sm:$0xff]
        %v2047 = vld [vmem:[%s449 + $0x2c8] sm:$0xff]
        %v2048 = vld [vmem:[%s449 + $0x2d0] sm:$0xff]
        %v2049 = vld [vmem:[%s449 + $0x2d8] sm:$0xff]
        %v2050 = vld [vmem:[%s449 + $0x2e0] sm:$0xff]
        %v2051 = vld [vmem:[%s449 + $0x2e8] sm:$0xff]
        %v2052 = vld [vmem:[%s449 + $0x2f0] sm:$0xff]
        %v2053 = vld [vmem:[%s449 + $0x2f8] sm:$0xff]
        %v2054 = vld [vmem:[%s449 + $0x300] sm:$0xff]
        %v2055 = vld [vmem:[%s449 + $0x308] sm:$0xff]
        %v2056 = vld [vmem:[%s449 + $0x310] sm:$0xff]
        %v2057 = vld [vmem:[%s449 + $0x318] sm:$0xff]
        %v2058 = vld [vmem:[%s449 + $0x320] sm:$0xff]
        %v2059 = vld [vmem:[%s449 + $0x328] sm:$0xff]
        %v2060 = vld [vmem:[%s449 + $0x330] sm:$0xff]
        %v2061 = vld [vmem:[%s449 + $0x338] sm:$0xff]
        %v2062 = vld [vmem:[%s449 + $0x340] sm:$0xff]
        %v2063 = vld [vmem:[%s449 + $0x348] sm:$0xff]
        %v2064 = vld [vmem:[%s449 + $0x350] sm:$0xff]
        %v2065 = vld [vmem:[%s449 + $0x358] sm:$0xff]
        %v2066 = vld [vmem:[%s449 + $0x360] sm:$0xff]
        %v2067 = vld [vmem:[%s449 + $0x368] sm:$0xff]
        %v2068 = vld [vmem:[%s449 + $0x370] sm:$0xff]
        %v2069 = vld [vmem:[%s449 + $0x378] sm:$0xff]
        %v2070 = vld [vmem:[%s449 + $0x380] sm:$0xff]
        %v2071 = vld [vmem:[%s449 + $0x388] sm:$0xff]
        %v2072 = vld [vmem:[%s449 + $0x390] sm:$0xff]
        %v2073 = vld [vmem:[%s449 + $0x398] sm:$0xff]
        %v2074 = vld [vmem:[%s449 + $0x3a0] sm:$0xff]
        %v2075 = vld [vmem:[%s449 + $0x3a8] sm:$0xff]
        %v2076 = vld [vmem:[%s449 + $0x3b0] sm:$0xff]
        %v2077 = vld [vmem:[%s449 + $0x3b8] sm:$0xff]
        %v2078 = vld [vmem:[%s449 + $0x3c0] sm:$0xff]
        %v2079 = vld [vmem:[%s449 + $0x3c8] sm:$0xff]
        %v2080 = vld [vmem:[%s449 + $0x3d0] sm:$0xff]
        %v2081 = vld [vmem:[%s449 + $0x3d8] sm:$0xff]
        %v2082 = vld [vmem:[%s449 + $0x3e0] sm:$0xff]
        %v2083 = vld [vmem:[%s449 + $0x3e8] sm:$0xff]
        %v2084 = vld [vmem:[%s449 + $0x3f0] sm:$0xff]
        %v2085 = vld [vmem:[%s449 + $0x3f8] sm:$0xff]
        %v2214 = vunpack.c.l.b16 %v1958
        %v2215 = vunpack.c.h.b16 %v1958
        %v2216 = vunpack.c.l.b16 %v1959
        %v2217 = vunpack.c.h.b16 %v1959
        %v2218 = vunpack.c.l.b16 %v1960
        %v2219 = vunpack.c.h.b16 %v1960
        %v2220 = vunpack.c.l.b16 %v1961
        %v2221 = vunpack.c.h.b16 %v1961
        %v2222 = vunpack.c.l.b16 %v1962
        %v2223 = vunpack.c.h.b16 %v1962
        %v2224 = vunpack.c.l.b16 %v1963
        %v2225 = vunpack.c.h.b16 %v1963
        %v2226 = vunpack.c.l.b16 %v1964
        %v2227 = vunpack.c.h.b16 %v1964
        %v2228 = vunpack.c.l.b16 %v1965
        %v2229 = vunpack.c.h.b16 %v1965
        %v2230 = vunpack.c.l.b16 %v1966
        %v2231 = vunpack.c.h.b16 %v1966
        %v2232 = vunpack.c.l.b16 %v1967
        %v2233 = vunpack.c.h.b16 %v1967
        %v2234 = vunpack.c.l.b16 %v1968
        %v2235 = vunpack.c.h.b16 %v1968
        %v2236 = vunpack.c.l.b16 %v1969
        %v2237 = vunpack.c.h.b16 %v1969
        %v2238 = vunpack.c.l.b16 %v1970
        %v2239 = vunpack.c.h.b16 %v1970
        %v2240 = vunpack.c.l.b16 %v1971
        %v2241 = vunpack.c.h.b16 %v1971
        %v2242 = vunpack.c.l.b16 %v1972
        %v2243 = vunpack.c.h.b16 %v1972
        %v2244 = vunpack.c.l.b16 %v1973
        %v2245 = vunpack.c.h.b16 %v1973
        %v2246 = vunpack.c.l.b16 %v1974
        %v2247 = vunpack.c.h.b16 %v1974
        %v2248 = vunpack.c.l.b16 %v1975
        %v2249 = vunpack.c.h.b16 %v1975
        %v2250 = vunpack.c.l.b16 %v1976
        %v2251 = vunpack.c.h.b16 %v1976
        %v2252 = vunpack.c.l.b16 %v1977
        %v2253 = vunpack.c.h.b16 %v1977
        %v2254 = vunpack.c.l.b16 %v1978
        %v2255 = vunpack.c.h.b16 %v1978
        %v2256 = vunpack.c.l.b16 %v1979
        %v2257 = vunpack.c.h.b16 %v1979
        %v2258 = vunpack.c.l.b16 %v1980
        %v2259 = vunpack.c.h.b16 %v1980
        %v2260 = vunpack.c.l.b16 %v1981
        %v2261 = vunpack.c.h.b16 %v1981
        %v2262 = vunpack.c.l.b16 %v1982
        %v2263 = vunpack.c.h.b16 %v1982
        %v2264 = vunpack.c.l.b16 %v1983
        %v2265 = vunpack.c.h.b16 %v1983
        %v2266 = vunpack.c.l.b16 %v1984
        %v2267 = vunpack.c.h.b16 %v1984
        %v2268 = vunpack.c.l.b16 %v1985
        %v2269 = vunpack.c.h.b16 %v1985
        %v2270 = vunpack.c.l.b16 %v1986
        %v2271 = vunpack.c.h.b16 %v1986
        %v2272 = vunpack.c.l.b16 %v1987
        %v2273 = vunpack.c.h.b16 %v1987
        %v2274 = vunpack.c.l.b16 %v1988
        %v2275 = vunpack.c.h.b16 %v1988
        %v2276 = vunpack.c.l.b16 %v1989
        %v2277 = vunpack.c.h.b16 %v1989
        %v2278 = vunpack.c.l.b16 %v1990
        %v2279 = vunpack.c.h.b16 %v1990
        %v2280 = vunpack.c.l.b16 %v1991
        %v2281 = vunpack.c.h.b16 %v1991
        %v2282 = vunpack.c.l.b16 %v1992
        %v2283 = vunpack.c.h.b16 %v1992
        %v2284 = vunpack.c.l.b16 %v1993
        %v2285 = vunpack.c.h.b16 %v1993
        %v2286 = vunpack.c.l.b16 %v1994
        %v2287 = vunpack.c.h.b16 %v1994
        %v2288 = vunpack.c.l.b16 %v1995
        %v2289 = vunpack.c.h.b16 %v1995
        %v2290 = vunpack.c.l.b16 %v1996
        %v2291 = vunpack.c.h.b16 %v1996
        %v2292 = vunpack.c.l.b16 %v1997
        %v2293 = vunpack.c.h.b16 %v1997
        %v2294 = vunpack.c.l.b16 %v1998
        %v2295 = vunpack.c.h.b16 %v1998
        %v2296 = vunpack.c.l.b16 %v1999
        %v2297 = vunpack.c.h.b16 %v1999
        %v2298 = vunpack.c.l.b16 %v2000
        %v2299 = vunpack.c.h.b16 %v2000
        %v2300 = vunpack.c.l.b16 %v2001
        %v2301 = vunpack.c.h.b16 %v2001
        %v2302 = vunpack.c.l.b16 %v2002
        %v2303 = vunpack.c.h.b16 %v2002
        %v2304 = vunpack.c.l.b16 %v2003
        %v2305 = vunpack.c.h.b16 %v2003
        %v2306 = vunpack.c.l.b16 %v2004
        %v2307 = vunpack.c.h.b16 %v2004
        %v2308 = vunpack.c.l.b16 %v2005
        %v2309 = vunpack.c.h.b16 %v2005
        %v2310 = vunpack.c.l.b16 %v2006
        %v2311 = vunpack.c.h.b16 %v2006
        %v2312 = vunpack.c.l.b16 %v2007
        %v2313 = vunpack.c.h.b16 %v2007
        %v2314 = vunpack.c.l.b16 %v2008
        %v2315 = vunpack.c.h.b16 %v2008
        %v2316 = vunpack.c.l.b16 %v2009
        %v2317 = vunpack.c.h.b16 %v2009
        %v2318 = vunpack.c.l.b16 %v2010
        %v2319 = vunpack.c.h.b16 %v2010
        %v2320 = vunpack.c.l.b16 %v2011
        %v2321 = vunpack.c.h.b16 %v2011
        %v2322 = vunpack.c.l.b16 %v2012
        %v2323 = vunpack.c.h.b16 %v2012
        %v2324 = vunpack.c.l.b16 %v2013
        %v2325 = vunpack.c.h.b16 %v2013
        %v2326 = vunpack.c.l.b16 %v2014
        %v2327 = vunpack.c.h.b16 %v2014
        %v2328 = vunpack.c.l.b16 %v2015
        %v2329 = vunpack.c.h.b16 %v2015
        %v2330 = vunpack.c.l.b16 %v2016
        %v2331 = vunpack.c.h.b16 %v2016
        %v2332 = vunpack.c.l.b16 %v2017
        %v2333 = vunpack.c.h.b16 %v2017
        %v2334 = vunpack.c.l.b16 %v2018
        %v2335 = vunpack.c.h.b16 %v2018
        %v2336 = vunpack.c.l.b16 %v2019
        %v2337 = vunpack.c.h.b16 %v2019
        %v2338 = vunpack.c.l.b16 %v2020
        %v2339 = vunpack.c.h.b16 %v2020
        %v2340 = vunpack.c.l.b16 %v2021
        %v2341 = vunpack.c.h.b16 %v2021
        %v2342 = vunpack.c.l.b16 %v2022
        %v2343 = vunpack.c.h.b16 %v2022
        %v2344 = vunpack.c.l.b16 %v2023
        %v2345 = vunpack.c.h.b16 %v2023
        %v2346 = vunpack.c.l.b16 %v2024
        %v2347 = vunpack.c.h.b16 %v2024
        %v2348 = vunpack.c.l.b16 %v2025
        %v2349 = vunpack.c.h.b16 %v2025
        %v2350 = vunpack.c.l.b16 %v2026
        %v2351 = vunpack.c.h.b16 %v2026
        %v2352 = vunpack.c.l.b16 %v2027
        %v2353 = vunpack.c.h.b16 %v2027
        %v2354 = vunpack.c.l.b16 %v2028
        %v2355 = vunpack.c.h.b16 %v2028
        %v2356 = vunpack.c.l.b16 %v2029
        %v2357 = vunpack.c.h.b16 %v2029
        %v2358 = vunpack.c.l.b16 %v2030
        %v2359 = vunpack.c.h.b16 %v2030
        %v2360 = vunpack.c.l.b16 %v2031
        %v2361 = vunpack.c.h.b16 %v2031
        %v2362 = vunpack.c.l.b16 %v2032
        %v2363 = vunpack.c.h.b16 %v2032
        %v2364 = vunpack.c.l.b16 %v2033
        %v2365 = vunpack.c.h.b16 %v2033
        %v2366 = vunpack.c.l.b16 %v2034
        %v2367 = vunpack.c.h.b16 %v2034
        %v2368 = vunpack.c.l.b16 %v2035
        %v2369 = vunpack.c.h.b16 %v2035
        %v2370 = vunpack.c.l.b16 %v2036
        %v2371 = vunpack.c.h.b16 %v2036
        %v2372 = vunpack.c.l.b16 %v2037
        %v2373 = vunpack.c.h.b16 %v2037
        %v2374 = vunpack.c.l.b16 %v2038
        %v2375 = vunpack.c.h.b16 %v2038
        %v2376 = vunpack.c.l.b16 %v2039
        %v2377 = vunpack.c.h.b16 %v2039
        %v2378 = vunpack.c.l.b16 %v2040
        %v2379 = vunpack.c.h.b16 %v2040
        %v2380 = vunpack.c.l.b16 %v2041
        %v2381 = vunpack.c.h.b16 %v2041
        %v2382 = vunpack.c.l.b16 %v2042
        %v2383 = vunpack.c.h.b16 %v2042
        %v2384 = vunpack.c.l.b16 %v2043
        %v2385 = vunpack.c.h.b16 %v2043
        %v2386 = vunpack.c.l.b16 %v2044
        %v2387 = vunpack.c.h.b16 %v2044
        %v2388 = vunpack.c.l.b16 %v2045
        %v2389 = vunpack.c.h.b16 %v2045
        %v2390 = vunpack.c.l.b16 %v2046
        %v2391 = vunpack.c.h.b16 %v2046
        %v2392 = vunpack.c.l.b16 %v2047
        %v2393 = vunpack.c.h.b16 %v2047
        %v2394 = vunpack.c.l.b16 %v2048
        %v2395 = vunpack.c.h.b16 %v2048
        %v2396 = vunpack.c.l.b16 %v2049
        %v2397 = vunpack.c.h.b16 %v2049
        %v2398 = vunpack.c.l.b16 %v2050
        %v2399 = vunpack.c.h.b16 %v2050
        %v2400 = vunpack.c.l.b16 %v2051
        %v2401 = vunpack.c.h.b16 %v2051
        %v2402 = vunpack.c.l.b16 %v2052
        %v2403 = vunpack.c.h.b16 %v2052
        %v2404 = vunpack.c.l.b16 %v2053
        %v2405 = vunpack.c.h.b16 %v2053
        %v2406 = vunpack.c.l.b16 %v2054
        %v2407 = vunpack.c.h.b16 %v2054
        %v2408 = vunpack.c.l.b16 %v2055
        %v2409 = vunpack.c.h.b16 %v2055
        %v2410 = vunpack.c.l.b16 %v2056
        %v2411 = vunpack.c.h.b16 %v2056
        %v2412 = vunpack.c.l.b16 %v2057
        %v2413 = vunpack.c.h.b16 %v2057
        %v2414 = vunpack.c.l.b16 %v2058
        %v2415 = vunpack.c.h.b16 %v2058
        %v2416 = vunpack.c.l.b16 %v2059
        %v2417 = vunpack.c.h.b16 %v2059
        %v2418 = vunpack.c.l.b16 %v2060
        %v2419 = vunpack.c.h.b16 %v2060
        %v2420 = vunpack.c.l.b16 %v2061
        %v2421 = vunpack.c.h.b16 %v2061
        %v2422 = vunpack.c.l.b16 %v2062
        %v2423 = vunpack.c.h.b16 %v2062
        %v2424 = vunpack.c.l.b16 %v2063
        %v2425 = vunpack.c.h.b16 %v2063
        %v2426 = vunpack.c.l.b16 %v2064
        %v2427 = vunpack.c.h.b16 %v2064
        %v2428 = vunpack.c.l.b16 %v2065
        %v2429 = vunpack.c.h.b16 %v2065
        %v2430 = vunpack.c.l.b16 %v2066
        %v2431 = vunpack.c.h.b16 %v2066
        %v2432 = vunpack.c.l.b16 %v2067
        %v2433 = vunpack.c.h.b16 %v2067
        %v2434 = vunpack.c.l.b16 %v2068
        %v2435 = vunpack.c.h.b16 %v2068
        %v2436 = vunpack.c.l.b16 %v2069
        %v2437 = vunpack.c.h.b16 %v2069
        %v2438 = vunpack.c.l.b16 %v2070
        %v2439 = vunpack.c.h.b16 %v2070
        %v2440 = vunpack.c.l.b16 %v2071
        %v2441 = vunpack.c.h.b16 %v2071
        %v2442 = vunpack.c.l.b16 %v2072
        %v2443 = vunpack.c.h.b16 %v2072
        %v2444 = vunpack.c.l.b16 %v2073
        %v2445 = vunpack.c.h.b16 %v2073
        %v2446 = vunpack.c.l.b16 %v2074
        %v2447 = vunpack.c.h.b16 %v2074
        %v2448 = vunpack.c.l.b16 %v2075
        %v2449 = vunpack.c.h.b16 %v2075
        %v2450 = vunpack.c.l.b16 %v2076
        %v2451 = vunpack.c.h.b16 %v2076
        %v2452 = vunpack.c.l.b16 %v2077
        %v2453 = vunpack.c.h.b16 %v2077
        %v2454 = vunpack.c.l.b16 %v2078
        %v2455 = vunpack.c.h.b16 %v2078
        %v2456 = vunpack.c.l.b16 %v2079
        %v2457 = vunpack.c.h.b16 %v2079
        %v2458 = vunpack.c.l.b16 %v2080
        %v2459 = vunpack.c.h.b16 %v2080
        %v2460 = vunpack.c.l.b16 %v2081
        %v2461 = vunpack.c.h.b16 %v2081
        %v2462 = vunpack.c.l.b16 %v2082
        %v2463 = vunpack.c.h.b16 %v2082
        %v2464 = vunpack.c.l.b16 %v2083
        %v2465 = vunpack.c.h.b16 %v2083
        %v2466 = vunpack.c.l.b16 %v2084
        %v2467 = vunpack.c.h.b16 %v2084
        %v2468 = vunpack.c.l.b16 %v2085
        %v2469 = vunpack.c.h.b16 %v2085
        %v2470 = vpack.c.b16 %v2222, %v2214
        %v2471 = vpack.c.b16 %v2223, %v2215
        %v2472 = vpack.c.b16 %v2224, %v2216
        %v2473 = vpack.c.b16 %v2225, %v2217
        %v2474 = vpack.c.b16 %v2226, %v2218
        %v2475 = vpack.c.b16 %v2227, %v2219
        %v2476 = vpack.c.b16 %v2228, %v2220
        %v2477 = vpack.c.b16 %v2229, %v2221
        %v2478 = vpack.c.b16 %v2238, %v2230
        %v2479 = vpack.c.b16 %v2239, %v2231
        %v2480 = vpack.c.b16 %v2240, %v2232
        %v2481 = vpack.c.b16 %v2241, %v2233
        %v2482 = vpack.c.b16 %v2242, %v2234
        %v2483 = vpack.c.b16 %v2243, %v2235
        %v2484 = vpack.c.b16 %v2244, %v2236
        %v2485 = vpack.c.b16 %v2245, %v2237
        %v2486 = vpack.c.b16 %v2254, %v2246
        %v2487 = vpack.c.b16 %v2255, %v2247
        %v2488 = vpack.c.b16 %v2256, %v2248
        %v2489 = vpack.c.b16 %v2257, %v2249
        %v2490 = vpack.c.b16 %v2258, %v2250
        %v2491 = vpack.c.b16 %v2259, %v2251
        %v2492 = vpack.c.b16 %v2260, %v2252
        %v2493 = vpack.c.b16 %v2261, %v2253
        %v2494 = vpack.c.b16 %v2270, %v2262
        %v2495 = vpack.c.b16 %v2271, %v2263
        %v2496 = vpack.c.b16 %v2272, %v2264
        %v2497 = vpack.c.b16 %v2273, %v2265
        %v2498 = vpack.c.b16 %v2274, %v2266
        %v2499 = vpack.c.b16 %v2275, %v2267
        %v2500 = vpack.c.b16 %v2276, %v2268
        %v2501 = vpack.c.b16 %v2277, %v2269
        %v2502 = vpack.c.b16 %v2286, %v2278
        %v2503 = vpack.c.b16 %v2287, %v2279
        %v2504 = vpack.c.b16 %v2288, %v2280
        %v2505 = vpack.c.b16 %v2289, %v2281
        %v2506 = vpack.c.b16 %v2290, %v2282
        %v2507 = vpack.c.b16 %v2291, %v2283
        %v2508 = vpack.c.b16 %v2292, %v2284
        %v2509 = vpack.c.b16 %v2293, %v2285
        %v2510 = vpack.c.b16 %v2302, %v2294
        %v2511 = vpack.c.b16 %v2303, %v2295
        %v2512 = vpack.c.b16 %v2304, %v2296
        %v2513 = vpack.c.b16 %v2305, %v2297
        %v2514 = vpack.c.b16 %v2306, %v2298
        %v2515 = vpack.c.b16 %v2307, %v2299
        %v2516 = vpack.c.b16 %v2308, %v2300
        %v2517 = vpack.c.b16 %v2309, %v2301
        %v2518 = vpack.c.b16 %v2318, %v2310
        %v2519 = vpack.c.b16 %v2319, %v2311
        %v2520 = vpack.c.b16 %v2320, %v2312
        %v2521 = vpack.c.b16 %v2321, %v2313
        %v2522 = vpack.c.b16 %v2322, %v2314
        %v2523 = vpack.c.b16 %v2323, %v2315
        %v2524 = vpack.c.b16 %v2324, %v2316
        %v2525 = vpack.c.b16 %v2325, %v2317
        %v2526 = vpack.c.b16 %v2334, %v2326
        %v2527 = vpack.c.b16 %v2335, %v2327
        %v2528 = vpack.c.b16 %v2336, %v2328
        %v2529 = vpack.c.b16 %v2337, %v2329
        %v2530 = vpack.c.b16 %v2338, %v2330
        %v2531 = vpack.c.b16 %v2339, %v2331
        %v2532 = vpack.c.b16 %v2340, %v2332
        %v2533 = vpack.c.b16 %v2341, %v2333
        %v2534 = vpack.c.b16 %v2350, %v2342
        %v2535 = vpack.c.b16 %v2351, %v2343
        %v2536 = vpack.c.b16 %v2352, %v2344
        %v2537 = vpack.c.b16 %v2353, %v2345
        %v2538 = vpack.c.b16 %v2354, %v2346
        %v2539 = vpack.c.b16 %v2355, %v2347
        %v2540 = vpack.c.b16 %v2356, %v2348
        %v2541 = vpack.c.b16 %v2357, %v2349
        %v2542 = vpack.c.b16 %v2366, %v2358
        %v2543 = vpack.c.b16 %v2367, %v2359
        %v2544 = vpack.c.b16 %v2368, %v2360
        %v2545 = vpack.c.b16 %v2369, %v2361
        %v2546 = vpack.c.b16 %v2370, %v2362
        %v2547 = vpack.c.b16 %v2371, %v2363
        %v2548 = vpack.c.b16 %v2372, %v2364
        %v2549 = vpack.c.b16 %v2373, %v2365
        %v2550 = vpack.c.b16 %v2382, %v2374
        %v2551 = vpack.c.b16 %v2383, %v2375
        %v2552 = vpack.c.b16 %v2384, %v2376
        %v2553 = vpack.c.b16 %v2385, %v2377
        %v2554 = vpack.c.b16 %v2386, %v2378
        %v2555 = vpack.c.b16 %v2387, %v2379
        %v2556 = vpack.c.b16 %v2388, %v2380
        %v2557 = vpack.c.b16 %v2389, %v2381
        %v2558 = vpack.c.b16 %v2398, %v2390
        %v2559 = vpack.c.b16 %v2399, %v2391
        %v2560 = vpack.c.b16 %v2400, %v2392
        %v2561 = vpack.c.b16 %v2401, %v2393
        %v2562 = vpack.c.b16 %v2402, %v2394
        %v2563 = vpack.c.b16 %v2403, %v2395
        %v2564 = vpack.c.b16 %v2404, %v2396
        %v2565 = vpack.c.b16 %v2405, %v2397
        %v2566 = vpack.c.b16 %v2414, %v2406
        %v2567 = vpack.c.b16 %v2415, %v2407
        %v2568 = vpack.c.b16 %v2416, %v2408
        %v2569 = vpack.c.b16 %v2417, %v2409
        %v2570 = vpack.c.b16 %v2418, %v2410
        %v2571 = vpack.c.b16 %v2419, %v2411
        %v2572 = vpack.c.b16 %v2420, %v2412
        %v2573 = vpack.c.b16 %v2421, %v2413
        %v2574 = vpack.c.b16 %v2430, %v2422
        %v2575 = vpack.c.b16 %v2431, %v2423
        %v2576 = vpack.c.b16 %v2432, %v2424
        %v2577 = vpack.c.b16 %v2433, %v2425
        %v2578 = vpack.c.b16 %v2434, %v2426
        %v2579 = vpack.c.b16 %v2435, %v2427
        %v2580 = vpack.c.b16 %v2436, %v2428
        %v2581 = vpack.c.b16 %v2437, %v2429
        %v2582 = vpack.c.b16 %v2446, %v2438
        %v2583 = vpack.c.b16 %v2447, %v2439
        %v2584 = vpack.c.b16 %v2448, %v2440
        %v2585 = vpack.c.b16 %v2449, %v2441
        %v2586 = vpack.c.b16 %v2450, %v2442
        %v2587 = vpack.c.b16 %v2451, %v2443
        %v2588 = vpack.c.b16 %v2452, %v2444
        %v2589 = vpack.c.b16 %v2453, %v2445
        %v2590 = vpack.c.b16 %v2462, %v2454
        %v2591 = vpack.c.b16 %v2463, %v2455
        %v2592 = vpack.c.b16 %v2464, %v2456
        %v2593 = vpack.c.b16 %v2465, %v2457
        %v2594 = vpack.c.b16 %v2466, %v2458
        %v2595 = vpack.c.b16 %v2467, %v2459
        %v2596 = vpack.c.b16 %v2468, %v2460
        %v2597 = vpack.c.b16 %v2469, %v2461
        %v2726 = vmul.bf16 %v1830, %v2470
        %v2727 = vmul.bf16 %v1831, %v2471
        %v2728 = vmul.bf16 %v1832, %v2472
        %v2729 = vmul.bf16 %v1833, %v2473
        %v2730 = vmul.bf16 %v1834, %v2474
        %v2731 = vmul.bf16 %v1835, %v2475
        %v2732 = vmul.bf16 %v1836, %v2476
        %v2733 = vmul.bf16 %v1837, %v2477
        %v2734 = vmul.bf16 %v1838, %v2478
        %v2735 = vmul.bf16 %v1839, %v2479
        %v2736 = vmul.bf16 %v1840, %v2480
        %v2737 = vmul.bf16 %v1841, %v2481
        %v2738 = vmul.bf16 %v1842, %v2482
        %v2739 = vmul.bf16 %v1843, %v2483
        %v2740 = vmul.bf16 %v1844, %v2484
        %v2741 = vmul.bf16 %v1845, %v2485
        %v2742 = vmul.bf16 %v1846, %v2486
        %v2743 = vmul.bf16 %v1847, %v2487
        %v2744 = vmul.bf16 %v1848, %v2488
        %v2745 = vmul.bf16 %v1849, %v2489
        %v2746 = vmul.bf16 %v1850, %v2490
        %v2747 = vmul.bf16 %v1851, %v2491
        %v2748 = vmul.bf16 %v1852, %v2492
        %v2749 = vmul.bf16 %v1853, %v2493
        %v2750 = vmul.bf16 %v1854, %v2494
        %v2751 = vmul.bf16 %v1855, %v2495
        %v2752 = vmul.bf16 %v1856, %v2496
        %v2753 = vmul.bf16 %v1857, %v2497
        %v2754 = vmul.bf16 %v1858, %v2498
        %v2755 = vmul.bf16 %v1859, %v2499
        %v2756 = vmul.bf16 %v1860, %v2500
        %v2757 = vmul.bf16 %v1861, %v2501
        %v2758 = vmul.bf16 %v1862, %v2502
        %v2759 = vmul.bf16 %v1863, %v2503
        %v2760 = vmul.bf16 %v1864, %v2504
        %v2761 = vmul.bf16 %v1865, %v2505
        %v2762 = vmul.bf16 %v1866, %v2506
        %v2763 = vmul.bf16 %v1867, %v2507
        %v2764 = vmul.bf16 %v1868, %v2508
        %v2765 = vmul.bf16 %v1869, %v2509
        %v2766 = vmul.bf16 %v1870, %v2510
        %v2767 = vmul.bf16 %v1871, %v2511
        %v2768 = vmul.bf16 %v1872, %v2512
        %v2769 = vmul.bf16 %v1873, %v2513
        %v2770 = vmul.bf16 %v1874, %v2514
        %v2771 = vmul.bf16 %v1875, %v2515
        %v2772 = vmul.bf16 %v1876, %v2516
        %v2773 = vmul.bf16 %v1877, %v2517
        %v2774 = vmul.bf16 %v1878, %v2518
        %v2775 = vmul.bf16 %v1879, %v2519
        %v2776 = vmul.bf16 %v1880, %v2520
        %v2777 = vmul.bf16 %v1881, %v2521
        %v2778 = vmul.bf16 %v1882, %v2522
        %v2779 = vmul.bf16 %v1883, %v2523
        %v2780 = vmul.bf16 %v1884, %v2524
        %v2781 = vmul.bf16 %v1885, %v2525
        %v2782 = vmul.bf16 %v1886, %v2526
        %v2783 = vmul.bf16 %v1887, %v2527
        %v2784 = vmul.bf16 %v1888, %v2528
        %v2785 = vmul.bf16 %v1889, %v2529
        %v2786 = vmul.bf16 %v1890, %v2530
        %v2787 = vmul.bf16 %v1891, %v2531
        %v2788 = vmul.bf16 %v1892, %v2532
        %v2789 = vmul.bf16 %v1893, %v2533
        %v2790 = vmul.bf16 %v1894, %v2534
        %v2791 = vmul.bf16 %v1895, %v2535
        %v2792 = vmul.bf16 %v1896, %v2536
        %v2793 = vmul.bf16 %v1897, %v2537
        %v2794 = vmul.bf16 %v1898, %v2538
        %v2795 = vmul.bf16 %v1899, %v2539
        %v2796 = vmul.bf16 %v1900, %v2540
        %v2797 = vmul.bf16 %v1901, %v2541
        %v2798 = vmul.bf16 %v1902, %v2542
        %v2799 = vmul.bf16 %v1903, %v2543
        %v2800 = vmul.bf16 %v1904, %v2544
        %v2801 = vmul.bf16 %v1905, %v2545
        %v2802 = vmul.bf16 %v1906, %v2546
        %v2803 = vmul.bf16 %v1907, %v2547
        %v2804 = vmul.bf16 %v1908, %v2548
        %v2805 = vmul.bf16 %v1909, %v2549
        %v2806 = vmul.bf16 %v1910, %v2550
        %v2807 = vmul.bf16 %v1911, %v2551
        %v2808 = vmul.bf16 %v1912, %v2552
        %v2809 = vmul.bf16 %v1913, %v2553
        %v2810 = vmul.bf16 %v1914, %v2554
        %v2811 = vmul.bf16 %v1915, %v2555
        %v2812 = vmul.bf16 %v1916, %v2556
        %v2813 = vmul.bf16 %v1917, %v2557
        %v2814 = vmul.bf16 %v1918, %v2558
        %v2815 = vmul.bf16 %v1919, %v2559
        %v2816 = vmul.bf16 %v1920, %v2560
        %v2817 = vmul.bf16 %v1921, %v2561
        %v2818 = vmul.bf16 %v1922, %v2562
        %v2819 = vmul.bf16 %v1923, %v2563
        %v2820 = vmul.bf16 %v1924, %v2564
        %v2821 = vmul.bf16 %v1925, %v2565
        %v2822 = vmul.bf16 %v1926, %v2566
        %v2823 = vmul.bf16 %v1927, %v2567
        %v2824 = vmul.bf16 %v1928, %v2568
        %v2825 = vmul.bf16 %v1929, %v2569
        %v2826 = vmul.bf16 %v1930, %v2570
        %v2827 = vmul.bf16 %v1931, %v2571
        %v2828 = vmul.bf16 %v1932, %v2572
        %v2829 = vmul.bf16 %v1933, %v2573
        %v2830 = vmul.bf16 %v1934, %v2574
        %v2831 = vmul.bf16 %v1935, %v2575
        %v2832 = vmul.bf16 %v1936, %v2576
        %v2833 = vmul.bf16 %v1937, %v2577
        %v2834 = vmul.bf16 %v1938, %v2578
        %v2835 = vmul.bf16 %v1939, %v2579
        %v2836 = vmul.bf16 %v1940, %v2580
        %v2837 = vmul.bf16 %v1941, %v2581
        %v2838 = vmul.bf16 %v1942, %v2582
        %v2839 = vmul.bf16 %v1943, %v2583
        %v2840 = vmul.bf16 %v1944, %v2584
        %v2841 = vmul.bf16 %v1945, %v2585
        %v2842 = vmul.bf16 %v1946, %v2586
        %v2843 = vmul.bf16 %v1947, %v2587
        %v2844 = vmul.bf16 %v1948, %v2588
        %v2845 = vmul.bf16 %v1949, %v2589
        %v2846 = vmul.bf16 %v1950, %v2590
        %v2847 = vmul.bf16 %v1951, %v2591
        %v2848 = vmul.bf16 %v1952, %v2592
        %v2849 = vmul.bf16 %v1953, %v2593
        %v2850 = vmul.bf16 %v1954, %v2594
        %v2851 = vmul.bf16 %v1955, %v2595
        %v2852 = vmul.bf16 %v1956, %v2596
        %v2853 = vmul.bf16 %v1957, %v2597
        %v2854 = vld [vmem:[%s8] sm:$0xf]
        %v2855 = vld [vmem:[%s8 + $0x4] sm:$0xf]
        %v2856 = vld [vmem:[%s8 + $0x8] sm:$0xf]
        %v2857 = vld [vmem:[%s8 + $0xc] sm:$0xf]
        %v2858 = vld [vmem:[%s8 + $0x10] sm:$0xf]
        %v2859 = vld [vmem:[%s8 + $0x14] sm:$0xf]
        %v2860 = vld [vmem:[%s8 + $0x18] sm:$0xf]
        %v2861 = vld [vmem:[%s8 + $0x1c] sm:$0xf]
        %v2862 = vld [vmem:[%s8 + $0x20] sm:$0xf]
        %v2863 = vld [vmem:[%s8 + $0x24] sm:$0xf]
        %v2864 = vld [vmem:[%s8 + $0x28] sm:$0xf]
        %v2865 = vld [vmem:[%s8 + $0x2c] sm:$0xf]
        %v2866 = vld [vmem:[%s8 + $0x30] sm:$0xf]
        %v2867 = vld [vmem:[%s8 + $0x34] sm:$0xf]
        %v2868 = vld [vmem:[%s8 + $0x38] sm:$0xf]
        %v2869 = vld [vmem:[%s8 + $0x3c] sm:$0xf]
        %v2870 = vld [vmem:[%s8 + $0x40] sm:$0xf]
        %v2871 = vld [vmem:[%s8 + $0x44] sm:$0xf]
        %v2872 = vld [vmem:[%s8 + $0x48] sm:$0xf]
        %v2873 = vld [vmem:[%s8 + $0x4c] sm:$0xf]
        %v2874 = vld [vmem:[%s8 + $0x50] sm:$0xf]
        %v2875 = vld [vmem:[%s8 + $0x54] sm:$0xf]
        %v2876 = vld [vmem:[%s8 + $0x58] sm:$0xf]
        %v2877 = vld [vmem:[%s8 + $0x5c] sm:$0xf]
        %v2878 = vld [vmem:[%s8 + $0x60] sm:$0xf]
        %v2879 = vld [vmem:[%s8 + $0x64] sm:$0xf]
        %v2880 = vld [vmem:[%s8 + $0x68] sm:$0xf]
        %v2881 = vld [vmem:[%s8 + $0x6c] sm:$0xf]
        %v2882 = vld [vmem:[%s8 + $0x70] sm:$0xf]
        %v2883 = vld [vmem:[%s8 + $0x74] sm:$0xf]
        %v2884 = vld [vmem:[%s8 + $0x78] sm:$0xf]
        %v2885 = vld [vmem:[%s8 + $0x7c] sm:$0xf]
        %v2886 = vld [vmem:[%s8 + $0x80] sm:$0xf]
        %v2887 = vld [vmem:[%s8 + $0x84] sm:$0xf]
        %v2888 = vld [vmem:[%s8 + $0x88] sm:$0xf]
        %v2889 = vld [vmem:[%s8 + $0x8c] sm:$0xf]
        %v2890 = vld [vmem:[%s8 + $0x90] sm:$0xf]
        %v2891 = vld [vmem:[%s8 + $0x94] sm:$0xf]
        %v2892 = vld [vmem:[%s8 + $0x98] sm:$0xf]
        %v2893 = vld [vmem:[%s8 + $0x9c] sm:$0xf]
        %v2894 = vld [vmem:[%s8 + $0xa0] sm:$0xf]
        %v2895 = vld [vmem:[%s8 + $0xa4] sm:$0xf]
        %v2896 = vld [vmem:[%s8 + $0xa8] sm:$0xf]
        %v2897 = vld [vmem:[%s8 + $0xac] sm:$0xf]
        %v2898 = vld [vmem:[%s8 + $0xb0] sm:$0xf]
        %v2899 = vld [vmem:[%s8 + $0xb4] sm:$0xf]
        %v2900 = vld [vmem:[%s8 + $0xb8] sm:$0xf]
        %v2901 = vld [vmem:[%s8 + $0xbc] sm:$0xf]
        %v2902 = vld [vmem:[%s8 + $0xc0] sm:$0xf]
        %v2903 = vld [vmem:[%s8 + $0xc4] sm:$0xf]
        %v2904 = vld [vmem:[%s8 + $0xc8] sm:$0xf]
        %v2905 = vld [vmem:[%s8 + $0xcc] sm:$0xf]
        %v2906 = vld [vmem:[%s8 + $0xd0] sm:$0xf]
        %v2907 = vld [vmem:[%s8 + $0xd4] sm:$0xf]
        %v2908 = vld [vmem:[%s8 + $0xd8] sm:$0xf]
        %v2909 = vld [vmem:[%s8 + $0xdc] sm:$0xf]
        %v2910 = vld [vmem:[%s8 + $0xe0] sm:$0xf]
        %v2911 = vld [vmem:[%s8 + $0xe4] sm:$0xf]
        %v2912 = vld [vmem:[%s8 + $0xe8] sm:$0xf]
        %v2913 = vld [vmem:[%s8 + $0xec] sm:$0xf]
        %v2914 = vld [vmem:[%s8 + $0xf0] sm:$0xf]
        %v2915 = vld [vmem:[%s8 + $0xf4] sm:$0xf]
        %v2916 = vld [vmem:[%s8 + $0xf8] sm:$0xf]
        %v2917 = vld [vmem:[%s8 + $0xfc] sm:$0xf]
        %v2918 = vld [vmem:[%s8 + $0x100] sm:$0xf]
        %v2919 = vld [vmem:[%s8 + $0x104] sm:$0xf]
        %v2920 = vld [vmem:[%s8 + $0x108] sm:$0xf]
        %v2921 = vld [vmem:[%s8 + $0x10c] sm:$0xf]
        %v2922 = vld [vmem:[%s8 + $0x110] sm:$0xf]
        %v2923 = vld [vmem:[%s8 + $0x114] sm:$0xf]
        %v2924 = vld [vmem:[%s8 + $0x118] sm:$0xf]
        %v2925 = vld [vmem:[%s8 + $0x11c] sm:$0xf]
        %v2926 = vld [vmem:[%s8 + $0x120] sm:$0xf]
        %v2927 = vld [vmem:[%s8 + $0x124] sm:$0xf]
        %v2928 = vld [vmem:[%s8 + $0x128] sm:$0xf]
        %v2929 = vld [vmem:[%s8 + $0x12c] sm:$0xf]
        %v2930 = vld [vmem:[%s8 + $0x130] sm:$0xf]
        %v2931 = vld [vmem:[%s8 + $0x134] sm:$0xf]
        %v2932 = vld [vmem:[%s8 + $0x138] sm:$0xf]
        %v2933 = vld [vmem:[%s8 + $0x13c] sm:$0xf]
        %v2934 = vld [vmem:[%s8 + $0x140] sm:$0xf]
        %v2935 = vld [vmem:[%s8 + $0x144] sm:$0xf]
        %v2936 = vld [vmem:[%s8 + $0x148] sm:$0xf]
        %v2937 = vld [vmem:[%s8 + $0x14c] sm:$0xf]
        %v2938 = vld [vmem:[%s8 + $0x150] sm:$0xf]
        %v2939 = vld [vmem:[%s8 + $0x154] sm:$0xf]
        %v2940 = vld [vmem:[%s8 + $0x158] sm:$0xf]
        %v2941 = vld [vmem:[%s8 + $0x15c] sm:$0xf]
        %v2942 = vld [vmem:[%s8 + $0x160] sm:$0xf]
        %v2943 = vld [vmem:[%s8 + $0x164] sm:$0xf]
        %v2944 = vld [vmem:[%s8 + $0x168] sm:$0xf]
        %v2945 = vld [vmem:[%s8 + $0x16c] sm:$0xf]
        %v2946 = vld [vmem:[%s8 + $0x170] sm:$0xf]
        %v2947 = vld [vmem:[%s8 + $0x174] sm:$0xf]
        %v2948 = vld [vmem:[%s8 + $0x178] sm:$0xf]
        %v2949 = vld [vmem:[%s8 + $0x17c] sm:$0xf]
        %v2950 = vld [vmem:[%s8 + $0x180] sm:$0xf]
        %v2951 = vld [vmem:[%s8 + $0x184] sm:$0xf]
        %v2952 = vld [vmem:[%s8 + $0x188] sm:$0xf]
        %v2953 = vld [vmem:[%s8 + $0x18c] sm:$0xf]
        %v2954 = vld [vmem:[%s8 + $0x190] sm:$0xf]
        %v2955 = vld [vmem:[%s8 + $0x194] sm:$0xf]
        %v2956 = vld [vmem:[%s8 + $0x198] sm:$0xf]
        %v2957 = vld [vmem:[%s8 + $0x19c] sm:$0xf]
        %v2958 = vld [vmem:[%s8 + $0x1a0] sm:$0xf]
        %v2959 = vld [vmem:[%s8 + $0x1a4] sm:$0xf]
        %v2960 = vld [vmem:[%s8 + $0x1a8] sm:$0xf]
        %v2961 = vld [vmem:[%s8 + $0x1ac] sm:$0xf]
        %v2962 = vld [vmem:[%s8 + $0x1b0] sm:$0xf]
        %v2963 = vld [vmem:[%s8 + $0x1b4] sm:$0xf]
        %v2964 = vld [vmem:[%s8 + $0x1b8] sm:$0xf]
        %v2965 = vld [vmem:[%s8 + $0x1bc] sm:$0xf]
        %v2966 = vld [vmem:[%s8 + $0x1c0] sm:$0xf]
        %v2967 = vld [vmem:[%s8 + $0x1c4] sm:$0xf]
        %v2968 = vld [vmem:[%s8 + $0x1c8] sm:$0xf]
        %v2969 = vld [vmem:[%s8 + $0x1cc] sm:$0xf]
        %v2970 = vld [vmem:[%s8 + $0x1d0] sm:$0xf]
        %v2971 = vld [vmem:[%s8 + $0x1d4] sm:$0xf]
        %v2972 = vld [vmem:[%s8 + $0x1d8] sm:$0xf]
        %v2973 = vld [vmem:[%s8 + $0x1dc] sm:$0xf]
        %v2974 = vld [vmem:[%s8 + $0x1e0] sm:$0xf]
        %v2975 = vld [vmem:[%s8 + $0x1e4] sm:$0xf]
        %v2976 = vld [vmem:[%s8 + $0x1e8] sm:$0xf]
        %v2977 = vld [vmem:[%s8 + $0x1ec] sm:$0xf]
        %v2978 = vld [vmem:[%s8 + $0x1f0] sm:$0xf]
        %v2979 = vld [vmem:[%s8 + $0x1f4] sm:$0xf]
        %v2980 = vld [vmem:[%s8 + $0x1f8] sm:$0xf]
        %v2981 = vld [vmem:[%s8 + $0x1fc] sm:$0xf]
        %v3110 = vunpack.c.l.b16 %v2854
        %v3111 = vunpack.c.l.b16 %v2855
        %v3112 = vunpack.c.l.b16 %v2856
        %v3113 = vunpack.c.l.b16 %v2857
        %v3114 = vunpack.c.l.b16 %v2858
        %v3115 = vunpack.c.l.b16 %v2859
        %v3116 = vunpack.c.l.b16 %v2860
        %v3117 = vunpack.c.l.b16 %v2861
        %v3118 = vunpack.c.l.b16 %v2862
        %v3119 = vunpack.c.l.b16 %v2863
        %v3120 = vunpack.c.l.b16 %v2864
        %v3121 = vunpack.c.l.b16 %v2865
        %v3122 = vunpack.c.l.b16 %v2866
        %v3123 = vunpack.c.l.b16 %v2867
        %v3124 = vunpack.c.l.b16 %v2868
        %v3125 = vunpack.c.l.b16 %v2869
        %v3126 = vunpack.c.l.b16 %v2870
        %v3127 = vunpack.c.l.b16 %v2871
        %v3128 = vunpack.c.l.b16 %v2872
        %v3129 = vunpack.c.l.b16 %v2873
        %v3130 = vunpack.c.l.b16 %v2874
        %v3131 = vunpack.c.l.b16 %v2875
        %v3132 = vunpack.c.l.b16 %v2876
        %v3133 = vunpack.c.l.b16 %v2877
        %v3134 = vunpack.c.l.b16 %v2878
        %v3135 = vunpack.c.l.b16 %v2879
        %v3136 = vunpack.c.l.b16 %v2880
        %v3137 = vunpack.c.l.b16 %v2881
        %v3138 = vunpack.c.l.b16 %v2882
        %v3139 = vunpack.c.l.b16 %v2883
        %v3140 = vunpack.c.l.b16 %v2884
        %v3141 = vunpack.c.l.b16 %v2885
        %v3142 = vunpack.c.l.b16 %v2886
        %v3143 = vunpack.c.l.b16 %v2887
        %v3144 = vunpack.c.l.b16 %v2888
        %v3145 = vunpack.c.l.b16 %v2889
        %v3146 = vunpack.c.l.b16 %v2890
        %v3147 = vunpack.c.l.b16 %v2891
        %v3148 = vunpack.c.l.b16 %v2892
        %v3149 = vunpack.c.l.b16 %v2893
        %v3150 = vunpack.c.l.b16 %v2894
        %v3151 = vunpack.c.l.b16 %v2895
        %v3152 = vunpack.c.l.b16 %v2896
        %v3153 = vunpack.c.l.b16 %v2897
        %v3154 = vunpack.c.l.b16 %v2898
        %v3155 = vunpack.c.l.b16 %v2899
        %v3156 = vunpack.c.l.b16 %v2900
        %v3157 = vunpack.c.l.b16 %v2901
        %v3158 = vunpack.c.l.b16 %v2902
        %v3159 = vunpack.c.l.b16 %v2903
        %v3160 = vunpack.c.l.b16 %v2904
        %v3161 = vunpack.c.l.b16 %v2905
        %v3162 = vunpack.c.l.b16 %v2906
        %v3163 = vunpack.c.l.b16 %v2907
        %v3164 = vunpack.c.l.b16 %v2908
        %v3165 = vunpack.c.l.b16 %v2909
        %v3166 = vunpack.c.l.b16 %v2910
        %v3167 = vunpack.c.l.b16 %v2911
        %v3168 = vunpack.c.l.b16 %v2912
        %v3169 = vunpack.c.l.b16 %v2913
        %v3170 = vunpack.c.l.b16 %v2914
        %v3171 = vunpack.c.l.b16 %v2915
        %v3172 = vunpack.c.l.b16 %v2916
        %v3173 = vunpack.c.l.b16 %v2917
        %v3174 = vunpack.c.l.b16 %v2918
        %v3175 = vunpack.c.l.b16 %v2919
        %v3176 = vunpack.c.l.b16 %v2920
        %v3177 = vunpack.c.l.b16 %v2921
        %v3178 = vunpack.c.l.b16 %v2922
        %v3179 = vunpack.c.l.b16 %v2923
        %v3180 = vunpack.c.l.b16 %v2924
        %v3181 = vunpack.c.l.b16 %v2925
        %v3182 = vunpack.c.l.b16 %v2926
        %v3183 = vunpack.c.l.b16 %v2927
        %v3184 = vunpack.c.l.b16 %v2928
        %v3185 = vunpack.c.l.b16 %v2929
        %v3186 = vunpack.c.l.b16 %v2930
        %v3187 = vunpack.c.l.b16 %v2931
        %v3188 = vunpack.c.l.b16 %v2932
        %v3189 = vunpack.c.l.b16 %v2933
        %v3190 = vunpack.c.l.b16 %v2934
        %v3191 = vunpack.c.l.b16 %v2935
        %v3192 = vunpack.c.l.b16 %v2936
        %v3193 = vunpack.c.l.b16 %v2937
        %v3194 = vunpack.c.l.b16 %v2938
        %v3195 = vunpack.c.l.b16 %v2939
        %v3196 = vunpack.c.l.b16 %v2940
        %v3197 = vunpack.c.l.b16 %v2941
        %v3198 = vunpack.c.l.b16 %v2942
        %v3199 = vunpack.c.l.b16 %v2943
        %v3200 = vunpack.c.l.b16 %v2944
        %v3201 = vunpack.c.l.b16 %v2945
        %v3202 = vunpack.c.l.b16 %v2946
        %v3203 = vunpack.c.l.b16 %v2947
        %v3204 = vunpack.c.l.b16 %v2948
        %v3205 = vunpack.c.l.b16 %v2949
        %v3206 = vunpack.c.l.b16 %v2950
        %v3207 = vunpack.c.l.b16 %v2951
        %v3208 = vunpack.c.l.b16 %v2952
        %v3209 = vunpack.c.l.b16 %v2953
        %v3210 = vunpack.c.l.b16 %v2954
        %v3211 = vunpack.c.l.b16 %v2955
        %v3212 = vunpack.c.l.b16 %v2956
        %v3213 = vunpack.c.l.b16 %v2957
        %v3214 = vunpack.c.l.b16 %v2958
        %v3215 = vunpack.c.l.b16 %v2959
        %v3216 = vunpack.c.l.b16 %v2960
        %v3217 = vunpack.c.l.b16 %v2961
        %v3218 = vunpack.c.l.b16 %v2962
        %v3219 = vunpack.c.l.b16 %v2963
        %v3220 = vunpack.c.l.b16 %v2964
        %v3221 = vunpack.c.l.b16 %v2965
        %v3222 = vunpack.c.l.b16 %v2966
        %v3223 = vunpack.c.l.b16 %v2967
        %v3224 = vunpack.c.l.b16 %v2968
        %v3225 = vunpack.c.l.b16 %v2969
        %v3226 = vunpack.c.l.b16 %v2970
        %v3227 = vunpack.c.l.b16 %v2971
        %v3228 = vunpack.c.l.b16 %v2972
        %v3229 = vunpack.c.l.b16 %v2973
        %v3230 = vunpack.c.l.b16 %v2974
        %v3231 = vunpack.c.l.b16 %v2975
        %v3232 = vunpack.c.l.b16 %v2976
        %v3233 = vunpack.c.l.b16 %v2977
        %v3234 = vunpack.c.l.b16 %v2978
        %v3235 = vunpack.c.l.b16 %v2979
        %v3236 = vunpack.c.l.b16 %v2980
        %v3237 = vunpack.c.l.b16 %v2981
        %v3238 = vpack.c.b16 %v3111, %v3110
        %v3239 = vpack.c.b16 %v3113, %v3112
        %v3240 = vpack.c.b16 %v3115, %v3114
        %v3241 = vpack.c.b16 %v3117, %v3116
        %v3242 = vpack.c.b16 %v3119, %v3118
        %v3243 = vpack.c.b16 %v3121, %v3120
        %v3244 = vpack.c.b16 %v3123, %v3122
        %v3245 = vpack.c.b16 %v3125, %v3124
        %v3246 = vpack.c.b16 %v3127, %v3126
        %v3247 = vpack.c.b16 %v3129, %v3128
        %v3248 = vpack.c.b16 %v3131, %v3130
        %v3249 = vpack.c.b16 %v3133, %v3132
        %v3250 = vpack.c.b16 %v3135, %v3134
        %v3251 = vpack.c.b16 %v3137, %v3136
        %v3252 = vpack.c.b16 %v3139, %v3138
        %v3253 = vpack.c.b16 %v3141, %v3140
        %v3254 = vpack.c.b16 %v3143, %v3142
        %v3255 = vpack.c.b16 %v3145, %v3144
        %v3256 = vpack.c.b16 %v3147, %v3146
        %v3257 = vpack.c.b16 %v3149, %v3148
        %v3258 = vpack.c.b16 %v3151, %v3150
        %v3259 = vpack.c.b16 %v3153, %v3152
        %v3260 = vpack.c.b16 %v3155, %v3154
        %v3261 = vpack.c.b16 %v3157, %v3156
        %v3262 = vpack.c.b16 %v3159, %v3158
        %v3263 = vpack.c.b16 %v3161, %v3160
        %v3264 = vpack.c.b16 %v3163, %v3162
        %v3265 = vpack.c.b16 %v3165, %v3164
        %v3266 = vpack.c.b16 %v3167, %v3166
        %v3267 = vpack.c.b16 %v3169, %v3168
        %v3268 = vpack.c.b16 %v3171, %v3170
        %v3269 = vpack.c.b16 %v3173, %v3172
        %v3270 = vpack.c.b16 %v3175, %v3174
        %v3271 = vpack.c.b16 %v3177, %v3176
        %v3272 = vpack.c.b16 %v3179, %v3178
        %v3273 = vpack.c.b16 %v3181, %v3180
        %v3274 = vpack.c.b16 %v3183, %v3182
        %v3275 = vpack.c.b16 %v3185, %v3184
        %v3276 = vpack.c.b16 %v3187, %v3186
        %v3277 = vpack.c.b16 %v3189, %v3188
        %v3278 = vpack.c.b16 %v3191, %v3190
        %v3279 = vpack.c.b16 %v3193, %v3192
        %v3280 = vpack.c.b16 %v3195, %v3194
        %v3281 = vpack.c.b16 %v3197, %v3196
        %v3282 = vpack.c.b16 %v3199, %v3198
        %v3283 = vpack.c.b16 %v3201, %v3200
        %v3284 = vpack.c.b16 %v3203, %v3202
        %v3285 = vpack.c.b16 %v3205, %v3204
        %v3286 = vpack.c.b16 %v3207, %v3206
        %v3287 = vpack.c.b16 %v3209, %v3208
        %v3288 = vpack.c.b16 %v3211, %v3210
        %v3289 = vpack.c.b16 %v3213, %v3212
        %v3290 = vpack.c.b16 %v3215, %v3214
        %v3291 = vpack.c.b16 %v3217, %v3216
        %v3292 = vpack.c.b16 %v3219, %v3218
        %v3293 = vpack.c.b16 %v3221, %v3220
        %v3294 = vpack.c.b16 %v3223, %v3222
        %v3295 = vpack.c.b16 %v3225, %v3224
        %v3296 = vpack.c.b16 %v3227, %v3226
        %v3297 = vpack.c.b16 %v3229, %v3228
        %v3298 = vpack.c.b16 %v3231, %v3230
        %v3299 = vpack.c.b16 %v3233, %v3232
        %v3300 = vpack.c.b16 %v3235, %v3234
        %v3301 = vpack.c.b16 %v3237, %v3236
        %3366 = vmatprep.subr.bf16.mxu0 0
        %3367 = vmatpush1.bf16.msra.mxu0 %v3245
        %3368 = vmatprep.subr.bf16.mxu0 0
        %3369 = vmatpush1.bf16.msra.mxu0 %v3244
        %3370 = vmatprep.subr.bf16.mxu0 0
        %3371 = vmatpush1.bf16.msra.mxu0 %v3243
        %3372 = vmatprep.subr.bf16.mxu0 0
        %3373 = vmatpush1.bf16.msra.mxu0 %v3242
        %3374 = vmatprep.subr.bf16.mxu0 0
        %3375 = vmatpush1.bf16.msra.mxu0 %v3241
        %3376 = vmatprep.subr.bf16.mxu0 0
        %3377 = vmatpush1.bf16.msra.mxu0 %v3240
        %3378 = vmatprep.subr.bf16.mxu0 0
        %3379 = vmatpush1.bf16.msra.mxu0 %v3239
        %3380 = vmatprep.subr.bf16.mxu0 0
        %3381 = vmatpush1.bf16.msra.mxu0 %v3238
        %3382 = vmatprep.subr.bf16.mxu0 0
        %3383 = vmatpush2.bf16.msra.mxu0 %v3253
        %3384 = vmatprep.subr.bf16.mxu0 0
        %3385 = vmatpush2.bf16.msra.mxu0 %v3252
        %3386 = vmatprep.subr.bf16.mxu0 0
        %3387 = vmatpush2.bf16.msra.mxu0 %v3251
        %3388 = vmatprep.subr.bf16.mxu0 0
        %3389 = vmatpush2.bf16.msra.mxu0 %v3250
        %3390 = vmatprep.subr.bf16.mxu0 0
        %3391 = vmatpush2.bf16.msra.mxu0 %v3249
        %3392 = vmatprep.subr.bf16.mxu0 0
        %3393 = vmatpush2.bf16.msra.mxu0 %v3248
        %3394 = vmatprep.subr.bf16.mxu0 0
        %3395 = vmatpush2.bf16.msra.mxu0 %v3247
        %3396 = vmatprep.subr.bf16.mxu0 0
        %3397 = vmatpush2.bf16.msra.mxu0 %v3246
        %3398 = vmatprep.mubr.bf16.mxu0 %v2727
        %3399 = vmatmul.mubr.bf16.gmra.mxu0 %v2726
        %v3400 = vpop.f32.mrf.mxu0
        %v3401 = vadd.f32 0.0, %v3400
        %v3402 = vpop.f32.mrf.mxu0
        %v3403 = vpop.f32.mrf.mxu0
        %v3404 = vadd.f32 0.0, %v3403
        %v3405 = vpop.f32.mrf.mxu0
        %3406 = vmatprep.mubr.bf16.mxu0 %v2735
        %3407 = vmatmul.mubr.bf16.gmra.mxu0 %v2734
        %v3408 = vpop.f32.mrf.mxu0
        %v3409 = vadd.f32 0.0, %v3408
        %v3410 = vpop.f32.mrf.mxu0
        %v3411 = vpop.f32.mrf.mxu0
        %v3412 = vadd.f32 0.0, %v3411
        %v3413 = vpop.f32.mrf.mxu0
        %3414 = vmatprep.mubr.bf16.mxu0 %v2743
        %3415 = vmatmul.mubr.bf16.gmra.mxu0 %v2742
        %v3416 = vpop.f32.mrf.mxu0
        %v3417 = vadd.f32 0.0, %v3416
        %v3418 = vpop.f32.mrf.mxu0
        %v3419 = vpop.f32.mrf.mxu0
        %v3420 = vadd.f32 0.0, %v3419
        %v3421 = vpop.f32.mrf.mxu0
        %3422 = vmatprep.mubr.bf16.mxu0 %v2751
        %3423 = vmatmul.mubr.bf16.gmra.mxu0 %v2750
        %v3424 = vpop.f32.mrf.mxu0
        %v3425 = vadd.f32 0.0, %v3424
        %v3426 = vpop.f32.mrf.mxu0
        %v3427 = vpop.f32.mrf.mxu0
        %v3428 = vadd.f32 0.0, %v3427
        %v3429 = vpop.f32.mrf.mxu0
        %3430 = vmatprep.mubr.bf16.mxu0 %v2759
        %3431 = vmatmul.mubr.bf16.gmra.mxu0 %v2758
        %v3432 = vpop.f32.mrf.mxu0
        %v3433 = vadd.f32 0.0, %v3432
        %v3434 = vpop.f32.mrf.mxu0
        %v3435 = vpop.f32.mrf.mxu0
        %v3436 = vadd.f32 0.0, %v3435
        %v3437 = vpop.f32.mrf.mxu0
        %3438 = vmatprep.mubr.bf16.mxu0 %v2767
        %3439 = vmatmul.mubr.bf16.gmra.mxu0 %v2766
        %v3440 = vpop.f32.mrf.mxu0
        %v3441 = vadd.f32 0.0, %v3440
        %v3442 = vpop.f32.mrf.mxu0
        %v3443 = vpop.f32.mrf.mxu0
        %v3444 = vadd.f32 0.0, %v3443
        %v3445 = vpop.f32.mrf.mxu0
        %3446 = vmatprep.mubr.bf16.mxu0 %v2775
        %3447 = vmatmul.mubr.bf16.gmra.mxu0 %v2774
        %v3448 = vpop.f32.mrf.mxu0
        %v3449 = vadd.f32 0.0, %v3448
        %v3450 = vpop.f32.mrf.mxu0
        %v3451 = vpop.f32.mrf.mxu0
        %v3452 = vadd.f32 0.0, %v3451
        %v3453 = vpop.f32.mrf.mxu0
        %3454 = vmatprep.mubr.bf16.mxu0 %v2783
        %3455 = vmatmul.mubr.bf16.gmra.mxu0 %v2782
        %v3456 = vpop.f32.mrf.mxu0
        %v3457 = vadd.f32 0.0, %v3456
        %v3458 = vpop.f32.mrf.mxu0
        %v3459 = vpop.f32.mrf.mxu0
        %v3460 = vadd.f32 0.0, %v3459
        %v3461 = vpop.f32.mrf.mxu0
        %3462 = vmatprep.mubr.bf16.mxu0 %v2791
        %3463 = vmatmul.mubr.bf16.gmra.mxu0 %v2790
        %v3464 = vpop.f32.mrf.mxu0
        %v3465 = vadd.f32 0.0, %v3464
        %v3466 = vpop.f32.mrf.mxu0
        %v3467 = vpop.f32.mrf.mxu0
        %v3468 = vadd.f32 0.0, %v3467
        %v3469 = vpop.f32.mrf.mxu0
        %3470 = vmatprep.mubr.bf16.mxu0 %v2799
        %3471 = vmatmul.mubr.bf16.gmra.mxu0 %v2798
        %v3472 = vpop.f32.mrf.mxu0
        %v3473 = vadd.f32 0.0, %v3472
        %v3474 = vpop.f32.mrf.mxu0
        %v3475 = vpop.f32.mrf.mxu0
        %v3476 = vadd.f32 0.0, %v3475
        %v3477 = vpop.f32.mrf.mxu0
        %3478 = vmatprep.mubr.bf16.mxu0 %v2807
        %3479 = vmatmul.mubr.bf16.gmra.mxu0 %v2806
        %v3480 = vpop.f32.mrf.mxu0
        %v3481 = vadd.f32 0.0, %v3480
        %v3482 = vpop.f32.mrf.mxu0
        %v3483 = vpop.f32.mrf.mxu0
        %v3484 = vadd.f32 0.0, %v3483
        %v3485 = vpop.f32.mrf.mxu0
        %3486 = vmatprep.mubr.bf16.mxu0 %v2815
        %3487 = vmatmul.mubr.bf16.gmra.mxu0 %v2814
        %v3488 = vpop.f32.mrf.mxu0
        %v3489 = vadd.f32 0.0, %v3488
        %v3490 = vpop.f32.mrf.mxu0
        %v3491 = vpop.f32.mrf.mxu0
        %v3492 = vadd.f32 0.0, %v3491
        %v3493 = vpop.f32.mrf.mxu0
        %3494 = vmatprep.mubr.bf16.mxu0 %v2823
        %3495 = vmatmul.mubr.bf16.gmra.mxu0 %v2822
        %v3496 = vpop.f32.mrf.mxu0
        %v3497 = vadd.f32 0.0, %v3496
        %v3498 = vpop.f32.mrf.mxu0
        %v3499 = vpop.f32.mrf.mxu0
        %v3500 = vadd.f32 0.0, %v3499
        %v3501 = vpop.f32.mrf.mxu0
        %3502 = vmatprep.mubr.bf16.mxu0 %v2831
        %3503 = vmatmul.mubr.bf16.gmra.mxu0 %v2830
        %v3504 = vpop.f32.mrf.mxu0
        %v3505 = vadd.f32 0.0, %v3504
        %v3506 = vpop.f32.mrf.mxu0
        %v3507 = vpop.f32.mrf.mxu0
        %v3508 = vadd.f32 0.0, %v3507
        %v3509 = vpop.f32.mrf.mxu0
        %3510 = vmatprep.mubr.bf16.mxu0 %v2839
        %3511 = vmatmul.mubr.bf16.gmra.mxu0 %v2838
        %v3512 = vpop.f32.mrf.mxu0
        %v3513 = vadd.f32 0.0, %v3512
        %v3514 = vpop.f32.mrf.mxu0
        %v3515 = vpop.f32.mrf.mxu0
        %v3516 = vadd.f32 0.0, %v3515
        %v3517 = vpop.f32.mrf.mxu0
        %3518 = vmatprep.mubr.bf16.mxu0 %v2847
        %3519 = vmatmul.mubr.bf16.gmra.mxu0 %v2846
        %v3520 = vpop.f32.mrf.mxu0
        %v3521 = vadd.f32 0.0, %v3520
        %v3522 = vpop.f32.mrf.mxu0
        %v3523 = vpop.f32.mrf.mxu0
        %v3524 = vadd.f32 0.0, %v3523
        %v3525 = vpop.f32.mrf.mxu0
        %3526 = vdwg.mxu0
        %3527 = vmatprep.subr.bf16.mxu0 0
        %3528 = vmatpush1.bf16.msra.mxu0 %v3261
        %3529 = vmatprep.subr.bf16.mxu0 0
        %3530 = vmatpush1.bf16.msra.mxu0 %v3260
        %3531 = vmatprep.subr.bf16.mxu0 0
        %3532 = vmatpush1.bf16.msra.mxu0 %v3259
        %3533 = vmatprep.subr.bf16.mxu0 0
        %3534 = vmatpush1.bf16.msra.mxu0 %v3258
        %3535 = vmatprep.subr.bf16.mxu0 0
        %3536 = vmatpush1.bf16.msra.mxu0 %v3257
        %3537 = vmatprep.subr.bf16.mxu0 0
        %3538 = vmatpush1.bf16.msra.mxu0 %v3256
        %3539 = vmatprep.subr.bf16.mxu0 0
        %3540 = vmatpush1.bf16.msra.mxu0 %v3255
        %3541 = vmatprep.subr.bf16.mxu0 0
        %3542 = vmatpush1.bf16.msra.mxu0 %v3254
        %3543 = vmatprep.subr.bf16.mxu0 0
        %3544 = vmatpush2.bf16.msra.mxu0 %v3269
        %3545 = vmatprep.subr.bf16.mxu0 0
        %3546 = vmatpush2.bf16.msra.mxu0 %v3268
        %3547 = vmatprep.subr.bf16.mxu0 0
        %3548 = vmatpush2.bf16.msra.mxu0 %v3267
        %3549 = vmatprep.subr.bf16.mxu0 0
        %3550 = vmatpush2.bf16.msra.mxu0 %v3266
        %3551 = vmatprep.subr.bf16.mxu0 0
        %3552 = vmatpush2.bf16.msra.mxu0 %v3265
        %3553 = vmatprep.subr.bf16.mxu0 0
        %3554 = vmatpush2.bf16.msra.mxu0 %v3264
        %3555 = vmatprep.subr.bf16.mxu0 0
        %3556 = vmatpush2.bf16.msra.mxu0 %v3263
        %3557 = vmatprep.subr.bf16.mxu0 0
        %3558 = vmatpush2.bf16.msra.mxu0 %v3262
        %3559 = vmatprep.mubr.bf16.mxu0 %v2729
        %3560 = vmatmul.mubr.bf16.gmra.mxu0 %v2728
        %v3561 = vpop.f32.mrf.mxu0
        %v3562 = vadd.f32 %v3401, %v3561
        %v3563 = vpop.f32.mrf.mxu0
        %v3564 = vpop.f32.mrf.mxu0
        %v3565 = vadd.f32 %v3404, %v3564
        %v3566 = vpop.f32.mrf.mxu0
        %3567 = vmatprep.mubr.bf16.mxu0 %v2737
        %3568 = vmatmul.mubr.bf16.gmra.mxu0 %v2736
        %v3569 = vpop.f32.mrf.mxu0
        %v3570 = vadd.f32 %v3409, %v3569
        %v3571 = vpop.f32.mrf.mxu0
        %v3572 = vpop.f32.mrf.mxu0
        %v3573 = vadd.f32 %v3412, %v3572
        %v3574 = vpop.f32.mrf.mxu0
        %3575 = vmatprep.mubr.bf16.mxu0 %v2745
        %3576 = vmatmul.mubr.bf16.gmra.mxu0 %v2744
        %v3577 = vpop.f32.mrf.mxu0
        %v3578 = vadd.f32 %v3417, %v3577
        %v3579 = vpop.f32.mrf.mxu0
        %v3580 = vpop.f32.mrf.mxu0
        %v3581 = vadd.f32 %v3420, %v3580
        %v3582 = vpop.f32.mrf.mxu0
        %3583 = vmatprep.mubr.bf16.mxu0 %v2753
        %3584 = vmatmul.mubr.bf16.gmra.mxu0 %v2752
        %v3585 = vpop.f32.mrf.mxu0
        %v3586 = vadd.f32 %v3425, %v3585
        %v3587 = vpop.f32.mrf.mxu0
        %v3588 = vpop.f32.mrf.mxu0
        %v3589 = vadd.f32 %v3428, %v3588
        %v3590 = vpop.f32.mrf.mxu0
        %3591 = vmatprep.mubr.bf16.mxu0 %v2761
        %3592 = vmatmul.mubr.bf16.gmra.mxu0 %v2760
        %v3593 = vpop.f32.mrf.mxu0
        %v3594 = vadd.f32 %v3433, %v3593
        %v3595 = vpop.f32.mrf.mxu0
        %v3596 = vpop.f32.mrf.mxu0
        %v3597 = vadd.f32 %v3436, %v3596
        %v3598 = vpop.f32.mrf.mxu0
        %3599 = vmatprep.mubr.bf16.mxu0 %v2769
        %3600 = vmatmul.mubr.bf16.gmra.mxu0 %v2768
        %v3601 = vpop.f32.mrf.mxu0
        %v3602 = vadd.f32 %v3441, %v3601
        %v3603 = vpop.f32.mrf.mxu0
        %v3604 = vpop.f32.mrf.mxu0
        %v3605 = vadd.f32 %v3444, %v3604
        %v3606 = vpop.f32.mrf.mxu0
        %3607 = vmatprep.mubr.bf16.mxu0 %v2777
        %3608 = vmatmul.mubr.bf16.gmra.mxu0 %v2776
        %v3609 = vpop.f32.mrf.mxu0
        %v3610 = vadd.f32 %v3449, %v3609
        %v3611 = vpop.f32.mrf.mxu0
        %v3612 = vpop.f32.mrf.mxu0
        %v3613 = vadd.f32 %v3452, %v3612
        %v3614 = vpop.f32.mrf.mxu0
        %3615 = vmatprep.mubr.bf16.mxu0 %v2785
        %3616 = vmatmul.mubr.bf16.gmra.mxu0 %v2784
        %v3617 = vpop.f32.mrf.mxu0
        %v3618 = vadd.f32 %v3457, %v3617
        %v3619 = vpop.f32.mrf.mxu0
        %v3620 = vpop.f32.mrf.mxu0
        %v3621 = vadd.f32 %v3460, %v3620
        %v3622 = vpop.f32.mrf.mxu0
        %3623 = vmatprep.mubr.bf16.mxu0 %v2793
        %3624 = vmatmul.mubr.bf16.gmra.mxu0 %v2792
        %v3625 = vpop.f32.mrf.mxu0
        %v3626 = vadd.f32 %v3465, %v3625
        %v3627 = vpop.f32.mrf.mxu0
        %v3628 = vpop.f32.mrf.mxu0
        %v3629 = vadd.f32 %v3468, %v3628
        %v3630 = vpop.f32.mrf.mxu0
        %3631 = vmatprep.mubr.bf16.mxu0 %v2801
        %3632 = vmatmul.mubr.bf16.gmra.mxu0 %v2800
        %v3633 = vpop.f32.mrf.mxu0
        %v3634 = vadd.f32 %v3473, %v3633
        %v3635 = vpop.f32.mrf.mxu0
        %v3636 = vpop.f32.mrf.mxu0
        %v3637 = vadd.f32 %v3476, %v3636
        %v3638 = vpop.f32.mrf.mxu0
        %3639 = vmatprep.mubr.bf16.mxu0 %v2809
        %3640 = vmatmul.mubr.bf16.gmra.mxu0 %v2808
        %v3641 = vpop.f32.mrf.mxu0
        %v3642 = vadd.f32 %v3481, %v3641
        %v3643 = vpop.f32.mrf.mxu0
        %v3644 = vpop.f32.mrf.mxu0
        %v3645 = vadd.f32 %v3484, %v3644
        %v3646 = vpop.f32.mrf.mxu0
        %3647 = vmatprep.mubr.bf16.mxu0 %v2817
        %3648 = vmatmul.mubr.bf16.gmra.mxu0 %v2816
        %v3649 = vpop.f32.mrf.mxu0
        %v3650 = vadd.f32 %v3489, %v3649
        %v3651 = vpop.f32.mrf.mxu0
        %v3652 = vpop.f32.mrf.mxu0
        %v3653 = vadd.f32 %v3492, %v3652
        %v3654 = vpop.f32.mrf.mxu0
        %3655 = vmatprep.mubr.bf16.mxu0 %v2825
        %3656 = vmatmul.mubr.bf16.gmra.mxu0 %v2824
        %v3657 = vpop.f32.mrf.mxu0
        %v3658 = vadd.f32 %v3497, %v3657
        %v3659 = vpop.f32.mrf.mxu0
        %v3660 = vpop.f32.mrf.mxu0
        %v3661 = vadd.f32 %v3500, %v3660
        %v3662 = vpop.f32.mrf.mxu0
        %3663 = vmatprep.mubr.bf16.mxu0 %v2833
        %3664 = vmatmul.mubr.bf16.gmra.mxu0 %v2832
        %v3665 = vpop.f32.mrf.mxu0
        %v3666 = vadd.f32 %v3505, %v3665
        %v3667 = vpop.f32.mrf.mxu0
        %v3668 = vpop.f32.mrf.mxu0
        %v3669 = vadd.f32 %v3508, %v3668
        %v3670 = vpop.f32.mrf.mxu0
        %3671 = vmatprep.mubr.bf16.mxu0 %v2841
        %3672 = vmatmul.mubr.bf16.gmra.mxu0 %v2840
        %v3673 = vpop.f32.mrf.mxu0
        %v3674 = vadd.f32 %v3513, %v3673
        %v3675 = vpop.f32.mrf.mxu0
        %v3676 = vpop.f32.mrf.mxu0
        %v3677 = vadd.f32 %v3516, %v3676
        %v3678 = vpop.f32.mrf.mxu0
        %3679 = vmatprep.mubr.bf16.mxu0 %v2849
        %3680 = vmatmul.mubr.bf16.gmra.mxu0 %v2848
        %v3681 = vpop.f32.mrf.mxu0
        %v3682 = vadd.f32 %v3521, %v3681
        %v3683 = vpop.f32.mrf.mxu0
        %v3684 = vpop.f32.mrf.mxu0
        %v3685 = vadd.f32 %v3524, %v3684
        %v3686 = vpop.f32.mrf.mxu0
        %3687 = vdwg.mxu0
        %3688 = vmatprep.subr.bf16.mxu0 0
        %3689 = vmatpush1.bf16.msra.mxu0 %v3277
        %3690 = vmatprep.subr.bf16.mxu0 0
        %3691 = vmatpush1.bf16.msra.mxu0 %v3276
        %3692 = vmatprep.subr.bf16.mxu0 0
        %3693 = vmatpush1.bf16.msra.mxu0 %v3275
        %3694 = vmatprep.subr.bf16.mxu0 0
        %3695 = vmatpush1.bf16.msra.mxu0 %v3274
        %3696 = vmatprep.subr.bf16.mxu0 0
        %3697 = vmatpush1.bf16.msra.mxu0 %v3273
        %3698 = vmatprep.subr.bf16.mxu0 0
        %3699 = vmatpush1.bf16.msra.mxu0 %v3272
        %3700 = vmatprep.subr.bf16.mxu0 0
        %3701 = vmatpush1.bf16.msra.mxu0 %v3271
        %3702 = vmatprep.subr.bf16.mxu0 0
        %3703 = vmatpush1.bf16.msra.mxu0 %v3270
        %3704 = vmatprep.subr.bf16.mxu0 0
        %3705 = vmatpush2.bf16.msra.mxu0 %v3285
        %3706 = vmatprep.subr.bf16.mxu0 0
        %3707 = vmatpush2.bf16.msra.mxu0 %v3284
        %3708 = vmatprep.subr.bf16.mxu0 0
        %3709 = vmatpush2.bf16.msra.mxu0 %v3283
        %3710 = vmatprep.subr.bf16.mxu0 0
        %3711 = vmatpush2.bf16.msra.mxu0 %v3282
        %3712 = vmatprep.subr.bf16.mxu0 0
        %3713 = vmatpush2.bf16.msra.mxu0 %v3281
        %3714 = vmatprep.subr.bf16.mxu0 0
        %3715 = vmatpush2.bf16.msra.mxu0 %v3280
        %3716 = vmatprep.subr.bf16.mxu0 0
        %3717 = vmatpush2.bf16.msra.mxu0 %v3279
        %3718 = vmatprep.subr.bf16.mxu0 0
        %3719 = vmatpush2.bf16.msra.mxu0 %v3278
        %3720 = vmatprep.mubr.bf16.mxu0 %v2731
        %3721 = vmatmul.mubr.bf16.gmra.mxu0 %v2730
        %v3722 = vpop.f32.mrf.mxu0
        %v3723 = vadd.f32 %v3562, %v3722
        %v3724 = vpop.f32.mrf.mxu0
        %v3725 = vpop.f32.mrf.mxu0
        %v3726 = vadd.f32 %v3565, %v3725
        %v3727 = vpop.f32.mrf.mxu0
        %3728 = vmatprep.mubr.bf16.mxu0 %v2739
        %3729 = vmatmul.mubr.bf16.gmra.mxu0 %v2738
        %v3730 = vpop.f32.mrf.mxu0
        %v3731 = vadd.f32 %v3570, %v3730
        %v3732 = vpop.f32.mrf.mxu0
        %v3733 = vpop.f32.mrf.mxu0
        %v3734 = vadd.f32 %v3573, %v3733
        %v3735 = vpop.f32.mrf.mxu0
        %3736 = vmatprep.mubr.bf16.mxu0 %v2747
        %3737 = vmatmul.mubr.bf16.gmra.mxu0 %v2746
        %v3738 = vpop.f32.mrf.mxu0
        %v3739 = vadd.f32 %v3578, %v3738
        %v3740 = vpop.f32.mrf.mxu0
        %v3741 = vpop.f32.mrf.mxu0
        %v3742 = vadd.f32 %v3581, %v3741
        %v3743 = vpop.f32.mrf.mxu0
        %3744 = vmatprep.mubr.bf16.mxu0 %v2755
        %3745 = vmatmul.mubr.bf16.gmra.mxu0 %v2754
        %v3746 = vpop.f32.mrf.mxu0
        %v3747 = vadd.f32 %v3586, %v3746
        %v3748 = vpop.f32.mrf.mxu0
        %v3749 = vpop.f32.mrf.mxu0
        %v3750 = vadd.f32 %v3589, %v3749
        %v3751 = vpop.f32.mrf.mxu0
        %3752 = vmatprep.mubr.bf16.mxu0 %v2763
        %3753 = vmatmul.mubr.bf16.gmra.mxu0 %v2762
        %v3754 = vpop.f32.mrf.mxu0
        %v3755 = vadd.f32 %v3594, %v3754
        %v3756 = vpop.f32.mrf.mxu0
        %v3757 = vpop.f32.mrf.mxu0
        %v3758 = vadd.f32 %v3597, %v3757
        %v3759 = vpop.f32.mrf.mxu0
        %3760 = vmatprep.mubr.bf16.mxu0 %v2771
        %3761 = vmatmul.mubr.bf16.gmra.mxu0 %v2770
        %v3762 = vpop.f32.mrf.mxu0
        %v3763 = vadd.f32 %v3602, %v3762
        %v3764 = vpop.f32.mrf.mxu0
        %v3765 = vpop.f32.mrf.mxu0
        %v3766 = vadd.f32 %v3605, %v3765
        %v3767 = vpop.f32.mrf.mxu0
        %3768 = vmatprep.mubr.bf16.mxu0 %v2779
        %3769 = vmatmul.mubr.bf16.gmra.mxu0 %v2778
        %v3770 = vpop.f32.mrf.mxu0
        %v3771 = vadd.f32 %v3610, %v3770
        %v3772 = vpop.f32.mrf.mxu0
        %v3773 = vpop.f32.mrf.mxu0
        %v3774 = vadd.f32 %v3613, %v3773
        %v3775 = vpop.f32.mrf.mxu0
        %3776 = vmatprep.mubr.bf16.mxu0 %v2787
        %3777 = vmatmul.mubr.bf16.gmra.mxu0 %v2786
        %v3778 = vpop.f32.mrf.mxu0
        %v3779 = vadd.f32 %v3618, %v3778
        %v3780 = vpop.f32.mrf.mxu0
        %v3781 = vpop.f32.mrf.mxu0
        %v3782 = vadd.f32 %v3621, %v3781
        %v3783 = vpop.f32.mrf.mxu0
        %3784 = vmatprep.mubr.bf16.mxu0 %v2795
        %3785 = vmatmul.mubr.bf16.gmra.mxu0 %v2794
        %v3786 = vpop.f32.mrf.mxu0
        %v3787 = vadd.f32 %v3626, %v3786
        %v3788 = vpop.f32.mrf.mxu0
        %v3789 = vpop.f32.mrf.mxu0
        %v3790 = vadd.f32 %v3629, %v3789
        %v3791 = vpop.f32.mrf.mxu0
        %3792 = vmatprep.mubr.bf16.mxu0 %v2803
        %3793 = vmatmul.mubr.bf16.gmra.mxu0 %v2802
        %v3794 = vpop.f32.mrf.mxu0
        %v3795 = vadd.f32 %v3634, %v3794
        %v3796 = vpop.f32.mrf.mxu0
        %v3797 = vpop.f32.mrf.mxu0
        %v3798 = vadd.f32 %v3637, %v3797
        %v3799 = vpop.f32.mrf.mxu0
        %3800 = vmatprep.mubr.bf16.mxu0 %v2811
        %3801 = vmatmul.mubr.bf16.gmra.mxu0 %v2810
        %v3802 = vpop.f32.mrf.mxu0
        %v3803 = vadd.f32 %v3642, %v3802
        %v3804 = vpop.f32.mrf.mxu0
        %v3805 = vpop.f32.mrf.mxu0
        %v3806 = vadd.f32 %v3645, %v3805
        %v3807 = vpop.f32.mrf.mxu0
        %3808 = vmatprep.mubr.bf16.mxu0 %v2819
        %3809 = vmatmul.mubr.bf16.gmra.mxu0 %v2818
        %v3810 = vpop.f32.mrf.mxu0
        %v3811 = vadd.f32 %v3650, %v3810
        %v3812 = vpop.f32.mrf.mxu0
        %v3813 = vpop.f32.mrf.mxu0
        %v3814 = vadd.f32 %v3653, %v3813
        %v3815 = vpop.f32.mrf.mxu0
        %3816 = vmatprep.mubr.bf16.mxu0 %v2827
        %3817 = vmatmul.mubr.bf16.gmra.mxu0 %v2826
        %v3818 = vpop.f32.mrf.mxu0
        %v3819 = vadd.f32 %v3658, %v3818
        %v3820 = vpop.f32.mrf.mxu0
        %v3821 = vpop.f32.mrf.mxu0
        %v3822 = vadd.f32 %v3661, %v3821
        %v3823 = vpop.f32.mrf.mxu0
        %3824 = vmatprep.mubr.bf16.mxu0 %v2835
        %3825 = vmatmul.mubr.bf16.gmra.mxu0 %v2834
        %v3826 = vpop.f32.mrf.mxu0
        %v3827 = vadd.f32 %v3666, %v3826
        %v3828 = vpop.f32.mrf.mxu0
        %v3829 = vpop.f32.mrf.mxu0
        %v3830 = vadd.f32 %v3669, %v3829
        %v3831 = vpop.f32.mrf.mxu0
        %3832 = vmatprep.mubr.bf16.mxu0 %v2843
        %3833 = vmatmul.mubr.bf16.gmra.mxu0 %v2842
        %v3834 = vpop.f32.mrf.mxu0
        %v3835 = vadd.f32 %v3674, %v3834
        %v3836 = vpop.f32.mrf.mxu0
        %v3837 = vpop.f32.mrf.mxu0
        %v3838 = vadd.f32 %v3677, %v3837
        %v3839 = vpop.f32.mrf.mxu0
        %3840 = vmatprep.mubr.bf16.mxu0 %v2851
        %3841 = vmatmul.mubr.bf16.gmra.mxu0 %v2850
        %v3842 = vpop.f32.mrf.mxu0
        %v3843 = vadd.f32 %v3682, %v3842
        %v3844 = vpop.f32.mrf.mxu0
        %v3845 = vpop.f32.mrf.mxu0
        %v3846 = vadd.f32 %v3685, %v3845
        %v3847 = vpop.f32.mrf.mxu0
        %3848 = vdwg.mxu0
        %3849 = vmatprep.subr.bf16.mxu0 0
        %3850 = vmatpush1.bf16.msra.mxu0 %v3293
        %3851 = vmatprep.subr.bf16.mxu0 0
        %3852 = vmatpush1.bf16.msra.mxu0 %v3292
        %3853 = vmatprep.subr.bf16.mxu0 0
        %3854 = vmatpush1.bf16.msra.mxu0 %v3291
        %3855 = vmatprep.subr.bf16.mxu0 0
        %3856 = vmatpush1.bf16.msra.mxu0 %v3290
        %3857 = vmatprep.subr.bf16.mxu0 0
        %3858 = vmatpush1.bf16.msra.mxu0 %v3289
        %3859 = vmatprep.subr.bf16.mxu0 0
        %3860 = vmatpush1.bf16.msra.mxu0 %v3288
        %3861 = vmatprep.subr.bf16.mxu0 0
        %3862 = vmatpush1.bf16.msra.mxu0 %v3287
        %3863 = vmatprep.subr.bf16.mxu0 0
        %3864 = vmatpush1.bf16.msra.mxu0 %v3286
        %3865 = vmatprep.subr.bf16.mxu0 0
        %3866 = vmatpush2.bf16.msra.mxu0 %v3301
        %3867 = vmatprep.subr.bf16.mxu0 0
        %3868 = vmatpush2.bf16.msra.mxu0 %v3300
        %3869 = vmatprep.subr.bf16.mxu0 0
        %3870 = vmatpush2.bf16.msra.mxu0 %v3299
        %3871 = vmatprep.subr.bf16.mxu0 0
        %3872 = vmatpush2.bf16.msra.mxu0 %v3298
        %3873 = vmatprep.subr.bf16.mxu0 0
        %3874 = vmatpush2.bf16.msra.mxu0 %v3297
        %3875 = vmatprep.subr.bf16.mxu0 0
        %3876 = vmatpush2.bf16.msra.mxu0 %v3296
        %3877 = vmatprep.subr.bf16.mxu0 0
        %3878 = vmatpush2.bf16.msra.mxu0 %v3295
        %3879 = vmatprep.subr.bf16.mxu0 0
        %3880 = vmatpush2.bf16.msra.mxu0 %v3294
        %3881 = vmatprep.mubr.bf16.mxu0 %v2733
        %3882 = vmatmul.mubr.bf16.gmra.mxu0 %v2732
        %v3883 = vpop.f32.mrf.mxu0
        %v3884 = vadd.f32 %v3723, %v3883
        %v3885 = vpop.f32.mrf.mxu0
        %v3886 = vpop.f32.mrf.mxu0
        %v3887 = vadd.f32 %v3726, %v3886
        %v3888 = vpop.f32.mrf.mxu0
        %3889 = vmatprep.mubr.bf16.mxu0 %v2741
        %3890 = vmatmul.mubr.bf16.gmra.mxu0 %v2740
        %v3891 = vpop.f32.mrf.mxu0
        %v3892 = vadd.f32 %v3731, %v3891
        %v3893 = vpop.f32.mrf.mxu0
        %v3894 = vpop.f32.mrf.mxu0
        %v3895 = vadd.f32 %v3734, %v3894
        %v3896 = vpop.f32.mrf.mxu0
        %3897 = vmatprep.mubr.bf16.mxu0 %v2749
        %3898 = vmatmul.mubr.bf16.gmra.mxu0 %v2748
        %v3899 = vpop.f32.mrf.mxu0
        %v3900 = vadd.f32 %v3739, %v3899
        %v3901 = vpop.f32.mrf.mxu0
        %v3902 = vpop.f32.mrf.mxu0
        %v3903 = vadd.f32 %v3742, %v3902
        %v3904 = vpop.f32.mrf.mxu0
        %3905 = vmatprep.mubr.bf16.mxu0 %v2757
        %3906 = vmatmul.mubr.bf16.gmra.mxu0 %v2756
        %v3907 = vpop.f32.mrf.mxu0
        %v3908 = vadd.f32 %v3747, %v3907
        %v3909 = vpop.f32.mrf.mxu0
        %v3910 = vpop.f32.mrf.mxu0
        %v3911 = vadd.f32 %v3750, %v3910
        %v3912 = vpop.f32.mrf.mxu0
        %3913 = vmatprep.mubr.bf16.mxu0 %v2765
        %3914 = vmatmul.mubr.bf16.gmra.mxu0 %v2764
        %v3915 = vpop.f32.mrf.mxu0
        %v3916 = vadd.f32 %v3755, %v3915
        %v3917 = vpop.f32.mrf.mxu0
        %v3918 = vpop.f32.mrf.mxu0
        %v3919 = vadd.f32 %v3758, %v3918
        %v3920 = vpop.f32.mrf.mxu0
        %3921 = vmatprep.mubr.bf16.mxu0 %v2773
        %3922 = vmatmul.mubr.bf16.gmra.mxu0 %v2772
        %v3923 = vpop.f32.mrf.mxu0
        %v3924 = vadd.f32 %v3763, %v3923
        %v3925 = vpop.f32.mrf.mxu0
        %v3926 = vpop.f32.mrf.mxu0
        %v3927 = vadd.f32 %v3766, %v3926
        %v3928 = vpop.f32.mrf.mxu0
        %3929 = vmatprep.mubr.bf16.mxu0 %v2781
        %3930 = vmatmul.mubr.bf16.gmra.mxu0 %v2780
        %v3931 = vpop.f32.mrf.mxu0
        %v3932 = vadd.f32 %v3771, %v3931
        %v3933 = vpop.f32.mrf.mxu0
        %v3934 = vpop.f32.mrf.mxu0
        %v3935 = vadd.f32 %v3774, %v3934
        %v3936 = vpop.f32.mrf.mxu0
        %3937 = vmatprep.mubr.bf16.mxu0 %v2789
        %3938 = vmatmul.mubr.bf16.gmra.mxu0 %v2788
        %v3939 = vpop.f32.mrf.mxu0
        %v3940 = vadd.f32 %v3779, %v3939
        %v3941 = vpop.f32.mrf.mxu0
        %v3942 = vpop.f32.mrf.mxu0
        %v3943 = vadd.f32 %v3782, %v3942
        %v3944 = vpop.f32.mrf.mxu0
        %3945 = vmatprep.mubr.bf16.mxu0 %v2797
        %3946 = vmatmul.mubr.bf16.gmra.mxu0 %v2796
        %v3947 = vpop.f32.mrf.mxu0
        %v3948 = vadd.f32 %v3787, %v3947
        %v3949 = vpop.f32.mrf.mxu0
        %v3950 = vpop.f32.mrf.mxu0
        %v3951 = vadd.f32 %v3790, %v3950
        %v3952 = vpop.f32.mrf.mxu0
        %3953 = vmatprep.mubr.bf16.mxu0 %v2805
        %3954 = vmatmul.mubr.bf16.gmra.mxu0 %v2804
        %v3955 = vpop.f32.mrf.mxu0
        %v3956 = vadd.f32 %v3795, %v3955
        %v3957 = vpop.f32.mrf.mxu0
        %v3958 = vpop.f32.mrf.mxu0
        %v3959 = vadd.f32 %v3798, %v3958
        %v3960 = vpop.f32.mrf.mxu0
        %3961 = vmatprep.mubr.bf16.mxu0 %v2813
        %3962 = vmatmul.mubr.bf16.gmra.mxu0 %v2812
        %v3963 = vpop.f32.mrf.mxu0
        %v3964 = vadd.f32 %v3803, %v3963
        %v3965 = vpop.f32.mrf.mxu0
        %v3966 = vpop.f32.mrf.mxu0
        %v3967 = vadd.f32 %v3806, %v3966
        %v3968 = vpop.f32.mrf.mxu0
        %3969 = vmatprep.mubr.bf16.mxu0 %v2821
        %3970 = vmatmul.mubr.bf16.gmra.mxu0 %v2820
        %v3971 = vpop.f32.mrf.mxu0
        %v3972 = vadd.f32 %v3811, %v3971
        %v3973 = vpop.f32.mrf.mxu0
        %v3974 = vpop.f32.mrf.mxu0
        %v3975 = vadd.f32 %v3814, %v3974
        %v3976 = vpop.f32.mrf.mxu0
        %3977 = vmatprep.mubr.bf16.mxu0 %v2829
        %3978 = vmatmul.mubr.bf16.gmra.mxu0 %v2828
        %v3979 = vpop.f32.mrf.mxu0
        %v3980 = vadd.f32 %v3819, %v3979
        %v3981 = vpop.f32.mrf.mxu0
        %v3982 = vpop.f32.mrf.mxu0
        %v3983 = vadd.f32 %v3822, %v3982
        %v3984 = vpop.f32.mrf.mxu0
        %3985 = vmatprep.mubr.bf16.mxu0 %v2837
        %3986 = vmatmul.mubr.bf16.gmra.mxu0 %v2836
        %v3987 = vpop.f32.mrf.mxu0
        %v3988 = vadd.f32 %v3827, %v3987
        %v3989 = vpop.f32.mrf.mxu0
        %v3990 = vpop.f32.mrf.mxu0
        %v3991 = vadd.f32 %v3830, %v3990
        %v3992 = vpop.f32.mrf.mxu0
        %3993 = vmatprep.mubr.bf16.mxu0 %v2845
        %3994 = vmatmul.mubr.bf16.gmra.mxu0 %v2844
        %v3995 = vpop.f32.mrf.mxu0
        %v3996 = vadd.f32 %v3835, %v3995
        %v3997 = vpop.f32.mrf.mxu0
        %v3998 = vpop.f32.mrf.mxu0
        %v3999 = vadd.f32 %v3838, %v3998
        %v4000 = vpop.f32.mrf.mxu0
        %4001 = vmatprep.mubr.bf16.mxu0 %v2853
        %4002 = vmatmul.mubr.bf16.gmra.mxu0 %v2852
        %v4003 = vpop.f32.mrf.mxu0
        %v4004 = vadd.f32 %v3843, %v4003
        %v4005 = vpop.f32.mrf.mxu0
        %v4006 = vpop.f32.mrf.mxu0
        %v4007 = vadd.f32 %v3846, %v4006
        %v4008 = vpop.f32.mrf.mxu0
        %4009 = vdwg.mxu0
        %v4010 = vld [vmem:[#allocation3] sm:$0xff]
        %v4011 = vld [vmem:[#allocation3 + $0x8] sm:$0xff]
        %v4012 = vld [vmem:[#allocation3 + $0x10] sm:$0xff]
        %v4013 = vld [vmem:[#allocation3 + $0x18] sm:$0xff]
        %v4014 = vld [vmem:[#allocation3 + $0x20] sm:$0xff]
        %v4015 = vld [vmem:[#allocation3 + $0x28] sm:$0xff]
        %v4016 = vld [vmem:[#allocation3 + $0x30] sm:$0xff]
        %v4017 = vld [vmem:[#allocation3 + $0x38] sm:$0xff]
        %v4018 = vld [vmem:[#allocation3 + $0x40] sm:$0xff]
        %v4019 = vld [vmem:[#allocation3 + $0x48] sm:$0xff]
        %v4020 = vld [vmem:[#allocation3 + $0x50] sm:$0xff]
        %v4021 = vld [vmem:[#allocation3 + $0x58] sm:$0xff]
        %v4022 = vld [vmem:[#allocation3 + $0x60] sm:$0xff]
        %v4023 = vld [vmem:[#allocation3 + $0x68] sm:$0xff]
        %v4024 = vld [vmem:[#allocation3 + $0x70] sm:$0xff]
        %v4025 = vld [vmem:[#allocation3 + $0x78] sm:$0xff]
        %v4026 = vld [vmem:[%s440] sm:$0xff]
        %v4027 = vld [vmem:[%s440 + $0x8] sm:$0xff]
        %v4028 = vld [vmem:[%s440 + $0x10] sm:$0xff]
        %v4029 = vld [vmem:[%s440 + $0x18] sm:$0xff]
        %v4030 = vld [vmem:[%s440 + $0x20] sm:$0xff]
        %v4031 = vld [vmem:[%s440 + $0x28] sm:$0xff]
        %v4032 = vld [vmem:[%s440 + $0x30] sm:$0xff]
        %v4033 = vld [vmem:[%s440 + $0x38] sm:$0xff]
        %v4034 = vld [vmem:[%s440 + $0x40] sm:$0xff]
        %v4035 = vld [vmem:[%s440 + $0x48] sm:$0xff]
        %v4036 = vld [vmem:[%s440 + $0x50] sm:$0xff]
        %v4037 = vld [vmem:[%s440 + $0x58] sm:$0xff]
        %v4038 = vld [vmem:[%s440 + $0x60] sm:$0xff]
        %v4039 = vld [vmem:[%s440 + $0x68] sm:$0xff]
        %v4040 = vld [vmem:[%s440 + $0x70] sm:$0xff]
        %v4041 = vld [vmem:[%s440 + $0x78] sm:$0xff]
        %v4042 = vpack.c.bf16 %v3887, %v3884
        %v4043 = vpack.c.bf16 %v3895, %v3892
        %v4044 = vpack.c.bf16 %v3903, %v3900
        %v4045 = vpack.c.bf16 %v3911, %v3908
        %v4046 = vpack.c.bf16 %v3919, %v3916
        %v4047 = vpack.c.bf16 %v3927, %v3924
        %v4048 = vpack.c.bf16 %v3935, %v3932
        %v4049 = vpack.c.bf16 %v3943, %v3940
        %v4050 = vpack.c.bf16 %v3951, %v3948
        %v4051 = vpack.c.bf16 %v3959, %v3956
        %v4052 = vpack.c.bf16 %v3967, %v3964
        %v4053 = vpack.c.bf16 %v3975, %v3972
        %v4054 = vpack.c.bf16 %v3983, %v3980
        %v4055 = vpack.c.bf16 %v3991, %v3988
        %v4056 = vpack.c.bf16 %v3999, %v3996
        %v4057 = vpack.c.bf16 %v4007, %v4004
        %v4074 = vunpack.c.l.b16 %v4026
        %v4075 = vunpack.c.h.b16 %v4026
        %v4076 = vunpack.c.l.b16 %v4027
        %v4077 = vunpack.c.h.b16 %v4027
        %v4078 = vunpack.c.l.b16 %v4028
        %v4079 = vunpack.c.h.b16 %v4028
        %v4080 = vunpack.c.l.b16 %v4029
        %v4081 = vunpack.c.h.b16 %v4029
        %v4082 = vunpack.c.l.b16 %v4030
        %v4083 = vunpack.c.h.b16 %v4030
        %v4084 = vunpack.c.l.b16 %v4031
        %v4085 = vunpack.c.h.b16 %v4031
        %v4086 = vunpack.c.l.b16 %v4032
        %v4087 = vunpack.c.h.b16 %v4032
        %v4088 = vunpack.c.l.b16 %v4033
        %v4089 = vunpack.c.h.b16 %v4033
        %v4090 = vunpack.c.l.b16 %v4034
        %v4091 = vunpack.c.h.b16 %v4034
        %v4092 = vunpack.c.l.b16 %v4035
        %v4093 = vunpack.c.h.b16 %v4035
        %v4094 = vunpack.c.l.b16 %v4036
        %v4095 = vunpack.c.h.b16 %v4036
        %v4096 = vunpack.c.l.b16 %v4037
        %v4097 = vunpack.c.h.b16 %v4037
        %v4098 = vunpack.c.l.b16 %v4038
        %v4099 = vunpack.c.h.b16 %v4038
        %v4100 = vunpack.c.l.b16 %v4039
        %v4101 = vunpack.c.h.b16 %v4039
        %v4102 = vunpack.c.l.b16 %v4040
        %v4103 = vunpack.c.h.b16 %v4040
        %v4104 = vunpack.c.l.b16 %v4041
        %v4105 = vunpack.c.h.b16 %v4041
        %v4106 = vpack.c.b16 %v4076, %v4074
        %v4107 = vpack.c.b16 %v4077, %v4075
        %v4108 = vpack.c.b16 %v4080, %v4078
        %v4109 = vpack.c.b16 %v4081, %v4079
        %v4110 = vpack.c.b16 %v4084, %v4082
        %v4111 = vpack.c.b16 %v4085, %v4083
        %v4112 = vpack.c.b16 %v4088, %v4086
        %v4113 = vpack.c.b16 %v4089, %v4087
        %v4114 = vpack.c.b16 %v4092, %v4090
        %v4115 = vpack.c.b16 %v4093, %v4091
        %v4116 = vpack.c.b16 %v4096, %v4094
        %v4117 = vpack.c.b16 %v4097, %v4095
        %v4118 = vpack.c.b16 %v4100, %v4098
        %v4119 = vpack.c.b16 %v4101, %v4099
        %v4120 = vpack.c.b16 %v4104, %v4102
        %v4121 = vpack.c.b16 %v4105, %v4103
        %4138 = vmatprep.subr.bf16.mxu0 0
        %4139 = vmatpush1.bf16.msra.mxu0 %v4049
        %4140 = vmatprep.subr.bf16.mxu0 0
        %4141 = vmatpush1.bf16.msra.mxu0 %v4048
        %4142 = vmatprep.subr.bf16.mxu0 0
        %4143 = vmatpush1.bf16.msra.mxu0 %v4047
        %4144 = vmatprep.subr.bf16.mxu0 0
        %4145 = vmatpush1.bf16.msra.mxu0 %v4046
        %4146 = vmatprep.subr.bf16.mxu0 0
        %4147 = vmatpush1.bf16.msra.mxu0 %v4045
        %4148 = vmatprep.subr.bf16.mxu0 0
        %4149 = vmatpush1.bf16.msra.mxu0 %v4044
        %4150 = vmatprep.subr.bf16.mxu0 0
        %4151 = vmatpush1.bf16.msra.mxu0 %v4043
        %4152 = vmatprep.subr.bf16.mxu0 0
        %4153 = vmatpush1.bf16.msra.mxu0 %v4042
        %4154 = vmatprep.subr.bf16.mxu0 0
        %4155 = vmatpush2.bf16.msra.mxu0 %v4057
        %4156 = vmatprep.subr.bf16.mxu0 0
        %4157 = vmatpush2.bf16.msra.mxu0 %v4056
        %4158 = vmatprep.subr.bf16.mxu0 0
        %4159 = vmatpush2.bf16.msra.mxu0 %v4055
        %4160 = vmatprep.subr.bf16.mxu0 0
        %4161 = vmatpush2.bf16.msra.mxu0 %v4054
        %4162 = vmatprep.subr.bf16.mxu0 0
        %4163 = vmatpush2.bf16.msra.mxu0 %v4053
        %4164 = vmatprep.subr.bf16.mxu0 0
        %4165 = vmatpush2.bf16.msra.mxu0 %v4052
        %4166 = vmatprep.subr.bf16.mxu0 0
        %4167 = vmatpush2.bf16.msra.mxu0 %v4051
        %4168 = vmatprep.subr.bf16.mxu0 0
        %4169 = vmatpush2.bf16.msra.mxu0 %v4050
        %4170 = vmatprep.mubr.bf16.mxu0 %v4107
        %4171 = vmatmul.mubr.bf16.gmra.mxu0 %v4106
        %v4172 = vpop.f32.mrf.mxu0
        %v4173 = vadd.f32 0.0, %v4172
        %v4174 = vpop.f32.mrf.mxu0
        %v4175 = vpop.f32.mrf.mxu0
        %v4176 = vadd.f32 0.0, %v4175
        %v4177 = vpop.f32.mrf.mxu0
        %4178 = vmatprep.mubr.bf16.mxu0 %v4109
        %4179 = vmatmul.mubr.bf16.gmra.mxu0 %v4108
        %v4180 = vpop.f32.mrf.mxu0
        %v4181 = vadd.f32 0.0, %v4180
        %v4182 = vpop.f32.mrf.mxu0
        %v4183 = vpop.f32.mrf.mxu0
        %v4184 = vadd.f32 0.0, %v4183
        %v4185 = vpop.f32.mrf.mxu0
        %4186 = vmatprep.mubr.bf16.mxu0 %v4111
        %4187 = vmatmul.mubr.bf16.gmra.mxu0 %v4110
        %v4188 = vpop.f32.mrf.mxu0
        %v4189 = vadd.f32 0.0, %v4188
        %v4190 = vpop.f32.mrf.mxu0
        %v4191 = vpop.f32.mrf.mxu0
        %v4192 = vadd.f32 0.0, %v4191
        %v4193 = vpop.f32.mrf.mxu0
        %4194 = vmatprep.mubr.bf16.mxu0 %v4113
        %4195 = vmatmul.mubr.bf16.gmra.mxu0 %v4112
        %v4196 = vpop.f32.mrf.mxu0
        %v4197 = vadd.f32 0.0, %v4196
        %v4198 = vpop.f32.mrf.mxu0
        %v4199 = vpop.f32.mrf.mxu0
        %v4200 = vadd.f32 0.0, %v4199
        %v4201 = vpop.f32.mrf.mxu0
        %4202 = vmatprep.mubr.bf16.mxu0 %v4115
        %4203 = vmatmul.mubr.bf16.gmra.mxu0 %v4114
        %v4204 = vpop.f32.mrf.mxu0
        %v4205 = vadd.f32 0.0, %v4204
        %v4206 = vpop.f32.mrf.mxu0
        %v4207 = vpop.f32.mrf.mxu0
        %v4208 = vadd.f32 0.0, %v4207
        %v4209 = vpop.f32.mrf.mxu0
        %4210 = vmatprep.mubr.bf16.mxu0 %v4117
        %4211 = vmatmul.mubr.bf16.gmra.mxu0 %v4116
        %v4212 = vpop.f32.mrf.mxu0
        %v4213 = vadd.f32 0.0, %v4212
        %v4214 = vpop.f32.mrf.mxu0
        %v4215 = vpop.f32.mrf.mxu0
        %v4216 = vadd.f32 0.0, %v4215
        %v4217 = vpop.f32.mrf.mxu0
        %4218 = vmatprep.mubr.bf16.mxu0 %v4119
        %4219 = vmatmul.mubr.bf16.gmra.mxu0 %v4118
        %v4220 = vpop.f32.mrf.mxu0
        %v4221 = vadd.f32 0.0, %v4220
        %v4222 = vpop.f32.mrf.mxu0
        %v4223 = vpop.f32.mrf.mxu0
        %v4224 = vadd.f32 0.0, %v4223
        %v4225 = vpop.f32.mrf.mxu0
        %4226 = vmatprep.mubr.bf16.mxu0 %v4121
        %4227 = vmatmul.mubr.bf16.gmra.mxu0 %v4120
        %v4228 = vpop.f32.mrf.mxu0
        %v4229 = vadd.f32 0.0, %v4228
        %v4230 = vpop.f32.mrf.mxu0
        %v4231 = vpop.f32.mrf.mxu0
        %v4232 = vadd.f32 0.0, %v4231
        %v4233 = vpop.f32.mrf.mxu0
        %4234 = vdwg.mxu0
        %v4235 = vadd.f32 %v4010, %v4173
        %v4236 = vadd.f32 %v4011, %v4176
        %v4237 = vadd.f32 %v4012, %v4181
        %v4238 = vadd.f32 %v4013, %v4184
        %v4239 = vadd.f32 %v4014, %v4189
        %v4240 = vadd.f32 %v4015, %v4192
        %v4241 = vadd.f32 %v4016, %v4197
        %v4242 = vadd.f32 %v4017, %v4200
        %v4243 = vadd.f32 %v4018, %v4205
        %v4244 = vadd.f32 %v4019, %v4208
        %v4245 = vadd.f32 %v4020, %v4213
        %v4246 = vadd.f32 %v4021, %v4216
        %v4247 = vadd.f32 %v4022, %v4221
        %v4248 = vadd.f32 %v4023, %v4224
        %v4249 = vadd.f32 %v4024, %v4229
        %v4250 = vadd.f32 %v4025, %v4232
        %4251 = vst.msk [vmem:[#allocation3] sm:$0xff] %vm1009, %v4235
        %4252 = vst.msk [vmem:[#allocation3 + $0x8] sm:$0xff] %vm1009, %v4236
        %4253 = vst.msk [vmem:[#allocation3 + $0x10] sm:$0xff] %vm1009, %v4237
        %4254 = vst.msk [vmem:[#allocation3 + $0x18] sm:$0xff] %vm1009, %v4238
        %4255 = vst.msk [vmem:[#allocation3 + $0x20] sm:$0xff] %vm1009, %v4239
        %4256 = vst.msk [vmem:[#allocation3 + $0x28] sm:$0xff] %vm1009, %v4240
        %4257 = vst.msk [vmem:[#allocation3 + $0x30] sm:$0xff] %vm1009, %v4241
        %4258 = vst.msk [vmem:[#allocation3 + $0x38] sm:$0xff] %vm1009, %v4242
        %4259 = vst.msk [vmem:[#allocation3 + $0x40] sm:$0xff] %vm1009, %v4243
        %4260 = vst.msk [vmem:[#allocation3 + $0x48] sm:$0xff] %vm1009, %v4244
        %4261 = vst.msk [vmem:[#allocation3 + $0x50] sm:$0xff] %vm1009, %v4245
        %4262 = vst.msk [vmem:[#allocation3 + $0x58] sm:$0xff] %vm1009, %v4246
        %4263 = vst.msk [vmem:[#allocation3 + $0x60] sm:$0xff] %vm1009, %v4247
        %4264 = vst.msk [vmem:[#allocation3 + $0x68] sm:$0xff] %vm1009, %v4248
        %4265 = vst.msk [vmem:[#allocation3 + $0x70] sm:$0xff] %vm1009, %v4249
        %4266 = vst.msk [vmem:[#allocation3 + $0x78] sm:$0xff] %vm1009, %v4250
        %p4267 = scmp.eq.s32.totalorder %s35, 2
        // Predicated region
        $region89: #{spline_net_forward.1} parent=55 // pred_check
          %p4268 = pneg %p4267
        $region90: #{spline_net_forward.1} parent=55 // pred_check_branch
          %4270 = sbr.rel (%p4268) target = $region92
        $region91: #{spline_net_forward.1} parent=55 // pred_region
          %v4271 = vld [vmem:[%s467] sm:$0x7]
          %v4272 = vld [vmem:[#allocation3] sm:$0xff]
          %v4273 = vld [vmem:[#allocation3 + $0x8] sm:$0xff]
          %v4274 = vld [vmem:[#allocation3 + $0x10] sm:$0xff]
          %v4275 = vld [vmem:[#allocation3 + $0x18] sm:$0xff]
          %v4276 = vld [vmem:[#allocation3 + $0x20] sm:$0xff]
          %v4277 = vld [vmem:[#allocation3 + $0x28] sm:$0xff]
          %v4278 = vld [vmem:[#allocation3 + $0x30] sm:$0xff]
          %v4279 = vld [vmem:[#allocation3 + $0x38] sm:$0xff]
          %v4280 = vld [vmem:[#allocation3 + $0x40] sm:$0xff]
          %v4281 = vld [vmem:[#allocation3 + $0x48] sm:$0xff]
          %v4282 = vld [vmem:[#allocation3 + $0x50] sm:$0xff]
          %v4283 = vld [vmem:[#allocation3 + $0x58] sm:$0xff]
          %v4284 = vld [vmem:[#allocation3 + $0x60] sm:$0xff]
          %v4285 = vld [vmem:[#allocation3 + $0x68] sm:$0xff]
          %v4286 = vld [vmem:[#allocation3 + $0x70] sm:$0xff]
          %v4287 = vld [vmem:[#allocation3 + $0x78] sm:$0xff]
          %v4288 = vld [vmem:[%s3] sm:$0xff]
          %v4289 = vld [vmem:[%s3 + $0x8] sm:$0xff]
          %v4290 = vld [vmem:[%s3 + $0x10] sm:$0xff]
          %v4291 = vld [vmem:[%s3 + $0x18] sm:$0xff]
          %v4292 = vld [vmem:[%s3 + $0x20] sm:$0xff]
          %v4293 = vld [vmem:[%s3 + $0x28] sm:$0xff]
          %v4294 = vld [vmem:[%s3 + $0x30] sm:$0xff]
          %v4295 = vld [vmem:[%s3 + $0x38] sm:$0xff]
          %v4296 = vld [vmem:[%s3 + $0x40] sm:$0xff]
          %v4297 = vld [vmem:[%s3 + $0x48] sm:$0xff]
          %v4298 = vld [vmem:[%s3 + $0x50] sm:$0xff]
          %v4299 = vld [vmem:[%s3 + $0x58] sm:$0xff]
          %v4300 = vld [vmem:[%s3 + $0x60] sm:$0xff]
          %v4301 = vld [vmem:[%s3 + $0x68] sm:$0xff]
          %v4302 = vld [vmem:[%s3 + $0x70] sm:$0xff]
          %v4303 = vld [vmem:[%s3 + $0x78] sm:$0xff]
          %4305 = vset.pattern.permute.xlu0 0
          %4306 = vperm.xlu0 %4305, %v4288
          %v4307 = vpop.permute.xlu0 %4306
          %4310 = vset.pattern.permute.xlu0 0
          %4311 = vperm.xlu0 %4310, %v4289
          %v4312 = vpop.permute.xlu0 %4311
          %4315 = vset.pattern.permute.xlu0 0
          %4316 = vperm.xlu0 %4315, %v4290
          %v4317 = vpop.permute.xlu0 %4316
          %4320 = vset.pattern.permute.xlu0 0
          %4321 = vperm.xlu0 %4320, %v4291
          %v4322 = vpop.permute.xlu0 %4321
          %4325 = vset.pattern.permute.xlu0 0
          %4326 = vperm.xlu0 %4325, %v4292
          %v4327 = vpop.permute.xlu0 %4326
          %4330 = vset.pattern.permute.xlu0 0
          %4331 = vperm.xlu0 %4330, %v4293
          %v4332 = vpop.permute.xlu0 %4331
          %4335 = vset.pattern.permute.xlu0 0
          %4336 = vperm.xlu0 %4335, %v4294
          %v4337 = vpop.permute.xlu0 %4336
          %4340 = vset.pattern.permute.xlu0 0
          %4341 = vperm.xlu0 %4340, %v4295
          %v4342 = vpop.permute.xlu0 %4341
          %4345 = vset.pattern.permute.xlu0 0
          %4346 = vperm.xlu0 %4345, %v4296
          %v4347 = vpop.permute.xlu0 %4346
          %4350 = vset.pattern.permute.xlu0 0
          %4351 = vperm.xlu0 %4350, %v4297
          %v4352 = vpop.permute.xlu0 %4351
          %4355 = vset.pattern.permute.xlu0 0
          %4356 = vperm.xlu0 %4355, %v4298
          %v4357 = vpop.permute.xlu0 %4356
          %4360 = vset.pattern.permute.xlu0 0
          %4361 = vperm.xlu0 %4360, %v4299
          %v4362 = vpop.permute.xlu0 %4361
          %4365 = vset.pattern.permute.xlu0 0
          %4366 = vperm.xlu0 %4365, %v4300
          %v4367 = vpop.permute.xlu0 %4366
          %4370 = vset.pattern.permute.xlu0 0
          %4371 = vperm.xlu0 %4370, %v4301
          %v4372 = vpop.permute.xlu0 %4371
          %4375 = vset.pattern.permute.xlu0 0
          %4376 = vperm.xlu0 %4375, %v4302
          %v4377 = vpop.permute.xlu0 %4376
          %4380 = vset.pattern.permute.xlu0 0
          %4381 = vperm.xlu0 %4380, %v4303
          %v4382 = vpop.permute.xlu0 %4381
          %v4384 = vmul.f32 %v4272, %v4307
          %v4385 = vmul.f32 %v4273, %v4312
          %v4386 = vmul.f32 %v4274, %v4317
          %v4387 = vmul.f32 %v4275, %v4322
          %v4388 = vmul.f32 %v4276, %v4327
          %v4389 = vmul.f32 %v4277, %v4332
          %v4390 = vmul.f32 %v4278, %v4337
          %v4391 = vmul.f32 %v4279, %v4342
          %v4392 = vmul.f32 %v4280, %v4347
          %v4393 = vmul.f32 %v4281, %v4352
          %v4394 = vmul.f32 %v4282, %v4357
          %v4395 = vmul.f32 %v4283, %v4362
          %v4396 = vmul.f32 %v4284, %v4367
          %v4397 = vmul.f32 %v4285, %v4372
          %v4398 = vmul.f32 %v4286, %v4377
          %v4399 = vmul.f32 %v4287, %v4382
          %v4400 = vld [vmem:[%s458] sm:$0xff]
          %v4401 = vld [vmem:[%s458 + $0x8] sm:$0xff]
          %v4402 = vld [vmem:[%s458 + $0x10] sm:$0xff]
          %v4403 = vld [vmem:[%s458 + $0x18] sm:$0xff]
          %v4405 = vsel %vm1009, %v584, 0
          %v4408 = vsel %vm1009, %v585, 0
          %v4411 = vsel %vm1009, %v586, 0
          %v4414 = vsel %vm1009, %v587, 0
          %v4417 = vsel %vm1009, %v588, 0
          %v4420 = vsel %vm1009, %v589, 0
          %v4423 = vsel %vm1009, %v590, 0
          %v4426 = vsel %vm1009, %v591, 0
          %v4429 = vsel %vm1009, %v592, 0
          %v4432 = vsel %vm1009, %v593, 0
          %v4435 = vsel %vm1009, %v594, 0
          %v4438 = vsel %vm1009, %v595, 0
          %v4441 = vsel %vm1009, %v596, 0
          %v4444 = vsel %vm1009, %v597, 0
          %v4447 = vsel %vm1009, %v598, 0
          %v4450 = vsel %vm1009, %v599, 0
          %4452 = vmatprep.subr.mxu0 0.0
          %4453 = vmatpush1.msra.mxu0 0.0
          %4454 = vmatprep.subr.mxu0 0.0
          %4455 = vmatpush1.msra.mxu0 0.0
          %4456 = vmatprep.subr.mxu0 0.0
          %4457 = vmatpush1.msra.mxu0 0.0
          %4458 = vmatprep.subr.mxu0 0.0
          %4459 = vmatpush1.msra.mxu0 0.0
          %4460 = vmatprep.subr.mxu0 0.0
          %4461 = vmatpush1.msra.mxu0 0.0
          %4462 = vmatprep.subr.mxu0 0.0
          %4463 = vmatpush1.msra.mxu0 0.0
          %4464 = vmatprep.subr.mxu0 0.0
          %4465 = vmatpush1.msra.mxu0 0.0
          %4466 = vmatprep.subr.mxu0 0.0
          %4467 = vmatpush1.msra.mxu0 0.0
          %4468 = vmatprep.subr.mxu0 0.0
          %4469 = vmatpush1.msra.mxu0 0.0
          %4470 = vmatprep.subr.mxu0 0.0
          %4471 = vmatpush1.msra.mxu0 0.0
          %4472 = vmatprep.subr.mxu0 0.0
          %4473 = vmatpush1.msra.mxu0 0.0
          %4474 = vmatprep.subr.mxu0 0.0
          %4475 = vmatpush1.msra.mxu0 0.0
          %4476 = vmatprep.subr.mxu0 0.0
          %4477 = vmatpush1.msra.mxu0 %v4403
          %4478 = vmatprep.subr.mxu0 0.0
          %4479 = vmatpush1.msra.mxu0 %v4402
          %4480 = vmatprep.subr.mxu0 0.0
          %4481 = vmatpush1.msra.mxu0 %v4401
          %4482 = vmatprep.subr.mxu0 0.0
          %4483 = vmatpush1.msra.mxu0 %v4400
          %4484 = vmatprep.subr.mxu0 0.0
          %4485 = vmatpush2.msra.mxu0 0.0
          %4486 = vmatprep.subr.mxu0 0.0
          %4487 = vmatpush2.msra.mxu0 0.0
          %4488 = vmatprep.subr.mxu0 0.0
          %4489 = vmatpush2.msra.mxu0 0.0
          %4490 = vmatprep.subr.mxu0 0.0
          %4491 = vmatpush2.msra.mxu0 0.0
          %4492 = vmatprep.subr.mxu0 0.0
          %4493 = vmatpush2.msra.mxu0 0.0
          %4494 = vmatprep.subr.mxu0 0.0
          %4495 = vmatpush2.msra.mxu0 0.0
          %4496 = vmatprep.subr.mxu0 0.0
          %4497 = vmatpush2.msra.mxu0 0.0
          %4498 = vmatprep.subr.mxu0 0.0
          %4499 = vmatpush2.msra.mxu0 0.0
          %4500 = vmatprep.subr.mxu0 0.0
          %4501 = vmatpush2.msra.mxu0 0.0
          %4502 = vmatprep.subr.mxu0 0.0
          %4503 = vmatpush2.msra.mxu0 0.0
          %4504 = vmatprep.subr.mxu0 0.0
          %4505 = vmatpush2.msra.mxu0 0.0
          %4506 = vmatprep.subr.mxu0 0.0
          %4507 = vmatpush2.msra.mxu0 0.0
          %4508 = vmatprep.subr.mxu0 0.0
          %4509 = vmatpush2.msra.mxu0 0.0
          %4510 = vmatprep.subr.mxu0 0.0
          %4511 = vmatpush2.msra.mxu0 0.0
          %4512 = vmatprep.subr.mxu0 0.0
          %4513 = vmatpush2.msra.mxu0 0.0
          %4514 = vmatprep.subr.mxu0 0.0
          %4515 = vmatpush2.msra.mxu0 0.0
          %4516 = vmatprep.mubr.f32.mxu0 0.0
          %4517 = vmatmul.mubr.f32.gmra.mxu0 %v4405
          %v4518 = vpop.f32.mrf.mxu0
          %v4519 = vadd.f32 0.0, %v4518
          %v4520 = vpop.f32.mrf.mxu0
          %4521 = vmatprep.mubr.f32.mxu0 0.0
          %4522 = vmatmul.mubr.f32.gmra.mxu0 %v4408
          %v4523 = vpop.f32.mrf.mxu0
          %v4524 = vadd.f32 0.0, %v4523
          %v4525 = vpop.f32.mrf.mxu0
          %4526 = vmatprep.mubr.f32.mxu0 0.0
          %4527 = vmatmul.mubr.f32.gmra.mxu0 %v4411
          %v4528 = vpop.f32.mrf.mxu0
          %v4529 = vadd.f32 0.0, %v4528
          %v4530 = vpop.f32.mrf.mxu0
          %4531 = vmatprep.mubr.f32.mxu0 0.0
          %4532 = vmatmul.mubr.f32.gmra.mxu0 %v4414
          %v4533 = vpop.f32.mrf.mxu0
          %v4534 = vadd.f32 0.0, %v4533
          %v4535 = vpop.f32.mrf.mxu0
          %4536 = vmatprep.mubr.f32.mxu0 0.0
          %4537 = vmatmul.mubr.f32.gmra.mxu0 %v4417
          %v4538 = vpop.f32.mrf.mxu0
          %v4539 = vadd.f32 0.0, %v4538
          %v4540 = vpop.f32.mrf.mxu0
          %4541 = vmatprep.mubr.f32.mxu0 0.0
          %4542 = vmatmul.mubr.f32.gmra.mxu0 %v4420
          %v4543 = vpop.f32.mrf.mxu0
          %v4544 = vadd.f32 0.0, %v4543
          %v4545 = vpop.f32.mrf.mxu0
          %4546 = vmatprep.mubr.f32.mxu0 0.0
          %4547 = vmatmul.mubr.f32.gmra.mxu0 %v4423
          %v4548 = vpop.f32.mrf.mxu0
          %v4549 = vadd.f32 0.0, %v4548
          %v4550 = vpop.f32.mrf.mxu0
          %4551 = vmatprep.mubr.f32.mxu0 0.0
          %4552 = vmatmul.mubr.f32.gmra.mxu0 %v4426
          %v4553 = vpop.f32.mrf.mxu0
          %v4554 = vadd.f32 0.0, %v4553
          %v4555 = vpop.f32.mrf.mxu0
          %4556 = vmatprep.mubr.f32.mxu0 0.0
          %4557 = vmatmul.mubr.f32.gmra.mxu0 %v4429
          %v4558 = vpop.f32.mrf.mxu0
          %v4559 = vadd.f32 0.0, %v4558
          %v4560 = vpop.f32.mrf.mxu0
          %4561 = vmatprep.mubr.f32.mxu0 0.0
          %4562 = vmatmul.mubr.f32.gmra.mxu0 %v4432
          %v4563 = vpop.f32.mrf.mxu0
          %v4564 = vadd.f32 0.0, %v4563
          %v4565 = vpop.f32.mrf.mxu0
          %4566 = vmatprep.mubr.f32.mxu0 0.0
          %4567 = vmatmul.mubr.f32.gmra.mxu0 %v4435
          %v4568 = vpop.f32.mrf.mxu0
          %v4569 = vadd.f32 0.0, %v4568
          %v4570 = vpop.f32.mrf.mxu0
          %4571 = vmatprep.mubr.f32.mxu0 0.0
          %4572 = vmatmul.mubr.f32.gmra.mxu0 %v4438
          %v4573 = vpop.f32.mrf.mxu0
          %v4574 = vadd.f32 0.0, %v4573
          %v4575 = vpop.f32.mrf.mxu0
          %4576 = vmatprep.mubr.f32.mxu0 0.0
          %4577 = vmatmul.mubr.f32.gmra.mxu0 %v4441
          %v4578 = vpop.f32.mrf.mxu0
          %v4579 = vadd.f32 0.0, %v4578
          %v4580 = vpop.f32.mrf.mxu0
          %4581 = vmatprep.mubr.f32.mxu0 0.0
          %4582 = vmatmul.mubr.f32.gmra.mxu0 %v4444
          %v4583 = vpop.f32.mrf.mxu0
          %v4584 = vadd.f32 0.0, %v4583
          %v4585 = vpop.f32.mrf.mxu0
          %4586 = vmatprep.mubr.f32.mxu0 0.0
          %4587 = vmatmul.mubr.f32.gmra.mxu0 %v4447
          %v4588 = vpop.f32.mrf.mxu0
          %v4589 = vadd.f32 0.0, %v4588
          %v4590 = vpop.f32.mrf.mxu0
          %4591 = vmatprep.mubr.f32.mxu0 0.0
          %4592 = vmatmul.mubr.f32.gmra.mxu0 %v4450
          %v4593 = vpop.f32.mrf.mxu0
          %v4594 = vadd.f32 0.0, %v4593
          %v4595 = vpop.f32.mrf.mxu0
          %4596 = vdwg.mxu0
          %v4597 = vadd.f32 %v4384, %v4519
          %v4598 = vadd.f32 %v4385, %v4524
          %v4599 = vadd.f32 %v4386, %v4529
          %v4600 = vadd.f32 %v4387, %v4534
          %v4601 = vadd.f32 %v4388, %v4539
          %v4602 = vadd.f32 %v4389, %v4544
          %v4603 = vadd.f32 %v4390, %v4549
          %v4604 = vadd.f32 %v4391, %v4554
          %v4605 = vadd.f32 %v4392, %v4559
          %v4606 = vadd.f32 %v4393, %v4564
          %v4607 = vadd.f32 %v4394, %v4569
          %v4608 = vadd.f32 %v4395, %v4574
          %v4609 = vadd.f32 %v4396, %v4579
          %v4610 = vadd.f32 %v4397, %v4584
          %v4611 = vadd.f32 %v4398, %v4589
          %v4612 = vadd.f32 %v4399, %v4594
          %v4613 = vlaneseq
          %v4614 = vshrl.u32 %v4613, 7
          %v4615 = vsub.s32 0, %v4614
          %v4616 = vrot.slane %v4271, %v4615
          %v4617 = vadd.f32 %v4597, %v4616
          %v4618 = vadd.f32 %v4598, %v4616
          %v4619 = vadd.f32 %v4599, %v4616
          %v4620 = vadd.f32 %v4600, %v4616
          %v4621 = vadd.f32 %v4601, %v4616
          %v4622 = vadd.f32 %v4602, %v4616
          %v4623 = vadd.f32 %v4603, %v4616
          %v4624 = vadd.f32 %v4604, %v4616
          %v4625 = vadd.f32 %v4605, %v4616
          %v4626 = vadd.f32 %v4606, %v4616
          %v4627 = vadd.f32 %v4607, %v4616
          %v4628 = vadd.f32 %v4608, %v4616
          %v4629 = vadd.f32 %v4609, %v4616
          %v4630 = vadd.f32 %v4610, %v4616
          %v4631 = vadd.f32 %v4611, %v4616
          %v4632 = vadd.f32 %v4612, %v4616
          %vm4633 = vcmp.gt.f32.partialorder %v4617, 0.0
          %vm4634 = vcmp.gt.f32.partialorder %v4618, 0.0
          %vm4635 = vcmp.gt.f32.partialorder %v4619, 0.0
          %vm4636 = vcmp.gt.f32.partialorder %v4620, 0.0
          %vm4637 = vcmp.gt.f32.partialorder %v4621, 0.0
          %vm4638 = vcmp.gt.f32.partialorder %v4622, 0.0
          %vm4639 = vcmp.gt.f32.partialorder %v4623, 0.0
          %vm4640 = vcmp.gt.f32.partialorder %v4624, 0.0
          %vm4641 = vcmp.gt.f32.partialorder %v4625, 0.0
          %vm4642 = vcmp.gt.f32.partialorder %v4626, 0.0
          %vm4643 = vcmp.gt.f32.partialorder %v4627, 0.0
          %vm4644 = vcmp.gt.f32.partialorder %v4628, 0.0
          %vm4645 = vcmp.gt.f32.partialorder %v4629, 0.0
          %vm4646 = vcmp.gt.f32.partialorder %v4630, 0.0
          %vm4647 = vcmp.gt.f32.partialorder %v4631, 0.0
          %vm4648 = vcmp.gt.f32.partialorder %v4632, 0.0
          %v4649 = vmin.f32 %v4617, 0.0
          %v4650 = vmin.f32 %v4618, 0.0
          %v4651 = vmin.f32 %v4619, 0.0
          %v4652 = vmin.f32 %v4620, 0.0
          %v4653 = vmin.f32 %v4621, 0.0
          %v4654 = vmin.f32 %v4622, 0.0
          %v4655 = vmin.f32 %v4623, 0.0
          %v4656 = vmin.f32 %v4624, 0.0
          %v4657 = vmin.f32 %v4625, 0.0
          %v4658 = vmin.f32 %v4626, 0.0
          %v4659 = vmin.f32 %v4627, 0.0
          %v4660 = vmin.f32 %v4628, 0.0
          %v4661 = vmin.f32 %v4629, 0.0
          %v4662 = vmin.f32 %v4630, 0.0
          %v4663 = vmin.f32 %v4631, 0.0
          %v4664 = vmin.f32 %v4632, 0.0
          %v4665 = vmul.f32 %v4649, 1.442695
          %v4666 = vpow.pop %v4665
          %v4667 = vmul.f32 %v4650, 1.442695
          %v4668 = vpow.pop %v4667
          %v4669 = vmul.f32 %v4651, 1.442695
          %v4670 = vpow.pop %v4669
          %v4671 = vmul.f32 %v4652, 1.442695
          %v4672 = vpow.pop %v4671
          %v4673 = vmul.f32 %v4653, 1.442695
          %v4674 = vpow.pop %v4673
          %v4675 = vmul.f32 %v4654, 1.442695
          %v4676 = vpow.pop %v4675
          %v4677 = vmul.f32 %v4655, 1.442695
          %v4678 = vpow.pop %v4677
          %v4679 = vmul.f32 %v4656, 1.442695
          %v4680 = vpow.pop %v4679
          %v4681 = vmul.f32 %v4657, 1.442695
          %v4682 = vpow.pop %v4681
          %v4683 = vmul.f32 %v4658, 1.442695
          %v4684 = vpow.pop %v4683
          %v4685 = vmul.f32 %v4659, 1.442695
          %v4686 = vpow.pop %v4685
          %v4687 = vmul.f32 %v4660, 1.442695
          %v4688 = vpow.pop %v4687
          %v4689 = vmul.f32 %v4661, 1.442695
          %v4690 = vpow.pop %v4689
          %v4691 = vmul.f32 %v4662, 1.442695
          %v4692 = vpow.pop %v4691
          %v4693 = vmul.f32 %v4663, 1.442695
          %v4694 = vpow.pop %v4693
          %v4695 = vmul.f32 %v4664, 1.442695
          %v4696 = vpow.pop %v4695
          %v4697 = vsub.f32 %v4666, 1.0
          %v4698 = vsub.f32 %v4668, 1.0
          %v4699 = vsub.f32 %v4670, 1.0
          %v4700 = vsub.f32 %v4672, 1.0
          %v4701 = vsub.f32 %v4674, 1.0
          %v4702 = vsub.f32 %v4676, 1.0
          %v4703 = vsub.f32 %v4678, 1.0
          %v4704 = vsub.f32 %v4680, 1.0
          %v4705 = vsub.f32 %v4682, 1.0
          %v4706 = vsub.f32 %v4684, 1.0
          %v4707 = vsub.f32 %v4686, 1.0
          %v4708 = vsub.f32 %v4688, 1.0
          %v4709 = vsub.f32 %v4690, 1.0
          %v4710 = vsub.f32 %v4692, 1.0
          %v4711 = vsub.f32 %v4694, 1.0
          %v4712 = vsub.f32 %v4696, 1.0
          %v4713 = vsel %vm4633, %v4617, %v4697
          %v4714 = vsel %vm4634, %v4618, %v4698
          %v4715 = vsel %vm4635, %v4619, %v4699
          %v4716 = vsel %vm4636, %v4620, %v4700
          %v4717 = vsel %vm4637, %v4621, %v4701
          %v4718 = vsel %vm4638, %v4622, %v4702
          %v4719 = vsel %vm4639, %v4623, %v4703
          %v4720 = vsel %vm4640, %v4624, %v4704
          %v4721 = vsel %vm4641, %v4625, %v4705
          %v4722 = vsel %vm4642, %v4626, %v4706
          %v4723 = vsel %vm4643, %v4627, %v4707
          %v4724 = vsel %vm4644, %v4628, %v4708
          %v4725 = vsel %vm4645, %v4629, %v4709
          %v4726 = vsel %vm4646, %v4630, %v4710
          %v4727 = vsel %vm4647, %v4631, %v4711
          %v4728 = vsel %vm4648, %v4632, %v4712
          %v4729 = vlaneseq
          %v4730 = vshrl.u32 %v4729, 7
          %v4731 = vsub.s32 1, %v4730
          %v4732 = vrot.slane %v4271, %v4731
          %v4733 = vmul.f32 %v4713, %v4732
          %v4734 = vmul.f32 %v4714, %v4732
          %v4735 = vmul.f32 %v4715, %v4732
          %v4736 = vmul.f32 %v4716, %v4732
          %v4737 = vmul.f32 %v4717, %v4732
          %v4738 = vmul.f32 %v4718, %v4732
          %v4739 = vmul.f32 %v4719, %v4732
          %v4740 = vmul.f32 %v4720, %v4732
          %v4741 = vmul.f32 %v4721, %v4732
          %v4742 = vmul.f32 %v4722, %v4732
          %v4743 = vmul.f32 %v4723, %v4732
          %v4744 = vmul.f32 %v4724, %v4732
          %v4745 = vmul.f32 %v4725, %v4732
          %v4746 = vmul.f32 %v4726, %v4732
          %v4747 = vmul.f32 %v4727, %v4732
          %v4748 = vmul.f32 %v4728, %v4732
          %v4749 = vlaneseq
          %v4750 = vshrl.u32 %v4749, 7
          %v4751 = vsub.s32 2, %v4750
          %v4752 = vrot.slane %v4271, %v4751
          %v4753 = vadd.f32 %v4733, %v4752
          %v4754 = vadd.f32 %v4734, %v4752
          %v4755 = vadd.f32 %v4735, %v4752
          %v4756 = vadd.f32 %v4736, %v4752
          %v4757 = vadd.f32 %v4737, %v4752
          %v4758 = vadd.f32 %v4738, %v4752
          %v4759 = vadd.f32 %v4739, %v4752
          %v4760 = vadd.f32 %v4740, %v4752
          %v4761 = vadd.f32 %v4741, %v4752
          %v4762 = vadd.f32 %v4742, %v4752
          %v4763 = vadd.f32 %v4743, %v4752
          %v4764 = vadd.f32 %v4744, %v4752
          %v4765 = vadd.f32 %v4745, %v4752
          %v4766 = vadd.f32 %v4746, %v4752
          %v4767 = vadd.f32 %v4747, %v4752
          %v4768 = vadd.f32 %v4748, %v4752
          %4769 = vst.msk [vmem:[#allocation2] sm:$0xff] %vm1009, %v4753
          %4770 = vst.msk [vmem:[#allocation2 + $0x8] sm:$0xff] %vm1009, %v4754
          %4771 = vst.msk [vmem:[#allocation2 + $0x10] sm:$0xff] %vm1009, %v4755
          %4772 = vst.msk [vmem:[#allocation2 + $0x18] sm:$0xff] %vm1009, %v4756
          %4773 = vst.msk [vmem:[#allocation2 + $0x20] sm:$0xff] %vm1009, %v4757
          %4774 = vst.msk [vmem:[#allocation2 + $0x28] sm:$0xff] %vm1009, %v4758
          %4775 = vst.msk [vmem:[#allocation2 + $0x30] sm:$0xff] %vm1009, %v4759
          %4776 = vst.msk [vmem:[#allocation2 + $0x38] sm:$0xff] %vm1009, %v4760
          %4777 = vst.msk [vmem:[#allocation2 + $0x40] sm:$0xff] %vm1009, %v4761
          %4778 = vst.msk [vmem:[#allocation2 + $0x48] sm:$0xff] %vm1009, %v4762
          %4779 = vst.msk [vmem:[#allocation2 + $0x50] sm:$0xff] %vm1009, %v4763
          %4780 = vst.msk [vmem:[#allocation2 + $0x58] sm:$0xff] %vm1009, %v4764
          %4781 = vst.msk [vmem:[#allocation2 + $0x60] sm:$0xff] %vm1009, %v4765
          %4782 = vst.msk [vmem:[#allocation2 + $0x68] sm:$0xff] %vm1009, %v4766
          %4783 = vst.msk [vmem:[#allocation2 + $0x70] sm:$0xff] %vm1009, %v4767
          %4784 = vst.msk [vmem:[#allocation2 + $0x78] sm:$0xff] %vm1009, %v4768
          %4785 = vst.msk [vmem:[%s9] sm:$0xff] %vm1009, %v4753
          %4786 = vst.msk [vmem:[%s9 + $0x8] sm:$0xff] %vm1009, %v4754
          %4787 = vst.msk [vmem:[%s9 + $0x10] sm:$0xff] %vm1009, %v4755
          %4788 = vst.msk [vmem:[%s9 + $0x18] sm:$0xff] %vm1009, %v4756
          %4789 = vst.msk [vmem:[%s9 + $0x20] sm:$0xff] %vm1009, %v4757
          %4790 = vst.msk [vmem:[%s9 + $0x28] sm:$0xff] %vm1009, %v4758
          %4791 = vst.msk [vmem:[%s9 + $0x30] sm:$0xff] %vm1009, %v4759
          %4792 = vst.msk [vmem:[%s9 + $0x38] sm:$0xff] %vm1009, %v4760
          %4793 = vst.msk [vmem:[%s9 + $0x40] sm:$0xff] %vm1009, %v4761
          %4794 = vst.msk [vmem:[%s9 + $0x48] sm:$0xff] %vm1009, %v4762
          %4795 = vst.msk [vmem:[%s9 + $0x50] sm:$0xff] %vm1009, %v4763
          %4796 = vst.msk [vmem:[%s9 + $0x58] sm:$0xff] %vm1009, %v4764
          %4797 = vst.msk [vmem:[%s9 + $0x60] sm:$0xff] %vm1009, %v4765
          %4798 = vst.msk [vmem:[%s9 + $0x68] sm:$0xff] %vm1009, %v4766
          %4799 = vst.msk [vmem:[%s9 + $0x70] sm:$0xff] %vm1009, %v4767
          %4800 = vst.msk [vmem:[%s9 + $0x78] sm:$0xff] %vm1009, %v4768
        $region92: #{spline_net_forward.1} parent=55 // pred_fallthru
          _
        // Predicated region
        $region93: #{spline_net_forward.1} parent=55 // pred_check
          %p4801 = pneg %p271
        $region94: #{spline_net_forward.1} parent=55 // pred_check_branch
          %4803 = sbr.rel (%p4801) target = $region96
        $region95: #{spline_net_forward.1} parent=55 // pred_region
          _
        $region96: #{spline_net_forward.1} parent=55 // pred_fallthru
          _
        // Predicated region
        $region97: #{spline_net_forward.1} parent=55 // pred_check
          %p4804 = pneg %p271
        $region98: #{spline_net_forward.1} parent=55 // pred_check_branch
          %4806 = sbr.rel (%p4804) target = $region100
        $region99: #{spline_net_forward.1} parent=55 // pred_region
          _
        $region100: #{spline_net_forward.1} parent=55 // pred_fallthru
          _
      $region56: #{spline_net_forward.1} parent=5 // pred_fallthru
        _
      %p4807 = scmp.le.s32.totalorder 2, %s25
      // Predicated region
      $region101: #{spline_net_forward.1} parent=5 // pred_check
        %p4808 = pneg %p4807
      $region102: #{spline_net_forward.1} parent=5 // pred_check_branch
        %4810 = sbr.rel (%p4808) target = $region104
      $region103: #{spline_net_forward.1} parent=5 // pred_region
        %s4811 = ssub.s32 %s25, 2
      $region104: #{spline_net_forward.1} parent=5 // pred_fallthru
        _
    $region6: #{spline_net_forward.1} parent=1 // loop_footer
      %s29 = sadd.s32 1, %s25
    $region7: #{spline_net_forward.1} parent=1 // loop_footer_branch
      %24 = sbr.rel target = $region3
    $region8: #{spline_net_forward.1} parent=1 // loop_exit
      _
    %4812 = vsyncpa [#allocation5], 1
    %s4813 = scalar_lea.sflag [#allocation5], 1
    %4814 = vsyncpa %s4813, 1
    %4815 = vsyncpa [#allocation7], 1
    %s4816 = scalar_lea.sflag [#allocation7], 1
    %4817 = vsyncpa %s4816, 1
    %4818 = vsyncpa [#allocation10], 1
    %s4819 = scalar_lea.sflag [#allocation10], 1
    %4820 = vsyncpa %s4819, 1
    %4821 = vsyncpa [#allocation13], 1

</llo_original>
